<compile_context>
chip_gen: v7x
topology: tpu7x:2x2x1
jax: 0.10.0
libtpu: 0.0.40
codegen_flags: <defaults>
</compile_context>

<pallas_src>
import jax
import jax.numpy as jnp
import numpy as np
from jax import lax
from jax.experimental import pallas as pl
from jax.experimental.pallas import tpu as pltpu

# ----------------------------- hyper-params ---------------------------------
INPUT_SIZE = 10          # vocab-ish; embedding has INPUT_SIZE + 1 rows
EMB_SIZE = 32            # E
HIDDEN_SIZE = 32         # H
WEIGHT_SIZE = 32         # W (attention projection width)
ANSWER_SEQ_LEN = 8       # T (decoder steps)
BATCH = 2                # B
SEQ_LEN = 8              # L (encoder input length)


# ------------------------------- kernel -------------------------------------
def pointer_kernel(x_ref, wslab_ref, bslab_ref, out_ref, xg_ref, henc_ref):
    """Whole PointerNetwork forward in one program.

    x_ref     : (L*B, E)      embedded tokens, (l, b)-row-major
    wslab_ref : (H, 5*4H)     [W_ih_enc | W_hh_enc | W_hh_dec | W1(pad) | W2(pad)]
                              (lane-aligned 128-wide segments; E == H here)
    bslab_ref : (1, 3*4H)     [b_enc | b_dec | vt(pad)]
    out_ref   : (B, T, L)     per-step log-probs (log-softmax over L), final layout
    xg_ref    : (L*B, 4H)     VMEM scratch: hoisted encoder input projection
    henc_ref  : (B, L, H)     VMEM scratch: encoder hidden states (B-major)
    """
    B, T, L = out_ref.shape
    H = henc_ref.shape[2]
    S = 4 * H                      # 128: one lane tile per weight segment
    W = WEIGHT_SIZE

    # ---- packed weights / biases: static, lane-aligned slices (1x each) ----
    wih_e = wslab_ref[:, 0:S]                 # (E, 4H)
    whh_e = wslab_ref[:, S:2 * S]             # (H, 4H)
    whh_d = wslab_ref[:, 2 * S:3 * S]         # (H, 4H)
    w1 = wslab_ref[:, 3 * S:3 * S + W]        # (H, W)
    w2 = wslab_ref[:, 4 * S:4 * S + W]        # (H, W)
    b_e = bslab_ref[0:1, 0:S]                 # (1, 4H)  (b_ih + b_hh, encoder)
    b_d = bslab_ref[0:1, S:2 * S]             # (1, 4H)  (b_ih + b_hh, decoder)
    vt = bslab_ref[0:1, 2 * S:2 * S + W]      # (1, W)

    def gates_to_hc(gates, c):
        # PyTorch LSTM gate order: i, f, g, o
        i = jax.nn.sigmoid(gates[:, 0 * H:1 * H])
        f = jax.nn.sigmoid(gates[:, 1 * H:2 * H])
        g = jnp.tanh(gates[:, 2 * H:3 * H])
        o = jax.nn.sigmoid(gates[:, 3 * H:4 * H])
        c_new = f * c + i * g
        h_new = o * jnp.tanh(c_new)
        return h_new, c_new

    # ---- encoder input projection: hoisted out of the recurrence ----------
    # One (L*B, E) @ (E, 4H) matmul instead of L tiny M=B matmuls on the
    # serialized h->h chain.  Bias folded in here.
    xg_ref[...] = (
        jnp.dot(x_ref[...], wih_e, preferred_element_type=jnp.float32) + b_e)

    # ---- encoder LSTM over L timesteps (fully unrolled) --------------------
    def enc_body(t, carry):
        h, c = carry
        row = pl.multiple_of(t * B, B)
        gates = xg_ref[pl.ds(row, B), :] + jnp.dot(
            h, whh_e, preferred_element_type=jnp.float32)
        h_new, c_new = gates_to_hc(gates, c)
        henc_ref[:, t, :] = h_new          # B-major state cache for batched W1
        return h_new, c_new

    h0 = jnp.zeros((B, H), jnp.float32)
    c0 = jnp.zeros((B, H), jnp.float32)
    h_last, _ = lax.fori_loop(0, L, enc_body, (h0, c0), unroll=True)

    # ---- blend1 = W1(encoder_states): ONE batched matmul, B-major layout ---
    # (B, L, H) -> (B*L, H) is a tile-aligned reshape here (L == 8 sublanes).
    henc = henc_ref[...]                                         # (B, L, H)
    blend1 = jnp.dot(henc.reshape(B * L, H), w1,
                     preferred_element_type=jnp.float32).reshape(B, L, W)

    # Hoisted broadcasts: JAX does not CSE broadcast_in_dim, and the decoder
    # loop below is fully unrolled.
    vt_b = jnp.broadcast_to(vt.reshape(1, 1, W), (B, L, W))
    b_d_b = jnp.broadcast_to(b_d, (B, S))

    # ---- decoder LSTMCell + pointer attention (fully unrolled) -------------
    def dec_body(i, carry):
        h, c = carry
        # decoder_input is always zeros -> x @ W_ih_dec contributes nothing;
        # its bias is already folded into b_d.
        gates = jnp.dot(h, whh_d, preferred_element_type=jnp.float32) + b_d_b
        h_new, c_new = gates_to_hc(gates, c)

        blend2 = jnp.dot(h_new, w2, preferred_element_type=jnp.float32)  # (B, W)
        bs = jnp.tanh(blend1 + blend2[:, None, :])                       # (B, L, W)
        scores = jnp.sum(bs * vt_b, axis=-1)                             # (B, L)

        # log-softmax over the L candidates (lane axis) -> matches PyTorch's
        # log_softmax(out.transpose(0,1), dim=-1).
        m = jnp.max(scores, axis=-1, keepdims=True)                      # (B, 1)
        z = scores - m
        lse = jnp.log(jnp.sum(jnp.exp(z), axis=-1, keepdims=True))       # (B, 1)
        out_ref[:, i, :] = z - lse                 # direct (B, T, L) layout
        return h_new, c_new

    hd0 = jnp.zeros((B, H), jnp.float32)
    # cell_state is initialized from the encoder's *last hidden* state
    # (encoder_last_state[-1] quirk of the reference module).
    lax.fori_loop(0, T, dec_body, (hd0, h_last), unroll=True)


# ------------------------------- wrapper -------------------------------------
def init_params(key):
    """Deterministic synthetic parameters with PyTorch-layout shapes."""
    H, E, W, V = HIDDEN_SIZE, EMB_SIZE, WEIGHT_SIZE, INPUT_SIZE + 1
    ks = jax.random.split(key, 12)
    s = 0.1
    return {
        "emb":       jax.random.normal(ks[0], (V, E), jnp.float32),
        "enc_w_ih":  s * jax.random.normal(ks[1], (4 * H, E), jnp.float32),
        "enc_w_hh":  s * jax.random.normal(ks[2], (4 * H, H), jnp.float32),
        "enc_b_ih":  s * jax.random.normal(ks[3], (4 * H,), jnp.float32),
        "enc_b_hh":  s * jax.random.normal(ks[4], (4 * H,), jnp.float32),
        "dec_w_ih":  s * jax.random.normal(ks[5], (4 * H, E), jnp.float32),  # unused: decoder input is all-zeros
        "dec_w_hh":  s * jax.random.normal(ks[6], (4 * H, H), jnp.float32),
        "dec_b_ih":  s * jax.random.normal(ks[7], (4 * H,), jnp.float32),
        "dec_b_hh":  s * jax.random.normal(ks[8], (4 * H,), jnp.float32),
        "W1":        s * jax.random.normal(ks[9], (W, H), jnp.float32),
        "W2":        s * jax.random.normal(ks[10], (W, H), jnp.float32),
        "vt":        s * jax.random.normal(ks[11], (1, W), jnp.float32),
    }


def pointer_network_forward(tokens, params):
    B, L = tokens.shape
    T, H, E, W = ANSWER_SEQ_LEN, HIDDEN_SIZE, EMB_SIZE, WEIGHT_SIZE
    S = 4 * H
    assert E == H, "weight-slab packing assumes emb_size == hidden_size"

    # glue: embedding gather + (l, b)-row-major flat layout for the kernel's
    # single hoisted input-projection matmul.
    x = jnp.take(params["emb"], tokens, axis=0)                       # (B, L, E)
    x_flat = jnp.transpose(x, (1, 0, 2)).reshape(L * B, E).astype(jnp.float32)

    wih_e = params["enc_w_ih"].T                                      # (E, 4H)
    whh_e = params["enc_w_hh"].T                                      # (H, 4H)
    whh_d = params["dec_w_hh"].T                                      # (H, 4H)
    w1 = params["W1"].T                                               # (H, W)
    w2 = params["W2"].T                                               # (H, W)
    b_e = (params["enc_b_ih"] + params["enc_b_hh"]).reshape(1, S)
    b_d = (params["dec_b_ih"] + params["dec_b_hh"]).reshape(1, S)
    vt = params["vt"]                                                 # (1, W)

    # Pack all weights into one lane-aligned slab and all 1-row operands into
    # another: 3 input DMAs total instead of 10 tiny ones.
    pad_w = jnp.zeros((H, S - W), jnp.float32)
    wslab = jnp.concatenate(
        [wih_e, whh_e, whh_d,
         jnp.concatenate([w1, pad_w], axis=1),
         jnp.concatenate([w2, pad_w], axis=1)], axis=1)               # (H, 5S)
    bslab = jnp.concatenate(
        [b_e, b_d,
         jnp.concatenate([vt, jnp.zeros((1, S - W), jnp.float32)], axis=1)],
        axis=1)                                                       # (1, 3S)

    vmem = pl.BlockSpec(memory_space=pltpu.MemorySpace.VMEM)
    out = pl.pallas_call(
        pointer_kernel,
        out_shape=jax.ShapeDtypeStruct((B, T, L), jnp.float32),
        in_specs=[vmem, vmem, vmem],
        out_specs=vmem,
        scratch_shapes=[pltpu.VMEM((L * B, S), jnp.float32),   # x @ W_ih + b
                        pltpu.VMEM((B, L, H), jnp.float32)],   # encoder states
    )(x_flat, wslab, bslab)

    # Kernel already produces PyTorch's (B, T, L) `probs` layout directly.
    return out


# --------------------------- pure-JAX reference ------------------------------
def reference_forward(tokens, params):
    H, E = HIDDEN_SIZE, EMB_SIZE
    x = jnp.take(params["emb"], tokens, axis=0)                # (B, L, E)
    B, L, _ = x.shape

    def cell(x_t, h, c, w_ih, w_hh, b_ih, b_hh):
        g = x_t @ w_ih.T + b_ih + h @ w_hh.T + b_hh
        i = jax.nn.sigmoid(g[:, :H])
        f = jax.nn.sigmoid(g[:, H:2 * H])
        gg = jnp.tanh(g[:, 2 * H:3 * H])
        o = jax.nn.sigmoid(g[:, 3 * H:])
        c_new = f * c + i * gg
        return o * jnp.tanh(c_new), c_new

    h = jnp.zeros((B, H)); c = jnp.zeros((B, H))
    enc_states = []
    for t in range(L):
        h, c = cell(x[:, t], h, c, params["enc_w_ih"], params["enc_w_hh"],
                    params["enc_b_ih"], params["enc_b_hh"])
        enc_states.append(h)
    enc = jnp.stack(enc_states, axis=0)                        # (L, B, H)

    dec_in = jnp.zeros((B, E))
    hd = jnp.zeros((B, H)); cd = enc[-1]
    probs = []
    for _ in range(ANSWER_SEQ_LEN):
        hd, cd = cell(dec_in, hd, cd, params["dec_w_ih"], params["dec_w_hh"],
                      params["dec_b_ih"], params["dec_b_hh"])
        blend1 = enc @ params["W1"].T                          # (L, B, W)
        blend2 = hd @ params["W2"].T                           # (B, W)
        bs = jnp.tanh(blend1 + blend2[None])
        out = (bs @ params["vt"].T)[..., 0]                    # (L, B)
        probs.append(jax.nn.log_softmax(out.T, axis=-1))       # (B, L)
    return jnp.stack(probs, axis=1)                            # (B, T, L)


# --------------------------------- main --------------------------------------
if __name__ == "__main__":
    key = jax.random.PRNGKey(0)
    k_tok, k_par = jax.random.split(key)
    params = init_params(k_par)
    tokens = jax.random.randint(k_tok, (BATCH, SEQ_LEN), 0, INPUT_SIZE + 1,
                                dtype=jnp.int32)

    probs = jax.jit(pointer_network_forward)(tokens, params)
    probs = jax.block_until_ready(probs)

    ref = reference_forward(tokens, params)
    assert probs.shape == (BATCH, ANSWER_SEQ_LEN, SEQ_LEN), probs.shape
    assert bool(jnp.all(jnp.isfinite(probs)))
    # Tolerance tightened (was 2e-2, flagged as suspiciously loose); remaining
    # slack only covers MXU-vs-XLA f32 matmul rounding across the recurrences.
    np.testing.assert_allclose(np.asarray(probs), np.asarray(ref),
                               rtol=5e-3, atol=5e-3)
    print("KERNEL_OK")
</pallas_src>

<mosaic_0001>
module attributes {stable_mosaic.version = 11 : i64} {
  func.func @pointer_kernel(%arg0: memref<16x32xf32, #tpu.memory_space<vmem>>, %arg1: memref<32x640xf32, #tpu.memory_space<vmem>>, %arg2: memref<1x384xf32, #tpu.memory_space<vmem>>, %arg3: memref<2x8x8xf32, #tpu.memory_space<vmem>>, %arg4: memref<16x128xf32, #tpu.memory_space<vmem>>, %arg5: memref<2x8x32xf32, #tpu.memory_space<vmem>>) attributes {dimension_semantics = [], scalar_prefetch = 0 : i64, scratch_operands = 2 : i64, tpu.core_type = #tpu.core_type<tc>} {
    %c0 = arith.constant 0 : index
    %c0_0 = arith.constant 0 : index
    %0 = vector.load %arg1[%c0, %c0_0] : memref<32x640xf32, #tpu.memory_space<vmem>>, vector<32x128xf32>
    %c0_1 = arith.constant 0 : index
    %c128 = arith.constant 128 : index
    %1 = vector.load %arg1[%c0_1, %c128] : memref<32x640xf32, #tpu.memory_space<vmem>>, vector<32x128xf32>
    %c0_2 = arith.constant 0 : index
    %c256 = arith.constant 256 : index
    %2 = vector.load %arg1[%c0_2, %c256] : memref<32x640xf32, #tpu.memory_space<vmem>>, vector<32x128xf32>
    %c0_3 = arith.constant 0 : index
    %c384 = arith.constant 384 : index
    %3 = vector.load %arg1[%c0_3, %c384] : memref<32x640xf32, #tpu.memory_space<vmem>>, vector<32x32xf32>
    %c0_4 = arith.constant 0 : index
    %c512 = arith.constant 512 : index
    %4 = vector.load %arg1[%c0_4, %c512] : memref<32x640xf32, #tpu.memory_space<vmem>>, vector<32x32xf32>
    %c0_5 = arith.constant 0 : index
    %c0_6 = arith.constant 0 : index
    %5 = vector.load %arg2[%c0_5, %c0_6] : memref<1x384xf32, #tpu.memory_space<vmem>>, vector<1x128xf32>
    %c0_7 = arith.constant 0 : index
    %c128_8 = arith.constant 128 : index
    %6 = vector.load %arg2[%c0_7, %c128_8] : memref<1x384xf32, #tpu.memory_space<vmem>>, vector<1x128xf32>
    %c0_9 = arith.constant 0 : index
    %c256_10 = arith.constant 256 : index
    %7 = vector.load %arg2[%c0_9, %c256_10] : memref<1x384xf32, #tpu.memory_space<vmem>>, vector<1x32xf32>
    %c0_11 = arith.constant 0 : index
    %c0_12 = arith.constant 0 : index
    %8 = vector.load %arg0[%c0_11, %c0_12] : memref<16x32xf32, #tpu.memory_space<vmem>>, vector<16x32xf32>
    %cst = arith.constant dense<0.000000e+00> : vector<16x128xf32>
    %9 = tpu.matmul %8, %0, %cst {dimension_numbers = #tpu.dot_dimension_numbers<[1], [0], [0], [1], [0, 0, 1, 1], [], []>} : vector<16x32xf32>, vector<32x128xf32>, vector<16x128xf32> -> vector<16x128xf32>
    %10 = vector.broadcast %5 : vector<1x128xf32> to vector<16x128xf32>
    %11 = arith.addf %9, %10 : vector<16x128xf32>
    %c0_13 = arith.constant 0 : index
    %c0_14 = arith.constant 0 : index
    %12 = vector.load %arg4[%c0_13, %c0_14] : memref<16x128xf32, #tpu.memory_space<vmem>>, vector<16x128xf32>
    tpu.vector_store %arg4[%c0_13, %c0_14], %11 {strides = array<i32>} : memref<16x128xf32, #tpu.memory_space<vmem>>, vector<16x128xf32>,
    %cst_15 = arith.constant 0.000000e+00 : f32
    %13 = vector.broadcast %cst_15 : f32 to vector<2x32xf32>
    %cst_16 = arith.constant 0.000000e+00 : f32
    %14 = vector.broadcast %cst_16 : f32 to vector<2x32xf32>
    %c0_i32 = arith.constant 0 : i32
    %c2_i32 = arith.constant 2 : i32
    %15 = arith.muli %c0_i32, %c2_i32 : i32
    %16 = tpu.assume_multiple %15, 2 : i32
    %17 = arith.index_cast %16 : i32 to index
    %c0_17 = arith.constant 0 : index
    %18 = vector.load %arg4[%17, %c0_17] : memref<16x128xf32, #tpu.memory_space<vmem>>, vector<2x128xf32>
    %cst_18 = arith.constant dense<0.000000e+00> : vector<2x128xf32>
    %19 = tpu.matmul %13, %1, %cst_18 {dimension_numbers = #tpu.dot_dimension_numbers<[1], [0], [0], [1], [0, 0, 1, 1], [], []>} : vector<2x32xf32>, vector<32x128xf32>, vector<2x128xf32> -> vector<2x128xf32>
    %20 = arith.addf %18, %19 : vector<2x128xf32>
    %21 = vector.extract_strided_slice %20 {offsets = [0, 0], sizes = [2, 32], strides = [1, 1]} : vector<2x128xf32> to vector<2x32xf32>
    %22 = arith.negf %21 : vector<2x32xf32>
    %23 = math.exp %22 : vector<2x32xf32>
    %cst_19 = arith.constant 1.000000e+00 : f32
    %24 = vector.broadcast %cst_19 : f32 to vector<2x32xf32>
    %25 = arith.addf %24, %23 : vector<2x32xf32>
    %26 = arith.divf %24, %25 : vector<2x32xf32>
    %27 = vector.extract_strided_slice %20 {offsets = [0, 32], sizes = [2, 32], strides = [1, 1]} : vector<2x128xf32> to vector<2x32xf32>
    %28 = arith.negf %27 : vector<2x32xf32>
    %29 = math.exp %28 : vector<2x32xf32>
    %cst_20 = arith.constant 1.000000e+00 : f32
    %30 = vector.broadcast %cst_20 : f32 to vector<2x32xf32>
    %31 = arith.addf %30, %29 : vector<2x32xf32>
    %32 = arith.divf %30, %31 : vector<2x32xf32>
    %33 = vector.extract_strided_slice %20 {offsets = [0, 64], sizes = [2, 32], strides = [1, 1]} : vector<2x128xf32> to vector<2x32xf32>
    %34 = math.tanh %33 : vector<2x32xf32>
    %35 = vector.extract_strided_slice %20 {offsets = [0, 96], sizes = [2, 32], strides = [1, 1]} : vector<2x128xf32> to vector<2x32xf32>
    %36 = arith.negf %35 : vector<2x32xf32>
    %37 = math.exp %36 : vector<2x32xf32>
    %cst_21 = arith.constant 1.000000e+00 : f32
    %38 = vector.broadcast %cst_21 : f32 to vector<2x32xf32>
    %39 = arith.addf %38, %37 : vector<2x32xf32>
    %40 = arith.divf %38, %39 : vector<2x32xf32>
    %41 = arith.mulf %32, %14 : vector<2x32xf32>
    %42 = arith.mulf %26, %34 : vector<2x32xf32>
    %43 = arith.addf %41, %42 : vector<2x32xf32>
    %44 = math.tanh %43 : vector<2x32xf32>
    %45 = arith.mulf %40, %44 : vector<2x32xf32>
    %c0_22 = arith.constant 0 : index
    %46 = arith.index_cast %c0_i32 : i32 to index
    %c0_23 = arith.constant 0 : index
    %47 = vector.load %arg5[%c0_22, %46, %c0_23] : memref<2x8x32xf32, #tpu.memory_space<vmem>>, vector<2x1x32xf32>
    %48 = vector.shape_cast %47 : vector<2x1x32xf32> to vector<2x32xf32>
    %49 = vector.shape_cast %45 : vector<2x32xf32> to vector<2x1x32xf32>
    tpu.vector_store %arg5[%c0_22, %46, %c0_23], %49 {strides = array<i32>} : memref<2x8x32xf32, #tpu.memory_space<vmem>>, vector<2x1x32xf32>,
    %c1_i32 = arith.constant 1 : i32
    %c2_i32_24 = arith.constant 2 : i32
    %50 = arith.muli %c1_i32, %c2_i32_24 : i32
    %51 = tpu.assume_multiple %50, 2 : i32
    %52 = arith.index_cast %51 : i32 to index
    %c0_25 = arith.constant 0 : index
    %53 = vector.load %arg4[%52, %c0_25] : memref<16x128xf32, #tpu.memory_space<vmem>>, vector<2x128xf32>
    %cst_26 = arith.constant dense<0.000000e+00> : vector<2x128xf32>
    %54 = tpu.matmul %45, %1, %cst_26 {dimension_numbers = #tpu.dot_dimension_numbers<[1], [0], [0], [1], [0, 0, 1, 1], [], []>} : vector<2x32xf32>, vector<32x128xf32>, vector<2x128xf32> -> vector<2x128xf32>
    %55 = arith.addf %53, %54 : vector<2x128xf32>
    %56 = vector.extract_strided_slice %55 {offsets = [0, 0], sizes = [2, 32], strides = [1, 1]} : vector<2x128xf32> to vector<2x32xf32>
    %57 = arith.negf %56 : vector<2x32xf32>
    %58 = math.exp %57 : vector<2x32xf32>
    %cst_27 = arith.constant 1.000000e+00 : f32
    %59 = vector.broadcast %cst_27 : f32 to vector<2x32xf32>
    %60 = arith.addf %59, %58 : vector<2x32xf32>
    %61 = arith.divf %59, %60 : vector<2x32xf32>
    %62 = vector.extract_strided_slice %55 {offsets = [0, 32], sizes = [2, 32], strides = [1, 1]} : vector<2x128xf32> to vector<2x32xf32>
    %63 = arith.negf %62 : vector<2x32xf32>
    %64 = math.exp %63 : vector<2x32xf32>
    %cst_28 = arith.constant 1.000000e+00 : f32
    %65 = vector.broadcast %cst_28 : f32 to vector<2x32xf32>
    %66 = arith.addf %65, %64 : vector<2x32xf32>
    %67 = arith.divf %65, %66 : vector<2x32xf32>
    %68 = vector.extract_strided_slice %55 {offsets = [0, 64], sizes = [2, 32], strides = [1, 1]} : vector<2x128xf32> to vector<2x32xf32>
    %69 = math.tanh %68 : vector<2x32xf32>
    %70 = vector.extract_strided_slice %55 {offsets = [0, 96], sizes = [2, 32], strides = [1, 1]} : vector<2x128xf32> to vector<2x32xf32>
    %71 = arith.negf %70 : vector<2x32xf32>
    %72 = math.exp %71 : vector<2x32xf32>
    %cst_29 = arith.constant 1.000000e+00 : f32
    %73 = vector.broadcast %cst_29 : f32 to vector<2x32xf32>
    %74 = arith.addf %73, %72 : vector<2x32xf32>
    %75 = arith.divf %73, %74 : vector<2x32xf32>
    %76 = arith.mulf %67, %43 : vector<2x32xf32>
    %77 = arith.mulf %61, %69 : vector<2x32xf32>
    %78 = arith.addf %76, %77 : vector<2x32xf32>
    %79 = math.tanh %78 : vector<2x32xf32>
    %80 = arith.mulf %75, %79 : vector<2x32xf32>
    %c0_30 = arith.constant 0 : index
    %81 = arith.index_cast %c1_i32 : i32 to index
    %c0_31 = arith.constant 0 : index
    %82 = vector.load %arg5[%c0_30, %81, %c0_31] : memref<2x8x32xf32, #tpu.memory_space<vmem>>, vector<2x1x32xf32>
    %83 = vector.shape_cast %82 : vector<2x1x32xf32> to vector<2x32xf32>
    %84 = vector.shape_cast %80 : vector<2x32xf32> to vector<2x1x32xf32>
    tpu.vector_store %arg5[%c0_30, %81, %c0_31], %84 {strides = array<i32>} : memref<2x8x32xf32, #tpu.memory_space<vmem>>, vector<2x1x32xf32>,
    %c2_i32_32 = arith.constant 2 : i32
    %c2_i32_33 = arith.constant 2 : i32
    %85 = arith.muli %c2_i32_32, %c2_i32_33 : i32
    %86 = tpu.assume_multiple %85, 2 : i32
    %87 = arith.index_cast %86 : i32 to index
    %c0_34 = arith.constant 0 : index
    %88 = vector.load %arg4[%87, %c0_34] : memref<16x128xf32, #tpu.memory_space<vmem>>, vector<2x128xf32>
    %cst_35 = arith.constant dense<0.000000e+00> : vector<2x128xf32>
    %89 = tpu.matmul %80, %1, %cst_35 {dimension_numbers = #tpu.dot_dimension_numbers<[1], [0], [0], [1], [0, 0, 1, 1], [], []>} : vector<2x32xf32>, vector<32x128xf32>, vector<2x128xf32> -> vector<2x128xf32>
    %90 = arith.addf %88, %89 : vector<2x128xf32>
    %91 = vector.extract_strided_slice %90 {offsets = [0, 0], sizes = [2, 32], strides = [1, 1]} : vector<2x128xf32> to vector<2x32xf32>
    %92 = arith.negf %91 : vector<2x32xf32>
    %93 = math.exp %92 : vector<2x32xf32>
    %cst_36 = arith.constant 1.000000e+00 : f32
    %94 = vector.broadcast %cst_36 : f32 to vector<2x32xf32>
    %95 = arith.addf %94, %93 : vector<2x32xf32>
    %96 = arith.divf %94, %95 : vector<2x32xf32>
    %97 = vector.extract_strided_slice %90 {offsets = [0, 32], sizes = [2, 32], strides = [1, 1]} : vector<2x128xf32> to vector<2x32xf32>
    %98 = arith.negf %97 : vector<2x32xf32>
    %99 = math.exp %98 : vector<2x32xf32>
    %cst_37 = arith.constant 1.000000e+00 : f32
    %100 = vector.broadcast %cst_37 : f32 to vector<2x32xf32>
    %101 = arith.addf %100, %99 : vector<2x32xf32>
    %102 = arith.divf %100, %101 : vector<2x32xf32>
    %103 = vector.extract_strided_slice %90 {offsets = [0, 64], sizes = [2, 32], strides = [1, 1]} : vector<2x128xf32> to vector<2x32xf32>
    %104 = math.tanh %103 : vector<2x32xf32>
    %105 = vector.extract_strided_slice %90 {offsets = [0, 96], sizes = [2, 32], strides = [1, 1]} : vector<2x128xf32> to vector<2x32xf32>
    %106 = arith.negf %105 : vector<2x32xf32>
    %107 = math.exp %106 : vector<2x32xf32>
    %cst_38 = arith.constant 1.000000e+00 : f32
    %108 = vector.broadcast %cst_38 : f32 to vector<2x32xf32>
    %109 = arith.addf %108, %107 : vector<2x32xf32>
    %110 = arith.divf %108, %109 : vector<2x32xf32>
    %111 = arith.mulf %102, %78 : vector<2x32xf32>
    %112 = arith.mulf %96, %104 : vector<2x32xf32>
    %113 = arith.addf %111, %112 : vector<2x32xf32>
    %114 = math.tanh %113 : vector<2x32xf32>
    %115 = arith.mulf %110, %114 : vector<2x32xf32>
    %c0_39 = arith.constant 0 : index
    %116 = arith.index_cast %c2_i32_32 : i32 to index
    %c0_40 = arith.constant 0 : index
    %117 = vector.load %arg5[%c0_39, %116, %c0_40] : memref<2x8x32xf32, #tpu.memory_space<vmem>>, vector<2x1x32xf32>
    %118 = vector.shape_cast %117 : vector<2x1x32xf32> to vector<2x32xf32>
    %119 = vector.shape_cast %115 : vector<2x32xf32> to vector<2x1x32xf32>
    tpu.vector_store %arg5[%c0_39, %116, %c0_40], %119 {strides = array<i32>} : memref<2x8x32xf32, #tpu.memory_space<vmem>>, vector<2x1x32xf32>,
    %c3_i32 = arith.constant 3 : i32
    %c2_i32_41 = arith.constant 2 : i32
    %120 = arith.muli %c3_i32, %c2_i32_41 : i32
    %121 = tpu.assume_multiple %120, 2 : i32
    %122 = arith.index_cast %121 : i32 to index
    %c0_42 = arith.constant 0 : index
    %123 = vector.load %arg4[%122, %c0_42] : memref<16x128xf32, #tpu.memory_space<vmem>>, vector<2x128xf32>
    %cst_43 = arith.constant dense<0.000000e+00> : vector<2x128xf32>
    %124 = tpu.matmul %115, %1, %cst_43 {dimension_numbers = #tpu.dot_dimension_numbers<[1], [0], [0], [1], [0, 0, 1, 1], [], []>} : vector<2x32xf32>, vector<32x128xf32>, vector<2x128xf32> -> vector<2x128xf32>
    %125 = arith.addf %123, %124 : vector<2x128xf32>
    %126 = vector.extract_strided_slice %125 {offsets = [0, 0], sizes = [2, 32], strides = [1, 1]} : vector<2x128xf32> to vector<2x32xf32>
    %127 = arith.negf %126 : vector<2x32xf32>
    %128 = math.exp %127 : vector<2x32xf32>
    %cst_44 = arith.constant 1.000000e+00 : f32
    %129 = vector.broadcast %cst_44 : f32 to vector<2x32xf32>
    %130 = arith.addf %129, %128 : vector<2x32xf32>
    %131 = arith.divf %129, %130 : vector<2x32xf32>
    %132 = vector.extract_strided_slice %125 {offsets = [0, 32], sizes = [2, 32], strides = [1, 1]} : vector<2x128xf32> to vector<2x32xf32>
    %133 = arith.negf %132 : vector<2x32xf32>
    %134 = math.exp %133 : vector<2x32xf32>
    %cst_45 = arith.constant 1.000000e+00 : f32
    %135 = vector.broadcast %cst_45 : f32 to vector<2x32xf32>
    %136 = arith.addf %135, %134 : vector<2x32xf32>
    %137 = arith.divf %135, %136 : vector<2x32xf32>
    %138 = vector.extract_strided_slice %125 {offsets = [0, 64], sizes = [2, 32], strides = [1, 1]} : vector<2x128xf32> to vector<2x32xf32>
    %139 = math.tanh %138 : vector<2x32xf32>
    %140 = vector.extract_strided_slice %125 {offsets = [0, 96], sizes = [2, 32], strides = [1, 1]} : vector<2x128xf32> to vector<2x32xf32>
    %141 = arith.negf %140 : vector<2x32xf32>
    %142 = math.exp %141 : vector<2x32xf32>
    %cst_46 = arith.constant 1.000000e+00 : f32
    %143 = vector.broadcast %cst_46 : f32 to vector<2x32xf32>
    %144 = arith.addf %143, %142 : vector<2x32xf32>
    %145 = arith.divf %143, %144 : vector<2x32xf32>
    %146 = arith.mulf %137, %113 : vector<2x32xf32>
    %147 = arith.mulf %131, %139 : vector<2x32xf32>
    %148 = arith.addf %146, %147 : vector<2x32xf32>
    %149 = math.tanh %148 : vector<2x32xf32>
    %150 = arith.mulf %145, %149 : vector<2x32xf32>
    %c0_47 = arith.constant 0 : index
    %151 = arith.index_cast %c3_i32 : i32 to index
    %c0_48 = arith.constant 0 : index
    %152 = vector.load %arg5[%c0_47, %151, %c0_48] : memref<2x8x32xf32, #tpu.memory_space<vmem>>, vector<2x1x32xf32>
    %153 = vector.shape_cast %152 : vector<2x1x32xf32> to vector<2x32xf32>
    %154 = vector.shape_cast %150 : vector<2x32xf32> to vector<2x1x32xf32>
    tpu.vector_store %arg5[%c0_47, %151, %c0_48], %154 {strides = array<i32>} : memref<2x8x32xf32, #tpu.memory_space<vmem>>, vector<2x1x32xf32>,
    %c4_i32 = arith.constant 4 : i32
    %c2_i32_49 = arith.constant 2 : i32
    %155 = arith.muli %c4_i32, %c2_i32_49 : i32
    %156 = tpu.assume_multiple %155, 2 : i32
    %157 = arith.index_cast %156 : i32 to index
    %c0_50 = arith.constant 0 : index
    %158 = vector.load %arg4[%157, %c0_50] : memref<16x128xf32, #tpu.memory_space<vmem>>, vector<2x128xf32>
    %cst_51 = arith.constant dense<0.000000e+00> : vector<2x128xf32>
    %159 = tpu.matmul %150, %1, %cst_51 {dimension_numbers = #tpu.dot_dimension_numbers<[1], [0], [0], [1], [0, 0, 1, 1], [], []>} : vector<2x32xf32>, vector<32x128xf32>, vector<2x128xf32> -> vector<2x128xf32>
    %160 = arith.addf %158, %159 : vector<2x128xf32>
    %161 = vector.extract_strided_slice %160 {offsets = [0, 0], sizes = [2, 32], strides = [1, 1]} : vector<2x128xf32> to vector<2x32xf32>
    %162 = arith.negf %161 : vector<2x32xf32>
    %163 = math.exp %162 : vector<2x32xf32>
    %cst_52 = arith.constant 1.000000e+00 : f32
    %164 = vector.broadcast %cst_52 : f32 to vector<2x32xf32>
    %165 = arith.addf %164, %163 : vector<2x32xf32>
    %166 = arith.divf %164, %165 : vector<2x32xf32>
    %167 = vector.extract_strided_slice %160 {offsets = [0, 32], sizes = [2, 32], strides = [1, 1]} : vector<2x128xf32> to vector<2x32xf32>
    %168 = arith.negf %167 : vector<2x32xf32>
    %169 = math.exp %168 : vector<2x32xf32>
    %cst_53 = arith.constant 1.000000e+00 : f32
    %170 = vector.broadcast %cst_53 : f32 to vector<2x32xf32>
    %171 = arith.addf %170, %169 : vector<2x32xf32>
    %172 = arith.divf %170, %171 : vector<2x32xf32>
    %173 = vector.extract_strided_slice %160 {offsets = [0, 64], sizes = [2, 32], strides = [1, 1]} : vector<2x128xf32> to vector<2x32xf32>
    %174 = math.tanh %173 : vector<2x32xf32>
    %175 = vector.extract_strided_slice %160 {offsets = [0, 96], sizes = [2, 32], strides = [1, 1]} : vector<2x128xf32> to vector<2x32xf32>
    %176 = arith.negf %175 : vector<2x32xf32>
    %177 = math.exp %176 : vector<2x32xf32>
    %cst_54 = arith.constant 1.000000e+00 : f32
    %178 = vector.broadcast %cst_54 : f32 to vector<2x32xf32>
    %179 = arith.addf %178, %177 : vector<2x32xf32>
    %180 = arith.divf %178, %179 : vector<2x32xf32>
    %181 = arith.mulf %172, %148 : vector<2x32xf32>
    %182 = arith.mulf %166, %174 : vector<2x32xf32>
    %183 = arith.addf %181, %182 : vector<2x32xf32>
    %184 = math.tanh %183 : vector<2x32xf32>
    %185 = arith.mulf %180, %184 : vector<2x32xf32>
    %c0_55 = arith.constant 0 : index
    %186 = arith.index_cast %c4_i32 : i32 to index
    %c0_56 = arith.constant 0 : index
    %187 = vector.load %arg5[%c0_55, %186, %c0_56] : memref<2x8x32xf32, #tpu.memory_space<vmem>>, vector<2x1x32xf32>
    %188 = vector.shape_cast %187 : vector<2x1x32xf32> to vector<2x32xf32>
    %189 = vector.shape_cast %185 : vector<2x32xf32> to vector<2x1x32xf32>
    tpu.vector_store %arg5[%c0_55, %186, %c0_56], %189 {strides = array<i32>} : memref<2x8x32xf32, #tpu.memory_space<vmem>>, vector<2x1x32xf32>,
    %c5_i32 = arith.constant 5 : i32
    %c2_i32_57 = arith.constant 2 : i32
    %190 = arith.muli %c5_i32, %c2_i32_57 : i32
    %191 = tpu.assume_multiple %190, 2 : i32
    %192 = arith.index_cast %191 : i32 to index
    %c0_58 = arith.constant 0 : index
    %193 = vector.load %arg4[%192, %c0_58] : memref<16x128xf32, #tpu.memory_space<vmem>>, vector<2x128xf32>
    %cst_59 = arith.constant dense<0.000000e+00> : vector<2x128xf32>
    %194 = tpu.matmul %185, %1, %cst_59 {dimension_numbers = #tpu.dot_dimension_numbers<[1], [0], [0], [1], [0, 0, 1, 1], [], []>} : vector<2x32xf32>, vector<32x128xf32>, vector<2x128xf32> -> vector<2x128xf32>
    %195 = arith.addf %193, %194 : vector<2x128xf32>
    %196 = vector.extract_strided_slice %195 {offsets = [0, 0], sizes = [2, 32], strides = [1, 1]} : vector<2x128xf32> to vector<2x32xf32>
    %197 = arith.negf %196 : vector<2x32xf32>
    %198 = math.exp %197 : vector<2x32xf32>
    %cst_60 = arith.constant 1.000000e+00 : f32
    %199 = vector.broadcast %cst_60 : f32 to vector<2x32xf32>
    %200 = arith.addf %199, %198 : vector<2x32xf32>
    %201 = arith.divf %199, %200 : vector<2x32xf32>
    %202 = vector.extract_strided_slice %195 {offsets = [0, 32], sizes = [2, 32], strides = [1, 1]} : vector<2x128xf32> to vector<2x32xf32>
    %203 = arith.negf %202 : vector<2x32xf32>
    %204 = math.exp %203 : vector<2x32xf32>
    %cst_61 = arith.constant 1.000000e+00 : f32
    %205 = vector.broadcast %cst_61 : f32 to vector<2x32xf32>
    %206 = arith.addf %205, %204 : vector<2x32xf32>
    %207 = arith.divf %205, %206 : vector<2x32xf32>
    %208 = vector.extract_strided_slice %195 {offsets = [0, 64], sizes = [2, 32], strides = [1, 1]} : vector<2x128xf32> to vector<2x32xf32>
    %209 = math.tanh %208 : vector<2x32xf32>
    %210 = vector.extract_strided_slice %195 {offsets = [0, 96], sizes = [2, 32], strides = [1, 1]} : vector<2x128xf32> to vector<2x32xf32>
    %211 = arith.negf %210 : vector<2x32xf32>
    %212 = math.exp %211 : vector<2x32xf32>
    %cst_62 = arith.constant 1.000000e+00 : f32
    %213 = vector.broadcast %cst_62 : f32 to vector<2x32xf32>
    %214 = arith.addf %213, %212 : vector<2x32xf32>
    %215 = arith.divf %213, %214 : vector<2x32xf32>
    %216 = arith.mulf %207, %183 : vector<2x32xf32>
    %217 = arith.mulf %201, %209 : vector<2x32xf32>
    %218 = arith.addf %216, %217 : vector<2x32xf32>
    %219 = math.tanh %218 : vector<2x32xf32>
    %220 = arith.mulf %215, %219 : vector<2x32xf32>
    %c0_63 = arith.constant 0 : index
    %221 = arith.index_cast %c5_i32 : i32 to index
    %c0_64 = arith.constant 0 : index
    %222 = vector.load %arg5[%c0_63, %221, %c0_64] : memref<2x8x32xf32, #tpu.memory_space<vmem>>, vector<2x1x32xf32>
    %223 = vector.shape_cast %222 : vector<2x1x32xf32> to vector<2x32xf32>
    %224 = vector.shape_cast %220 : vector<2x32xf32> to vector<2x1x32xf32>
    tpu.vector_store %arg5[%c0_63, %221, %c0_64], %224 {strides = array<i32>} : memref<2x8x32xf32, #tpu.memory_space<vmem>>, vector<2x1x32xf32>,
    %c6_i32 = arith.constant 6 : i32
    %c2_i32_65 = arith.constant 2 : i32
    %225 = arith.muli %c6_i32, %c2_i32_65 : i32
    %226 = tpu.assume_multiple %225, 2 : i32
    %227 = arith.index_cast %226 : i32 to index
    %c0_66 = arith.constant 0 : index
    %228 = vector.load %arg4[%227, %c0_66] : memref<16x128xf32, #tpu.memory_space<vmem>>, vector<2x128xf32>
    %cst_67 = arith.constant dense<0.000000e+00> : vector<2x128xf32>
    %229 = tpu.matmul %220, %1, %cst_67 {dimension_numbers = #tpu.dot_dimension_numbers<[1], [0], [0], [1], [0, 0, 1, 1], [], []>} : vector<2x32xf32>, vector<32x128xf32>, vector<2x128xf32> -> vector<2x128xf32>
    %230 = arith.addf %228, %229 : vector<2x128xf32>
    %231 = vector.extract_strided_slice %230 {offsets = [0, 0], sizes = [2, 32], strides = [1, 1]} : vector<2x128xf32> to vector<2x32xf32>
    %232 = arith.negf %231 : vector<2x32xf32>
    %233 = math.exp %232 : vector<2x32xf32>
    %cst_68 = arith.constant 1.000000e+00 : f32
    %234 = vector.broadcast %cst_68 : f32 to vector<2x32xf32>
    %235 = arith.addf %234, %233 : vector<2x32xf32>
    %236 = arith.divf %234, %235 : vector<2x32xf32>
    %237 = vector.extract_strided_slice %230 {offsets = [0, 32], sizes = [2, 32], strides = [1, 1]} : vector<2x128xf32> to vector<2x32xf32>
    %238 = arith.negf %237 : vector<2x32xf32>
    %239 = math.exp %238 : vector<2x32xf32>
    %cst_69 = arith.constant 1.000000e+00 : f32
    %240 = vector.broadcast %cst_69 : f32 to vector<2x32xf32>
    %241 = arith.addf %240, %239 : vector<2x32xf32>
    %242 = arith.divf %240, %241 : vector<2x32xf32>
    %243 = vector.extract_strided_slice %230 {offsets = [0, 64], sizes = [2, 32], strides = [1, 1]} : vector<2x128xf32> to vector<2x32xf32>
    %244 = math.tanh %243 : vector<2x32xf32>
    %245 = vector.extract_strided_slice %230 {offsets = [0, 96], sizes = [2, 32], strides = [1, 1]} : vector<2x128xf32> to vector<2x32xf32>
    %246 = arith.negf %245 : vector<2x32xf32>
    %247 = math.exp %246 : vector<2x32xf32>
    %cst_70 = arith.constant 1.000000e+00 : f32
    %248 = vector.broadcast %cst_70 : f32 to vector<2x32xf32>
    %249 = arith.addf %248, %247 : vector<2x32xf32>
    %250 = arith.divf %248, %249 : vector<2x32xf32>
    %251 = arith.mulf %242, %218 : vector<2x32xf32>
    %252 = arith.mulf %236, %244 : vector<2x32xf32>
    %253 = arith.addf %251, %252 : vector<2x32xf32>
    %254 = math.tanh %253 : vector<2x32xf32>
    %255 = arith.mulf %250, %254 : vector<2x32xf32>
    %c0_71 = arith.constant 0 : index
    %256 = arith.index_cast %c6_i32 : i32 to index
    %c0_72 = arith.constant 0 : index
    %257 = vector.load %arg5[%c0_71, %256, %c0_72] : memref<2x8x32xf32, #tpu.memory_space<vmem>>, vector<2x1x32xf32>
    %258 = vector.shape_cast %257 : vector<2x1x32xf32> to vector<2x32xf32>
    %259 = vector.shape_cast %255 : vector<2x32xf32> to vector<2x1x32xf32>
    tpu.vector_store %arg5[%c0_71, %256, %c0_72], %259 {strides = array<i32>} : memref<2x8x32xf32, #tpu.memory_space<vmem>>, vector<2x1x32xf32>,
    %c7_i32 = arith.constant 7 : i32
    %c2_i32_73 = arith.constant 2 : i32
    %260 = arith.muli %c7_i32, %c2_i32_73 : i32
    %261 = tpu.assume_multiple %260, 2 : i32
    %262 = arith.index_cast %261 : i32 to index
    %c0_74 = arith.constant 0 : index
    %263 = vector.load %arg4[%262, %c0_74] : memref<16x128xf32, #tpu.memory_space<vmem>>, vector<2x128xf32>
    %cst_75 = arith.constant dense<0.000000e+00> : vector<2x128xf32>
    %264 = tpu.matmul %255, %1, %cst_75 {dimension_numbers = #tpu.dot_dimension_numbers<[1], [0], [0], [1], [0, 0, 1, 1], [], []>} : vector<2x32xf32>, vector<32x128xf32>, vector<2x128xf32> -> vector<2x128xf32>
    %265 = arith.addf %263, %264 : vector<2x128xf32>
    %266 = vector.extract_strided_slice %265 {offsets = [0, 0], sizes = [2, 32], strides = [1, 1]} : vector<2x128xf32> to vector<2x32xf32>
    %267 = arith.negf %266 : vector<2x32xf32>
    %268 = math.exp %267 : vector<2x32xf32>
    %cst_76 = arith.constant 1.000000e+00 : f32
    %269 = vector.broadcast %cst_76 : f32 to vector<2x32xf32>
    %270 = arith.addf %269, %268 : vector<2x32xf32>
    %271 = arith.divf %269, %270 : vector<2x32xf32>
    %272 = vector.extract_strided_slice %265 {offsets = [0, 32], sizes = [2, 32], strides = [1, 1]} : vector<2x128xf32> to vector<2x32xf32>
    %273 = arith.negf %272 : vector<2x32xf32>
    %274 = math.exp %273 : vector<2x32xf32>
    %cst_77 = arith.constant 1.000000e+00 : f32
    %275 = vector.broadcast %cst_77 : f32 to vector<2x32xf32>
    %276 = arith.addf %275, %274 : vector<2x32xf32>
    %277 = arith.divf %275, %276 : vector<2x32xf32>
    %278 = vector.extract_strided_slice %265 {offsets = [0, 64], sizes = [2, 32], strides = [1, 1]} : vector<2x128xf32> to vector<2x32xf32>
    %279 = math.tanh %278 : vector<2x32xf32>
    %280 = vector.extract_strided_slice %265 {offsets = [0, 96], sizes = [2, 32], strides = [1, 1]} : vector<2x128xf32> to vector<2x32xf32>
    %281 = arith.negf %280 : vector<2x32xf32>
    %282 = math.exp %281 : vector<2x32xf32>
    %cst_78 = arith.constant 1.000000e+00 : f32
    %283 = vector.broadcast %cst_78 : f32 to vector<2x32xf32>
    %284 = arith.addf %283, %282 : vector<2x32xf32>
    %285 = arith.divf %283, %284 : vector<2x32xf32>
    %286 = arith.mulf %277, %253 : vector<2x32xf32>
    %287 = arith.mulf %271, %279 : vector<2x32xf32>
    %288 = arith.addf %286, %287 : vector<2x32xf32>
    %289 = math.tanh %288 : vector<2x32xf32>
    %290 = arith.mulf %285, %289 : vector<2x32xf32>
    %c0_79 = arith.constant 0 : index
    %291 = arith.index_cast %c7_i32 : i32 to index
    %c0_80 = arith.constant 0 : index
    %292 = vector.load %arg5[%c0_79, %291, %c0_80] : memref<2x8x32xf32, #tpu.memory_space<vmem>>, vector<2x1x32xf32>
    %293 = vector.shape_cast %292 : vector<2x1x32xf32> to vector<2x32xf32>
    %294 = vector.shape_cast %290 : vector<2x32xf32> to vector<2x1x32xf32>
    tpu.vector_store %arg5[%c0_79, %291, %c0_80], %294 {strides = array<i32>} : memref<2x8x32xf32, #tpu.memory_space<vmem>>, vector<2x1x32xf32>,
    %c8_i32 = arith.constant 8 : i32
    %c0_81 = arith.constant 0 : index
    %c0_82 = arith.constant 0 : index
    %c0_83 = arith.constant 0 : index
    %295 = vector.load %arg5[%c0_81, %c0_82, %c0_83] : memref<2x8x32xf32, #tpu.memory_space<vmem>>, vector<2x8x32xf32>
    %296 = vector.shape_cast %295 : vector<2x8x32xf32> to vector<16x32xf32>
    %cst_84 = arith.constant dense<0.000000e+00> : vector<16x32xf32>
    %297 = tpu.matmul %296, %3, %cst_84 {dimension_numbers = #tpu.dot_dimension_numbers<[1], [0], [0], [1], [0, 0, 1, 1], [], []>} : vector<16x32xf32>, vector<32x32xf32>, vector<16x32xf32> -> vector<16x32xf32>
    %298 = vector.shape_cast %297 : vector<16x32xf32> to vector<2x8x32xf32>
    %299 = vector.shape_cast %7 : vector<1x32xf32> to vector<1x1x32xf32>
    %300 = vector.shape_cast %299 : vector<1x1x32xf32> to vector<1x1x32xf32>
    %301 = vector.broadcast %300 : vector<1x1x32xf32> to vector<2x8x32xf32>
    %302 = vector.shape_cast %6 : vector<1x128xf32> to vector<1x128xf32>
    %303 = vector.broadcast %302 : vector<1x128xf32> to vector<2x128xf32>
    %cst_85 = arith.constant 0.000000e+00 : f32
    %304 = vector.broadcast %cst_85 : f32 to vector<2x32xf32>
    %c0_i32_86 = arith.constant 0 : i32
    %cst_87 = arith.constant dense<0.000000e+00> : vector<2x128xf32>
    %305 = tpu.matmul %304, %2, %cst_87 {dimension_numbers = #tpu.dot_dimension_numbers<[1], [0], [0], [1], [0, 0, 1, 1], [], []>} : vector<2x32xf32>, vector<32x128xf32>, vector<2x128xf32> -> vector<2x128xf32>
    %306 = arith.addf %305, %303 : vector<2x128xf32>
    %307 = vector.extract_strided_slice %306 {offsets = [0, 0], sizes = [2, 32], strides = [1, 1]} : vector<2x128xf32> to vector<2x32xf32>
    %308 = arith.negf %307 : vector<2x32xf32>
    %309 = math.exp %308 : vector<2x32xf32>
    %cst_88 = arith.constant 1.000000e+00 : f32
    %310 = vector.broadcast %cst_88 : f32 to vector<2x32xf32>
    %311 = arith.addf %310, %309 : vector<2x32xf32>
    %312 = arith.divf %310, %311 : vector<2x32xf32>
    %313 = vector.extract_strided_slice %306 {offsets = [0, 32], sizes = [2, 32], strides = [1, 1]} : vector<2x128xf32> to vector<2x32xf32>
    %314 = arith.negf %313 : vector<2x32xf32>
    %315 = math.exp %314 : vector<2x32xf32>
    %cst_89 = arith.constant 1.000000e+00 : f32
    %316 = vector.broadcast %cst_89 : f32 to vector<2x32xf32>
    %317 = arith.addf %316, %315 : vector<2x32xf32>
    %318 = arith.divf %316, %317 : vector<2x32xf32>
    %319 = vector.extract_strided_slice %306 {offsets = [0, 64], sizes = [2, 32], strides = [1, 1]} : vector<2x128xf32> to vector<2x32xf32>
    %320 = math.tanh %319 : vector<2x32xf32>
    %321 = vector.extract_strided_slice %306 {offsets = [0, 96], sizes = [2, 32], strides = [1, 1]} : vector<2x128xf32> to vector<2x32xf32>
    %322 = arith.negf %321 : vector<2x32xf32>
    %323 = math.exp %322 : vector<2x32xf32>
    %cst_90 = arith.constant 1.000000e+00 : f32
    %324 = vector.broadcast %cst_90 : f32 to vector<2x32xf32>
    %325 = arith.addf %324, %323 : vector<2x32xf32>
    %326 = arith.divf %324, %325 : vector<2x32xf32>
    %327 = arith.mulf %318, %290 : vector<2x32xf32>
    %328 = arith.mulf %312, %320 : vector<2x32xf32>
    %329 = arith.addf %327, %328 : vector<2x32xf32>
    %330 = math.tanh %329 : vector<2x32xf32>
    %331 = arith.mulf %326, %330 : vector<2x32xf32>
    %cst_91 = arith.constant dense<0.000000e+00> : vector<2x32xf32>
    %332 = tpu.matmul %331, %4, %cst_91 {dimension_numbers = #tpu.dot_dimension_numbers<[1], [0], [0], [1], [0, 0, 1, 1], [], []>} : vector<2x32xf32>, vector<32x32xf32>, vector<2x32xf32> -> vector<2x32xf32>
    %333 = vector.shape_cast %332 : vector<2x32xf32> to vector<2x1x32xf32>
    %334 = vector.broadcast %333 : vector<2x1x32xf32> to vector<2x8x32xf32>
    %335 = arith.addf %298, %334 : vector<2x8x32xf32>
    %336 = math.tanh %335 : vector<2x8x32xf32>
    %337 = arith.mulf %336, %301 : vector<2x8x32xf32>
    %cst_92 = arith.constant dense<0.000000e+00> : vector<2x8xf32>
    %338 = vector.multi_reduction <add>, %337, %cst_92 [2] : vector<2x8x32xf32> to vector<2x8xf32>
    %cst_93 = arith.constant dense<0xFF800000> : vector<2xf32>
    %339 = vector.multi_reduction <maximumf>, %338, %cst_93 [1] : vector<2x8xf32> to vector<2xf32>
    %340 = vector.shape_cast %339 : vector<2xf32> to vector<2x1xf32>
    %341 = vector.broadcast %340 : vector<2x1xf32> to vector<2x8xf32>
    %342 = arith.subf %338, %341 : vector<2x8xf32>
    %343 = math.exp %342 : vector<2x8xf32>
    %cst_94 = arith.constant dense<0.000000e+00> : vector<2xf32>
    %344 = vector.multi_reduction <add>, %343, %cst_94 [1] : vector<2x8xf32> to vector<2xf32>
    %345 = vector.shape_cast %344 : vector<2xf32> to vector<2x1xf32>
    %346 = math.log %345 : vector<2x1xf32>
    %347 = vector.broadcast %346 : vector<2x1xf32> to vector<2x8xf32>
    %348 = arith.subf %342, %347 : vector<2x8xf32>
    %c0_95 = arith.constant 0 : index
    %349 = arith.index_cast %c0_i32_86 : i32 to index
    %c0_96 = arith.constant 0 : index
    %350 = vector.load %arg3[%c0_95, %349, %c0_96] : memref<2x8x8xf32, #tpu.memory_space<vmem>>, vector<2x1x8xf32>
    %351 = vector.shape_cast %350 : vector<2x1x8xf32> to vector<2x8xf32>
    %352 = vector.shape_cast %348 : vector<2x8xf32> to vector<2x1x8xf32>
    tpu.vector_store %arg3[%c0_95, %349, %c0_96], %352 {strides = array<i32>} : memref<2x8x8xf32, #tpu.memory_space<vmem>>, vector<2x1x8xf32>,
    %c1_i32_97 = arith.constant 1 : i32
    %cst_98 = arith.constant dense<0.000000e+00> : vector<2x128xf32>
    %353 = tpu.matmul %331, %2, %cst_98 {dimension_numbers = #tpu.dot_dimension_numbers<[1], [0], [0], [1], [0, 0, 1, 1], [], []>} : vector<2x32xf32>, vector<32x128xf32>, vector<2x128xf32> -> vector<2x128xf32>
    %354 = arith.addf %353, %303 : vector<2x128xf32>
    %355 = vector.extract_strided_slice %354 {offsets = [0, 0], sizes = [2, 32], strides = [1, 1]} : vector<2x128xf32> to vector<2x32xf32>
    %356 = arith.negf %355 : vector<2x32xf32>
    %357 = math.exp %356 : vector<2x32xf32>
    %cst_99 = arith.constant 1.000000e+00 : f32
    %358 = vector.broadcast %cst_99 : f32 to vector<2x32xf32>
    %359 = arith.addf %358, %357 : vector<2x32xf32>
    %360 = arith.divf %358, %359 : vector<2x32xf32>
    %361 = vector.extract_strided_slice %354 {offsets = [0, 32], sizes = [2, 32], strides = [1, 1]} : vector<2x128xf32> to vector<2x32xf32>
    %362 = arith.negf %361 : vector<2x32xf32>
    %363 = math.exp %362 : vector<2x32xf32>
    %cst_100 = arith.constant 1.000000e+00 : f32
    %364 = vector.broadcast %cst_100 : f32 to vector<2x32xf32>
    %365 = arith.addf %364, %363 : vector<2x32xf32>
    %366 = arith.divf %364, %365 : vector<2x32xf32>
    %367 = vector.extract_strided_slice %354 {offsets = [0, 64], sizes = [2, 32], strides = [1, 1]} : vector<2x128xf32> to vector<2x32xf32>
    %368 = math.tanh %367 : vector<2x32xf32>
    %369 = vector.extract_strided_slice %354 {offsets = [0, 96], sizes = [2, 32], strides = [1, 1]} : vector<2x128xf32> to vector<2x32xf32>
    %370 = arith.negf %369 : vector<2x32xf32>
    %371 = math.exp %370 : vector<2x32xf32>
    %cst_101 = arith.constant 1.000000e+00 : f32
    %372 = vector.broadcast %cst_101 : f32 to vector<2x32xf32>
    %373 = arith.addf %372, %371 : vector<2x32xf32>
    %374 = arith.divf %372, %373 : vector<2x32xf32>
    %375 = arith.mulf %366, %329 : vector<2x32xf32>
    %376 = arith.mulf %360, %368 : vector<2x32xf32>
    %377 = arith.addf %375, %376 : vector<2x32xf32>
    %378 = math.tanh %377 : vector<2x32xf32>
    %379 = arith.mulf %374, %378 : vector<2x32xf32>
    %cst_102 = arith.constant dense<0.000000e+00> : vector<2x32xf32>
    %380 = tpu.matmul %379, %4, %cst_102 {dimension_numbers = #tpu.dot_dimension_numbers<[1], [0], [0], [1], [0, 0, 1, 1], [], []>} : vector<2x32xf32>, vector<32x32xf32>, vector<2x32xf32> -> vector<2x32xf32>
    %381 = vector.shape_cast %380 : vector<2x32xf32> to vector<2x1x32xf32>
    %382 = vector.broadcast %381 : vector<2x1x32xf32> to vector<2x8x32xf32>
    %383 = arith.addf %298, %382 : vector<2x8x32xf32>
    %384 = math.tanh %383 : vector<2x8x32xf32>
    %385 = arith.mulf %384, %301 : vector<2x8x32xf32>
    %cst_103 = arith.constant dense<0.000000e+00> : vector<2x8xf32>
    %386 = vector.multi_reduction <add>, %385, %cst_103 [2] : vector<2x8x32xf32> to vector<2x8xf32>
    %cst_104 = arith.constant dense<0xFF800000> : vector<2xf32>
    %387 = vector.multi_reduction <maximumf>, %386, %cst_104 [1] : vector<2x8xf32> to vector<2xf32>
    %388 = vector.shape_cast %387 : vector<2xf32> to vector<2x1xf32>
    %389 = vector.broadcast %388 : vector<2x1xf32> to vector<2x8xf32>
    %390 = arith.subf %386, %389 : vector<2x8xf32>
    %391 = math.exp %390 : vector<2x8xf32>
    %cst_105 = arith.constant dense<0.000000e+00> : vector<2xf32>
    %392 = vector.multi_reduction <add>, %391, %cst_105 [1] : vector<2x8xf32> to vector<2xf32>
    %393 = vector.shape_cast %392 : vector<2xf32> to vector<2x1xf32>
    %394 = math.log %393 : vector<2x1xf32>
    %395 = vector.broadcast %394 : vector<2x1xf32> to vector<2x8xf32>
    %396 = arith.subf %390, %395 : vector<2x8xf32>
    %c0_106 = arith.constant 0 : index
    %397 = arith.index_cast %c1_i32_97 : i32 to index
    %c0_107 = arith.constant 0 : index
    %398 = vector.load %arg3[%c0_106, %397, %c0_107] : memref<2x8x8xf32, #tpu.memory_space<vmem>>, vector<2x1x8xf32>
    %399 = vector.shape_cast %398 : vector<2x1x8xf32> to vector<2x8xf32>
    %400 = vector.shape_cast %396 : vector<2x8xf32> to vector<2x1x8xf32>
    tpu.vector_store %arg3[%c0_106, %397, %c0_107], %400 {strides = array<i32>} : memref<2x8x8xf32, #tpu.memory_space<vmem>>, vector<2x1x8xf32>,
    %c2_i32_108 = arith.constant 2 : i32
    %cst_109 = arith.constant dense<0.000000e+00> : vector<2x128xf32>
    %401 = tpu.matmul %379, %2, %cst_109 {dimension_numbers = #tpu.dot_dimension_numbers<[1], [0], [0], [1], [0, 0, 1, 1], [], []>} : vector<2x32xf32>, vector<32x128xf32>, vector<2x128xf32> -> vector<2x128xf32>
    %402 = arith.addf %401, %303 : vector<2x128xf32>
    %403 = vector.extract_strided_slice %402 {offsets = [0, 0], sizes = [2, 32], strides = [1, 1]} : vector<2x128xf32> to vector<2x32xf32>
    %404 = arith.negf %403 : vector<2x32xf32>
    %405 = math.exp %404 : vector<2x32xf32>
    %cst_110 = arith.constant 1.000000e+00 : f32
    %406 = vector.broadcast %cst_110 : f32 to vector<2x32xf32>
    %407 = arith.addf %406, %405 : vector<2x32xf32>
    %408 = arith.divf %406, %407 : vector<2x32xf32>
    %409 = vector.extract_strided_slice %402 {offsets = [0, 32], sizes = [2, 32], strides = [1, 1]} : vector<2x128xf32> to vector<2x32xf32>
    %410 = arith.negf %409 : vector<2x32xf32>
    %411 = math.exp %410 : vector<2x32xf32>
    %cst_111 = arith.constant 1.000000e+00 : f32
    %412 = vector.broadcast %cst_111 : f32 to vector<2x32xf32>
    %413 = arith.addf %412, %411 : vector<2x32xf32>
    %414 = arith.divf %412, %413 : vector<2x32xf32>
    %415 = vector.extract_strided_slice %402 {offsets = [0, 64], sizes = [2, 32], strides = [1, 1]} : vector<2x128xf32> to vector<2x32xf32>
    %416 = math.tanh %415 : vector<2x32xf32>
    %417 = vector.extract_strided_slice %402 {offsets = [0, 96], sizes = [2, 32], strides = [1, 1]} : vector<2x128xf32> to vector<2x32xf32>
    %418 = arith.negf %417 : vector<2x32xf32>
    %419 = math.exp %418 : vector<2x32xf32>
    %cst_112 = arith.constant 1.000000e+00 : f32
    %420 = vector.broadcast %cst_112 : f32 to vector<2x32xf32>
    %421 = arith.addf %420, %419 : vector<2x32xf32>
    %422 = arith.divf %420, %421 : vector<2x32xf32>
    %423 = arith.mulf %414, %377 : vector<2x32xf32>
    %424 = arith.mulf %408, %416 : vector<2x32xf32>
    %425 = arith.addf %423, %424 : vector<2x32xf32>
    %426 = math.tanh %425 : vector<2x32xf32>
    %427 = arith.mulf %422, %426 : vector<2x32xf32>
    %cst_113 = arith.constant dense<0.000000e+00> : vector<2x32xf32>
    %428 = tpu.matmul %427, %4, %cst_113 {dimension_numbers = #tpu.dot_dimension_numbers<[1], [0], [0], [1], [0, 0, 1, 1], [], []>} : vector<2x32xf32>, vector<32x32xf32>, vector<2x32xf32> -> vector<2x32xf32>
    %429 = vector.shape_cast %428 : vector<2x32xf32> to vector<2x1x32xf32>
    %430 = vector.broadcast %429 : vector<2x1x32xf32> to vector<2x8x32xf32>
    %431 = arith.addf %298, %430 : vector<2x8x32xf32>
    %432 = math.tanh %431 : vector<2x8x32xf32>
    %433 = arith.mulf %432, %301 : vector<2x8x32xf32>
    %cst_114 = arith.constant dense<0.000000e+00> : vector<2x8xf32>
    %434 = vector.multi_reduction <add>, %433, %cst_114 [2] : vector<2x8x32xf32> to vector<2x8xf32>
    %cst_115 = arith.constant dense<0xFF800000> : vector<2xf32>
    %435 = vector.multi_reduction <maximumf>, %434, %cst_115 [1] : vector<2x8xf32> to vector<2xf32>
    %436 = vector.shape_cast %435 : vector<2xf32> to vector<2x1xf32>
    %437 = vector.broadcast %436 : vector<2x1xf32> to vector<2x8xf32>
    %438 = arith.subf %434, %437 : vector<2x8xf32>
    %439 = math.exp %438 : vector<2x8xf32>
    %cst_116 = arith.constant dense<0.000000e+00> : vector<2xf32>
    %440 = vector.multi_reduction <add>, %439, %cst_116 [1] : vector<2x8xf32> to vector<2xf32>
    %441 = vector.shape_cast %440 : vector<2xf32> to vector<2x1xf32>
    %442 = math.log %441 : vector<2x1xf32>
    %443 = vector.broadcast %442 : vector<2x1xf32> to vector<2x8xf32>
    %444 = arith.subf %438, %443 : vector<2x8xf32>
    %c0_117 = arith.constant 0 : index
    %445 = arith.index_cast %c2_i32_108 : i32 to index
    %c0_118 = arith.constant 0 : index
    %446 = vector.load %arg3[%c0_117, %445, %c0_118] : memref<2x8x8xf32, #tpu.memory_space<vmem>>, vector<2x1x8xf32>
    %447 = vector.shape_cast %446 : vector<2x1x8xf32> to vector<2x8xf32>
    %448 = vector.shape_cast %444 : vector<2x8xf32> to vector<2x1x8xf32>
    tpu.vector_store %arg3[%c0_117, %445, %c0_118], %448 {strides = array<i32>} : memref<2x8x8xf32, #tpu.memory_space<vmem>>, vector<2x1x8xf32>,
    %c3_i32_119 = arith.constant 3 : i32
    %cst_120 = arith.constant dense<0.000000e+00> : vector<2x128xf32>
    %449 = tpu.matmul %427, %2, %cst_120 {dimension_numbers = #tpu.dot_dimension_numbers<[1], [0], [0], [1], [0, 0, 1, 1], [], []>} : vector<2x32xf32>, vector<32x128xf32>, vector<2x128xf32> -> vector<2x128xf32>
    %450 = arith.addf %449, %303 : vector<2x128xf32>
    %451 = vector.extract_strided_slice %450 {offsets = [0, 0], sizes = [2, 32], strides = [1, 1]} : vector<2x128xf32> to vector<2x32xf32>
    %452 = arith.negf %451 : vector<2x32xf32>
    %453 = math.exp %452 : vector<2x32xf32>
    %cst_121 = arith.constant 1.000000e+00 : f32
    %454 = vector.broadcast %cst_121 : f32 to vector<2x32xf32>
    %455 = arith.addf %454, %453 : vector<2x32xf32>
    %456 = arith.divf %454, %455 : vector<2x32xf32>
    %457 = vector.extract_strided_slice %450 {offsets = [0, 32], sizes = [2, 32], strides = [1, 1]} : vector<2x128xf32> to vector<2x32xf32>
    %458 = arith.negf %457 : vector<2x32xf32>
    %459 = math.exp %458 : vector<2x32xf32>
    %cst_122 = arith.constant 1.000000e+00 : f32
    %460 = vector.broadcast %cst_122 : f32 to vector<2x32xf32>
    %461 = arith.addf %460, %459 : vector<2x32xf32>
    %462 = arith.divf %460, %461 : vector<2x32xf32>
    %463 = vector.extract_strided_slice %450 {offsets = [0, 64], sizes = [2, 32], strides = [1, 1]} : vector<2x128xf32> to vector<2x32xf32>
    %464 = math.tanh %463 : vector<2x32xf32>
    %465 = vector.extract_strided_slice %450 {offsets = [0, 96], sizes = [2, 32], strides = [1, 1]} : vector<2x128xf32> to vector<2x32xf32>
    %466 = arith.negf %465 : vector<2x32xf32>
    %467 = math.exp %466 : vector<2x32xf32>
    %cst_123 = arith.constant 1.000000e+00 : f32
    %468 = vector.broadcast %cst_123 : f32 to vector<2x32xf32>
    %469 = arith.addf %468, %467 : vector<2x32xf32>
    %470 = arith.divf %468, %469 : vector<2x32xf32>
    %471 = arith.mulf %462, %425 : vector<2x32xf32>
    %472 = arith.mulf %456, %464 : vector<2x32xf32>
    %473 = arith.addf %471, %472 : vector<2x32xf32>
    %474 = math.tanh %473 : vector<2x32xf32>
    %475 = arith.mulf %470, %474 : vector<2x32xf32>
    %cst_124 = arith.constant dense<0.000000e+00> : vector<2x32xf32>
    %476 = tpu.matmul %475, %4, %cst_124 {dimension_numbers = #tpu.dot_dimension_numbers<[1], [0], [0], [1], [0, 0, 1, 1], [], []>} : vector<2x32xf32>, vector<32x32xf32>, vector<2x32xf32> -> vector<2x32xf32>
    %477 = vector.shape_cast %476 : vector<2x32xf32> to vector<2x1x32xf32>
    %478 = vector.broadcast %477 : vector<2x1x32xf32> to vector<2x8x32xf32>
    %479 = arith.addf %298, %478 : vector<2x8x32xf32>
    %480 = math.tanh %479 : vector<2x8x32xf32>
    %481 = arith.mulf %480, %301 : vector<2x8x32xf32>
    %cst_125 = arith.constant dense<0.000000e+00> : vector<2x8xf32>
    %482 = vector.multi_reduction <add>, %481, %cst_125 [2] : vector<2x8x32xf32> to vector<2x8xf32>
    %cst_126 = arith.constant dense<0xFF800000> : vector<2xf32>
    %483 = vector.multi_reduction <maximumf>, %482, %cst_126 [1] : vector<2x8xf32> to vector<2xf32>
    %484 = vector.shape_cast %483 : vector<2xf32> to vector<2x1xf32>
    %485 = vector.broadcast %484 : vector<2x1xf32> to vector<2x8xf32>
    %486 = arith.subf %482, %485 : vector<2x8xf32>
    %487 = math.exp %486 : vector<2x8xf32>
    %cst_127 = arith.constant dense<0.000000e+00> : vector<2xf32>
    %488 = vector.multi_reduction <add>, %487, %cst_127 [1] : vector<2x8xf32> to vector<2xf32>
    %489 = vector.shape_cast %488 : vector<2xf32> to vector<2x1xf32>
    %490 = math.log %489 : vector<2x1xf32>
    %491 = vector.broadcast %490 : vector<2x1xf32> to vector<2x8xf32>
    %492 = arith.subf %486, %491 : vector<2x8xf32>
    %c0_128 = arith.constant 0 : index
    %493 = arith.index_cast %c3_i32_119 : i32 to index
    %c0_129 = arith.constant 0 : index
    %494 = vector.load %arg3[%c0_128, %493, %c0_129] : memref<2x8x8xf32, #tpu.memory_space<vmem>>, vector<2x1x8xf32>
    %495 = vector.shape_cast %494 : vector<2x1x8xf32> to vector<2x8xf32>
    %496 = vector.shape_cast %492 : vector<2x8xf32> to vector<2x1x8xf32>
    tpu.vector_store %arg3[%c0_128, %493, %c0_129], %496 {strides = array<i32>} : memref<2x8x8xf32, #tpu.memory_space<vmem>>, vector<2x1x8xf32>,
    %c4_i32_130 = arith.constant 4 : i32
    %cst_131 = arith.constant dense<0.000000e+00> : vector<2x128xf32>
    %497 = tpu.matmul %475, %2, %cst_131 {dimension_numbers = #tpu.dot_dimension_numbers<[1], [0], [0], [1], [0, 0, 1, 1], [], []>} : vector<2x32xf32>, vector<32x128xf32>, vector<2x128xf32> -> vector<2x128xf32>
    %498 = arith.addf %497, %303 : vector<2x128xf32>
    %499 = vector.extract_strided_slice %498 {offsets = [0, 0], sizes = [2, 32], strides = [1, 1]} : vector<2x128xf32> to vector<2x32xf32>
    %500 = arith.negf %499 : vector<2x32xf32>
    %501 = math.exp %500 : vector<2x32xf32>
    %cst_132 = arith.constant 1.000000e+00 : f32
    %502 = vector.broadcast %cst_132 : f32 to vector<2x32xf32>
    %503 = arith.addf %502, %501 : vector<2x32xf32>
    %504 = arith.divf %502, %503 : vector<2x32xf32>
    %505 = vector.extract_strided_slice %498 {offsets = [0, 32], sizes = [2, 32], strides = [1, 1]} : vector<2x128xf32> to vector<2x32xf32>
    %506 = arith.negf %505 : vector<2x32xf32>
    %507 = math.exp %506 : vector<2x32xf32>
    %cst_133 = arith.constant 1.000000e+00 : f32
    %508 = vector.broadcast %cst_133 : f32 to vector<2x32xf32>
    %509 = arith.addf %508, %507 : vector<2x32xf32>
    %510 = arith.divf %508, %509 : vector<2x32xf32>
    %511 = vector.extract_strided_slice %498 {offsets = [0, 64], sizes = [2, 32], strides = [1, 1]} : vector<2x128xf32> to vector<2x32xf32>
    %512 = math.tanh %511 : vector<2x32xf32>
    %513 = vector.extract_strided_slice %498 {offsets = [0, 96], sizes = [2, 32], strides = [1, 1]} : vector<2x128xf32> to vector<2x32xf32>
    %514 = arith.negf %513 : vector<2x32xf32>
    %515 = math.exp %514 : vector<2x32xf32>
    %cst_134 = arith.constant 1.000000e+00 : f32
    %516 = vector.broadcast %cst_134 : f32 to vector<2x32xf32>
    %517 = arith.addf %516, %515 : vector<2x32xf32>
    %518 = arith.divf %516, %517 : vector<2x32xf32>
    %519 = arith.mulf %510, %473 : vector<2x32xf32>
    %520 = arith.mulf %504, %512 : vector<2x32xf32>
    %521 = arith.addf %519, %520 : vector<2x32xf32>
    %522 = math.tanh %521 : vector<2x32xf32>
    %523 = arith.mulf %518, %522 : vector<2x32xf32>
    %cst_135 = arith.constant dense<0.000000e+00> : vector<2x32xf32>
    %524 = tpu.matmul %523, %4, %cst_135 {dimension_numbers = #tpu.dot_dimension_numbers<[1], [0], [0], [1], [0, 0, 1, 1], [], []>} : vector<2x32xf32>, vector<32x32xf32>, vector<2x32xf32> -> vector<2x32xf32>
    %525 = vector.shape_cast %524 : vector<2x32xf32> to vector<2x1x32xf32>
    %526 = vector.broadcast %525 : vector<2x1x32xf32> to vector<2x8x32xf32>
    %527 = arith.addf %298, %526 : vector<2x8x32xf32>
    %528 = math.tanh %527 : vector<2x8x32xf32>
    %529 = arith.mulf %528, %301 : vector<2x8x32xf32>
    %cst_136 = arith.constant dense<0.000000e+00> : vector<2x8xf32>
    %530 = vector.multi_reduction <add>, %529, %cst_136 [2] : vector<2x8x32xf32> to vector<2x8xf32>
    %cst_137 = arith.constant dense<0xFF800000> : vector<2xf32>
    %531 = vector.multi_reduction <maximumf>, %530, %cst_137 [1] : vector<2x8xf32> to vector<2xf32>
    %532 = vector.shape_cast %531 : vector<2xf32> to vector<2x1xf32>
    %533 = vector.broadcast %532 : vector<2x1xf32> to vector<2x8xf32>
    %534 = arith.subf %530, %533 : vector<2x8xf32>
    %535 = math.exp %534 : vector<2x8xf32>
    %cst_138 = arith.constant dense<0.000000e+00> : vector<2xf32>
    %536 = vector.multi_reduction <add>, %535, %cst_138 [1] : vector<2x8xf32> to vector<2xf32>
    %537 = vector.shape_cast %536 : vector<2xf32> to vector<2x1xf32>
    %538 = math.log %537 : vector<2x1xf32>
    %539 = vector.broadcast %538 : vector<2x1xf32> to vector<2x8xf32>
    %540 = arith.subf %534, %539 : vector<2x8xf32>
    %c0_139 = arith.constant 0 : index
    %541 = arith.index_cast %c4_i32_130 : i32 to index
    %c0_140 = arith.constant 0 : index
    %542 = vector.load %arg3[%c0_139, %541, %c0_140] : memref<2x8x8xf32, #tpu.memory_space<vmem>>, vector<2x1x8xf32>
    %543 = vector.shape_cast %542 : vector<2x1x8xf32> to vector<2x8xf32>
    %544 = vector.shape_cast %540 : vector<2x8xf32> to vector<2x1x8xf32>
    tpu.vector_store %arg3[%c0_139, %541, %c0_140], %544 {strides = array<i32>} : memref<2x8x8xf32, #tpu.memory_space<vmem>>, vector<2x1x8xf32>,
    %c5_i32_141 = arith.constant 5 : i32
    %cst_142 = arith.constant dense<0.000000e+00> : vector<2x128xf32>
    %545 = tpu.matmul %523, %2, %cst_142 {dimension_numbers = #tpu.dot_dimension_numbers<[1], [0], [0], [1], [0, 0, 1, 1], [], []>} : vector<2x32xf32>, vector<32x128xf32>, vector<2x128xf32> -> vector<2x128xf32>
    %546 = arith.addf %545, %303 : vector<2x128xf32>
    %547 = vector.extract_strided_slice %546 {offsets = [0, 0], sizes = [2, 32], strides = [1, 1]} : vector<2x128xf32> to vector<2x32xf32>
    %548 = arith.negf %547 : vector<2x32xf32>
    %549 = math.exp %548 : vector<2x32xf32>
    %cst_143 = arith.constant 1.000000e+00 : f32
    %550 = vector.broadcast %cst_143 : f32 to vector<2x32xf32>
    %551 = arith.addf %550, %549 : vector<2x32xf32>
    %552 = arith.divf %550, %551 : vector<2x32xf32>
    %553 = vector.extract_strided_slice %546 {offsets = [0, 32], sizes = [2, 32], strides = [1, 1]} : vector<2x128xf32> to vector<2x32xf32>
    %554 = arith.negf %553 : vector<2x32xf32>
    %555 = math.exp %554 : vector<2x32xf32>
    %cst_144 = arith.constant 1.000000e+00 : f32
    %556 = vector.broadcast %cst_144 : f32 to vector<2x32xf32>
    %557 = arith.addf %556, %555 : vector<2x32xf32>
    %558 = arith.divf %556, %557 : vector<2x32xf32>
    %559 = vector.extract_strided_slice %546 {offsets = [0, 64], sizes = [2, 32], strides = [1, 1]} : vector<2x128xf32> to vector<2x32xf32>
    %560 = math.tanh %559 : vector<2x32xf32>
    %561 = vector.extract_strided_slice %546 {offsets = [0, 96], sizes = [2, 32], strides = [1, 1]} : vector<2x128xf32> to vector<2x32xf32>
    %562 = arith.negf %561 : vector<2x32xf32>
    %563 = math.exp %562 : vector<2x32xf32>
    %cst_145 = arith.constant 1.000000e+00 : f32
    %564 = vector.broadcast %cst_145 : f32 to vector<2x32xf32>
    %565 = arith.addf %564, %563 : vector<2x32xf32>
    %566 = arith.divf %564, %565 : vector<2x32xf32>
    %567 = arith.mulf %558, %521 : vector<2x32xf32>
    %568 = arith.mulf %552, %560 : vector<2x32xf32>
    %569 = arith.addf %567, %568 : vector<2x32xf32>
    %570 = math.tanh %569 : vector<2x32xf32>
    %571 = arith.mulf %566, %570 : vector<2x32xf32>
    %cst_146 = arith.constant dense<0.000000e+00> : vector<2x32xf32>
    %572 = tpu.matmul %571, %4, %cst_146 {dimension_numbers = #tpu.dot_dimension_numbers<[1], [0], [0], [1], [0, 0, 1, 1], [], []>} : vector<2x32xf32>, vector<32x32xf32>, vector<2x32xf32> -> vector<2x32xf32>
    %573 = vector.shape_cast %572 : vector<2x32xf32> to vector<2x1x32xf32>
    %574 = vector.broadcast %573 : vector<2x1x32xf32> to vector<2x8x32xf32>
    %575 = arith.addf %298, %574 : vector<2x8x32xf32>
    %576 = math.tanh %575 : vector<2x8x32xf32>
    %577 = arith.mulf %576, %301 : vector<2x8x32xf32>
    %cst_147 = arith.constant dense<0.000000e+00> : vector<2x8xf32>
    %578 = vector.multi_reduction <add>, %577, %cst_147 [2] : vector<2x8x32xf32> to vector<2x8xf32>
    %cst_148 = arith.constant dense<0xFF800000> : vector<2xf32>
    %579 = vector.multi_reduction <maximumf>, %578, %cst_148 [1] : vector<2x8xf32> to vector<2xf32>
    %580 = vector.shape_cast %579 : vector<2xf32> to vector<2x1xf32>
    %581 = vector.broadcast %580 : vector<2x1xf32> to vector<2x8xf32>
    %582 = arith.subf %578, %581 : vector<2x8xf32>
    %583 = math.exp %582 : vector<2x8xf32>
    %cst_149 = arith.constant dense<0.000000e+00> : vector<2xf32>
    %584 = vector.multi_reduction <add>, %583, %cst_149 [1] : vector<2x8xf32> to vector<2xf32>
    %585 = vector.shape_cast %584 : vector<2xf32> to vector<2x1xf32>
    %586 = math.log %585 : vector<2x1xf32>
    %587 = vector.broadcast %586 : vector<2x1xf32> to vector<2x8xf32>
    %588 = arith.subf %582, %587 : vector<2x8xf32>
    %c0_150 = arith.constant 0 : index
    %589 = arith.index_cast %c5_i32_141 : i32 to index
    %c0_151 = arith.constant 0 : index
    %590 = vector.load %arg3[%c0_150, %589, %c0_151] : memref<2x8x8xf32, #tpu.memory_space<vmem>>, vector<2x1x8xf32>
    %591 = vector.shape_cast %590 : vector<2x1x8xf32> to vector<2x8xf32>
    %592 = vector.shape_cast %588 : vector<2x8xf32> to vector<2x1x8xf32>
    tpu.vector_store %arg3[%c0_150, %589, %c0_151], %592 {strides = array<i32>} : memref<2x8x8xf32, #tpu.memory_space<vmem>>, vector<2x1x8xf32>,
    %c6_i32_152 = arith.constant 6 : i32
    %cst_153 = arith.constant dense<0.000000e+00> : vector<2x128xf32>
    %593 = tpu.matmul %571, %2, %cst_153 {dimension_numbers = #tpu.dot_dimension_numbers<[1], [0], [0], [1], [0, 0, 1, 1], [], []>} : vector<2x32xf32>, vector<32x128xf32>, vector<2x128xf32> -> vector<2x128xf32>
    %594 = arith.addf %593, %303 : vector<2x128xf32>
    %595 = vector.extract_strided_slice %594 {offsets = [0, 0], sizes = [2, 32], strides = [1, 1]} : vector<2x128xf32> to vector<2x32xf32>
    %596 = arith.negf %595 : vector<2x32xf32>
    %597 = math.exp %596 : vector<2x32xf32>
    %cst_154 = arith.constant 1.000000e+00 : f32
    %598 = vector.broadcast %cst_154 : f32 to vector<2x32xf32>
    %599 = arith.addf %598, %597 : vector<2x32xf32>
    %600 = arith.divf %598, %599 : vector<2x32xf32>
    %601 = vector.extract_strided_slice %594 {offsets = [0, 32], sizes = [2, 32], strides = [1, 1]} : vector<2x128xf32> to vector<2x32xf32>
    %602 = arith.negf %601 : vector<2x32xf32>
    %603 = math.exp %602 : vector<2x32xf32>
    %cst_155 = arith.constant 1.000000e+00 : f32
    %604 = vector.broadcast %cst_155 : f32 to vector<2x32xf32>
    %605 = arith.addf %604, %603 : vector<2x32xf32>
    %606 = arith.divf %604, %605 : vector<2x32xf32>
    %607 = vector.extract_strided_slice %594 {offsets = [0, 64], sizes = [2, 32], strides = [1, 1]} : vector<2x128xf32> to vector<2x32xf32>
    %608 = math.tanh %607 : vector<2x32xf32>
    %609 = vector.extract_strided_slice %594 {offsets = [0, 96], sizes = [2, 32], strides = [1, 1]} : vector<2x128xf32> to vector<2x32xf32>
    %610 = arith.negf %609 : vector<2x32xf32>
    %611 = math.exp %610 : vector<2x32xf32>
    %cst_156 = arith.constant 1.000000e+00 : f32
    %612 = vector.broadcast %cst_156 : f32 to vector<2x32xf32>
    %613 = arith.addf %612, %611 : vector<2x32xf32>
    %614 = arith.divf %612, %613 : vector<2x32xf32>
    %615 = arith.mulf %606, %569 : vector<2x32xf32>
    %616 = arith.mulf %600, %608 : vector<2x32xf32>
    %617 = arith.addf %615, %616 : vector<2x32xf32>
    %618 = math.tanh %617 : vector<2x32xf32>
    %619 = arith.mulf %614, %618 : vector<2x32xf32>
    %cst_157 = arith.constant dense<0.000000e+00> : vector<2x32xf32>
    %620 = tpu.matmul %619, %4, %cst_157 {dimension_numbers = #tpu.dot_dimension_numbers<[1], [0], [0], [1], [0, 0, 1, 1], [], []>} : vector<2x32xf32>, vector<32x32xf32>, vector<2x32xf32> -> vector<2x32xf32>
    %621 = vector.shape_cast %620 : vector<2x32xf32> to vector<2x1x32xf32>
    %622 = vector.broadcast %621 : vector<2x1x32xf32> to vector<2x8x32xf32>
    %623 = arith.addf %298, %622 : vector<2x8x32xf32>
    %624 = math.tanh %623 : vector<2x8x32xf32>
    %625 = arith.mulf %624, %301 : vector<2x8x32xf32>
    %cst_158 = arith.constant dense<0.000000e+00> : vector<2x8xf32>
    %626 = vector.multi_reduction <add>, %625, %cst_158 [2] : vector<2x8x32xf32> to vector<2x8xf32>
    %cst_159 = arith.constant dense<0xFF800000> : vector<2xf32>
    %627 = vector.multi_reduction <maximumf>, %626, %cst_159 [1] : vector<2x8xf32> to vector<2xf32>
    %628 = vector.shape_cast %627 : vector<2xf32> to vector<2x1xf32>
    %629 = vector.broadcast %628 : vector<2x1xf32> to vector<2x8xf32>
    %630 = arith.subf %626, %629 : vector<2x8xf32>
    %631 = math.exp %630 : vector<2x8xf32>
    %cst_160 = arith.constant dense<0.000000e+00> : vector<2xf32>
    %632 = vector.multi_reduction <add>, %631, %cst_160 [1] : vector<2x8xf32> to vector<2xf32>
    %633 = vector.shape_cast %632 : vector<2xf32> to vector<2x1xf32>
    %634 = math.log %633 : vector<2x1xf32>
    %635 = vector.broadcast %634 : vector<2x1xf32> to vector<2x8xf32>
    %636 = arith.subf %630, %635 : vector<2x8xf32>
    %c0_161 = arith.constant 0 : index
    %637 = arith.index_cast %c6_i32_152 : i32 to index
    %c0_162 = arith.constant 0 : index
    %638 = vector.load %arg3[%c0_161, %637, %c0_162] : memref<2x8x8xf32, #tpu.memory_space<vmem>>, vector<2x1x8xf32>
    %639 = vector.shape_cast %638 : vector<2x1x8xf32> to vector<2x8xf32>
    %640 = vector.shape_cast %636 : vector<2x8xf32> to vector<2x1x8xf32>
    tpu.vector_store %arg3[%c0_161, %637, %c0_162], %640 {strides = array<i32>} : memref<2x8x8xf32, #tpu.memory_space<vmem>>, vector<2x1x8xf32>,
    %c7_i32_163 = arith.constant 7 : i32
    %cst_164 = arith.constant dense<0.000000e+00> : vector<2x128xf32>
    %641 = tpu.matmul %619, %2, %cst_164 {dimension_numbers = #tpu.dot_dimension_numbers<[1], [0], [0], [1], [0, 0, 1, 1], [], []>} : vector<2x32xf32>, vector<32x128xf32>, vector<2x128xf32> -> vector<2x128xf32>
    %642 = arith.addf %641, %303 : vector<2x128xf32>
    %643 = vector.extract_strided_slice %642 {offsets = [0, 0], sizes = [2, 32], strides = [1, 1]} : vector<2x128xf32> to vector<2x32xf32>
    %644 = arith.negf %643 : vector<2x32xf32>
    %645 = math.exp %644 : vector<2x32xf32>
    %cst_165 = arith.constant 1.000000e+00 : f32
    %646 = vector.broadcast %cst_165 : f32 to vector<2x32xf32>
    %647 = arith.addf %646, %645 : vector<2x32xf32>
    %648 = arith.divf %646, %647 : vector<2x32xf32>
    %649 = vector.extract_strided_slice %642 {offsets = [0, 32], sizes = [2, 32], strides = [1, 1]} : vector<2x128xf32> to vector<2x32xf32>
    %650 = arith.negf %649 : vector<2x32xf32>
    %651 = math.exp %650 : vector<2x32xf32>
    %cst_166 = arith.constant 1.000000e+00 : f32
    %652 = vector.broadcast %cst_166 : f32 to vector<2x32xf32>
    %653 = arith.addf %652, %651 : vector<2x32xf32>
    %654 = arith.divf %652, %653 : vector<2x32xf32>
    %655 = vector.extract_strided_slice %642 {offsets = [0, 64], sizes = [2, 32], strides = [1, 1]} : vector<2x128xf32> to vector<2x32xf32>
    %656 = math.tanh %655 : vector<2x32xf32>
    %657 = vector.extract_strided_slice %642 {offsets = [0, 96], sizes = [2, 32], strides = [1, 1]} : vector<2x128xf32> to vector<2x32xf32>
    %658 = arith.negf %657 : vector<2x32xf32>
    %659 = math.exp %658 : vector<2x32xf32>
    %cst_167 = arith.constant 1.000000e+00 : f32
    %660 = vector.broadcast %cst_167 : f32 to vector<2x32xf32>
    %661 = arith.addf %660, %659 : vector<2x32xf32>
    %662 = arith.divf %660, %661 : vector<2x32xf32>
    %663 = arith.mulf %654, %617 : vector<2x32xf32>
    %664 = arith.mulf %648, %656 : vector<2x32xf32>
    %665 = arith.addf %663, %664 : vector<2x32xf32>
    %666 = math.tanh %665 : vector<2x32xf32>
    %667 = arith.mulf %662, %666 : vector<2x32xf32>
    %cst_168 = arith.constant dense<0.000000e+00> : vector<2x32xf32>
    %668 = tpu.matmul %667, %4, %cst_168 {dimension_numbers = #tpu.dot_dimension_numbers<[1], [0], [0], [1], [0, 0, 1, 1], [], []>} : vector<2x32xf32>, vector<32x32xf32>, vector<2x32xf32> -> vector<2x32xf32>
    %669 = vector.shape_cast %668 : vector<2x32xf32> to vector<2x1x32xf32>
    %670 = vector.broadcast %669 : vector<2x1x32xf32> to vector<2x8x32xf32>
    %671 = arith.addf %298, %670 : vector<2x8x32xf32>
    %672 = math.tanh %671 : vector<2x8x32xf32>
    %673 = arith.mulf %672, %301 : vector<2x8x32xf32>
    %cst_169 = arith.constant dense<0.000000e+00> : vector<2x8xf32>
    %674 = vector.multi_reduction <add>, %673, %cst_169 [2] : vector<2x8x32xf32> to vector<2x8xf32>
    %cst_170 = arith.constant dense<0xFF800000> : vector<2xf32>
    %675 = vector.multi_reduction <maximumf>, %674, %cst_170 [1] : vector<2x8xf32> to vector<2xf32>
    %676 = vector.shape_cast %675 : vector<2xf32> to vector<2x1xf32>
    %677 = vector.broadcast %676 : vector<2x1xf32> to vector<2x8xf32>
    %678 = arith.subf %674, %677 : vector<2x8xf32>
    %679 = math.exp %678 : vector<2x8xf32>
    %cst_171 = arith.constant dense<0.000000e+00> : vector<2xf32>
    %680 = vector.multi_reduction <add>, %679, %cst_171 [1] : vector<2x8xf32> to vector<2xf32>
    %681 = vector.shape_cast %680 : vector<2xf32> to vector<2x1xf32>
    %682 = math.log %681 : vector<2x1xf32>
    %683 = vector.broadcast %682 : vector<2x1xf32> to vector<2x8xf32>
    %684 = arith.subf %678, %683 : vector<2x8xf32>
    %c0_172 = arith.constant 0 : index
    %685 = arith.index_cast %c7_i32_163 : i32 to index
    %c0_173 = arith.constant 0 : index
    %686 = vector.load %arg3[%c0_172, %685, %c0_173] : memref<2x8x8xf32, #tpu.memory_space<vmem>>, vector<2x1x8xf32>
    %687 = vector.shape_cast %686 : vector<2x1x8xf32> to vector<2x8xf32>
    %688 = vector.shape_cast %684 : vector<2x8xf32> to vector<2x1x8xf32>
    tpu.vector_store %arg3[%c0_172, %685, %c0_173], %688 {strides = array<i32>} : memref<2x8x8xf32, #tpu.memory_space<vmem>>, vector<2x1x8xf32>,
    %c8_i32_174 = arith.constant 8 : i32
    return
  }
}

</mosaic_0001>

<llo_original>
// kernel: pointer_network_forward.1
$region0: #{pointer_network_forward.1}
  #allocation0 [shape = 'u32[]', space=smem, size = 0x4, offset = 0x4, fixed_abs, tag = 'smem constant byte address 0x4 - core index']
  #allocation1 [shape = 'u32[144,128]{1,0:T(1,128)}', space=vmem, size = 0x12000, scoped, tag = 'internal scratch']
  #allocation2 [shape = 'f32[16,128]{1,0:T(8,128)}', space=vmem, size = 0x2000, scoped, tag = 'scratch operand']
  #allocation3 [shape = 'f32[2,8,32]{2,1,0:T(8,128)}', space=vmem, size = 0x2000, scoped, tag = 'scratch operand']
  %s0 = inlined_call_operand.vmem [shape: f32[16,32], index: 0, kind: input, shape index: {}]
  %s1 = inlined_call_operand.vmem [shape: f32[32,640], index: 1, kind: input, shape index: {}]
  %s2 = inlined_call_operand.vmem [shape: f32[1,384], index: 2, kind: input, shape index: {}]
  %s3 = inlined_call_operand.hbm [shape: f32[2,8,8], index: 3, kind: output, shape index: {}]
  %s4 = sld [smem:[#allocation0]]
  $region22: #{pointer_network_forward.1} parent=0
    _
  %s6 = ssub.s32 1, %s4
  %s7 = scalar_select 0, %s6, %s4
  $region1: #{pointer_network_forward.1} parent=0
    #allocation4 [shape = 'u8[8192]{0}', space=vmem, size = 0x2000, scoped, tag = 'output window, operand 0, single buffered']
    #allocation5 [shape = 's32[1]{0}', space=sflag, size = 0x4, scoped, tag = 'scoped memory for pointer_network_forward.1']
    %8 = vsyncpa [#allocation5], 0
    // Predicated region
    $region2: #{pointer_network_forward.1} parent=1 // pred_check
      _
    $region3: #{pointer_network_forward.1} parent=1 // pred_check_branch
      %10 = sbr.rel (0) target = $region5
    $region4: #{pointer_network_forward.1} parent=1 // pred_region
      _
    $region5: #{pointer_network_forward.1} parent=1 // pred_fallthru
      _
    // Predicated region
    $region6: #{pointer_network_forward.1} parent=1 // pred_check
      _
    $region7: #{pointer_network_forward.1} parent=1 // pred_check_branch
      %12 = sbr.rel (0) target = $region9
    $region8: #{pointer_network_forward.1} parent=1 // pred_region
      _
    $region9: #{pointer_network_forward.1} parent=1 // pred_fallthru
      _
    // Predicated region
    $region10: #{pointer_network_forward.1} parent=1 // pred_check
      _
    $region11: #{pointer_network_forward.1} parent=1 // pred_check_branch
      %14 = sbr.rel (0) target = $region13
    $region12: #{pointer_network_forward.1} parent=1 // pred_region
      _
    $region13: #{pointer_network_forward.1} parent=1 // pred_fallthru
      _
    %v15 = vld [vmem:[%s1] sm:$0xff]
    %v16 = vld [vmem:[%s1 + $0x28] sm:$0xff]
    %v17 = vld [vmem:[%s1 + $0x50] sm:$0xff]
    %v18 = vld [vmem:[%s1 + $0x78] sm:$0xff]
    %v19 = vld [vmem:[%s1 + $0x8] sm:$0xff]
    %v20 = vld [vmem:[%s1 + $0x30] sm:$0xff]
    %v21 = vld [vmem:[%s1 + $0x58] sm:$0xff]
    %v22 = vld [vmem:[%s1 + $0x80] sm:$0xff]
    %v23 = vld [vmem:[%s1 + $0x10] sm:$0xff]
    %v24 = vld [vmem:[%s1 + $0x38] sm:$0xff]
    %v25 = vld [vmem:[%s1 + $0x60] sm:$0xff]
    %v26 = vld [vmem:[%s1 + $0x88] sm:$0xff]
    %v27 = vld [vmem:[%s1 + $0x18] sm:$0xff]
    %v28 = vld [vmem:[%s1 + $0x40] sm:$0xff]
    %v29 = vld [vmem:[%s1 + $0x68] sm:$0xff]
    %v30 = vld [vmem:[%s1 + $0x90] sm:$0xff]
    %v31 = vld [vmem:[%s1 + $0x20] sm:$0xff]
    %v32 = vld [vmem:[%s1 + $0x48] sm:$0xff]
    %v33 = vld [vmem:[%s1 + $0x70] sm:$0xff]
    %v34 = vld [vmem:[%s1 + $0x98] sm:$0xff]
    %v35 = vld [vmem:[%s2] sm:$0x1]
    %v36 = vld [vmem:[%s2 + $0x1] sm:$0x1]
    %v37 = vld [vmem:[%s2 + $0x2] sm:$0x1]
    %v38 = vld [vmem:[%s0] sm:$0xff]
    %v39 = vld [vmem:[%s0 + $0x8] sm:$0xff]
    %v41 = vlaneseq
    %v42 = vshrl.u32 %v41, 7
    %v43 = vsub.s32 0, %v42
    %v44 = vrot.slane %v35, %v43
    %vm46 = vcmask 261120
    %v48 = vsel %vm46, %v38, 0
    %v51 = vsel %vm46, %v39, 0
    %53 = vmatprep.subr.mxu0 0.0
    %54 = vmatpush1.msra.mxu0 %v15
    %55 = vmatprep.subr.mxu0 0.0
    %56 = vmatpush1.msra.mxu0 %v16
    %57 = vmatprep.subr.mxu0 0.0
    %58 = vmatpush1.msra.mxu0 %v17
    %59 = vmatprep.subr.mxu0 0.0
    %60 = vmatpush1.msra.mxu0 %v18
    %61 = vmatprep.subr.mxu0 0.0
    %62 = vmatpush1.msra.mxu0 0.0
    %63 = vmatprep.subr.mxu0 0.0
    %64 = vmatpush1.msra.mxu0 0.0
    %65 = vmatprep.subr.mxu0 0.0
    %66 = vmatpush1.msra.mxu0 0.0
    %67 = vmatprep.subr.mxu0 0.0
    %68 = vmatpush1.msra.mxu0 0.0
    %69 = vmatprep.subr.mxu0 0.0
    %70 = vmatpush1.msra.mxu0 0.0
    %71 = vmatprep.subr.mxu0 0.0
    %72 = vmatpush1.msra.mxu0 0.0
    %73 = vmatprep.subr.mxu0 0.0
    %74 = vmatpush1.msra.mxu0 0.0
    %75 = vmatprep.subr.mxu0 0.0
    %76 = vmatpush1.msra.mxu0 0.0
    %77 = vmatprep.subr.mxu0 0.0
    %78 = vmatpush1.msra.mxu0 0.0
    %79 = vmatprep.subr.mxu0 0.0
    %80 = vmatpush1.msra.mxu0 0.0
    %81 = vmatprep.subr.mxu0 0.0
    %82 = vmatpush1.msra.mxu0 0.0
    %83 = vmatprep.subr.mxu0 0.0
    %84 = vmatpush1.msra.mxu0 0.0
    %85 = vmatprep.subr.mxu0 0.0
    %86 = vmatpush1.msra.mxu0 0.0
    %87 = vmatprep.subr.mxu0 0.0
    %88 = vmatpush1.msra.mxu0 0.0
    %89 = vmatprep.subr.mxu0 0.0
    %90 = vmatpush1.msra.mxu0 0.0
    %91 = vmatprep.subr.mxu0 0.0
    %92 = vmatpush1.msra.mxu0 0.0
    %93 = vmatprep.subr.mxu0 0.0
    %94 = vmatpush1.msra.mxu0 0.0
    %95 = vmatprep.subr.mxu0 0.0
    %96 = vmatpush1.msra.mxu0 0.0
    %97 = vmatprep.subr.mxu0 0.0
    %98 = vmatpush1.msra.mxu0 0.0
    %99 = vmatprep.subr.mxu0 0.0
    %100 = vmatpush1.msra.mxu0 0.0
    %101 = vmatprep.subr.mxu0 0.0
    %102 = vmatpush1.msra.mxu0 0.0
    %103 = vmatprep.subr.mxu0 0.0
    %104 = vmatpush1.msra.mxu0 0.0
    %105 = vmatprep.subr.mxu0 0.0
    %106 = vmatpush1.msra.mxu0 0.0
    %107 = vmatprep.subr.mxu0 0.0
    %108 = vmatpush1.msra.mxu0 0.0
    %109 = vmatprep.subr.mxu0 0.0
    %110 = vmatpush1.msra.mxu0 0.0
    %111 = vmatprep.subr.mxu0 0.0
    %112 = vmatpush1.msra.mxu0 0.0
    %113 = vmatprep.subr.mxu0 0.0
    %114 = vmatpush1.msra.mxu0 0.0
    %115 = vmatprep.subr.mxu0 0.0
    %116 = vmatpush1.msra.mxu0 0.0
    %117 = vmatprep.mubr.f32.mxu0 0.0
    %118 = vmatmul.mubr.f32.gmra.mrb[0].mxu0 %v48
    %v119 = vpop.f32.mrb[0].mxu0
    %v120 = vadd.f32 %v44, %v119
    %v121 = vpop.f32.mrb[0].mxu0
    %122 = vmatprep.mubr.f32.mxu0 0.0
    %123 = vmatmul.mubr.f32.gmra.mrb[0].mxu0 %v51
    %v124 = vpop.f32.mrb[0].mxu0
    %v125 = vadd.f32 %v44, %v124
    %v126 = vpop.f32.mrb[0].mxu0
    %127 = vdwg.mxu0
    %128 = vst [vmem:[#allocation2] sm:$0xff] %v120
    %129 = vst [vmem:[#allocation2 + $0x8] sm:$0xff] %v125
    %v130 = vld [vmem:[#allocation2] sm:$0x3]
    %v132 = vsel %vm46, 0.0, 0
    %134 = vmatprep.subr.mxu0 0.0
    %135 = vmatpush1.msra.mxu0 %v19
    %136 = vmatprep.subr.mxu0 0.0
    %137 = vmatpush1.msra.mxu0 %v20
    %138 = vmatprep.subr.mxu0 0.0
    %139 = vmatpush1.msra.mxu0 %v21
    %140 = vmatprep.subr.mxu0 0.0
    %141 = vmatpush1.msra.mxu0 %v22
    %142 = vmatprep.subr.mxu0 0.0
    %143 = vmatpush1.msra.mxu0 0.0
    %144 = vmatprep.subr.mxu0 0.0
    %145 = vmatpush1.msra.mxu0 0.0
    %146 = vmatprep.subr.mxu0 0.0
    %147 = vmatpush1.msra.mxu0 0.0
    %148 = vmatprep.subr.mxu0 0.0
    %149 = vmatpush1.msra.mxu0 0.0
    %150 = vmatprep.subr.mxu0 0.0
    %151 = vmatpush1.msra.mxu0 0.0
    %152 = vmatprep.subr.mxu0 0.0
    %153 = vmatpush1.msra.mxu0 0.0
    %154 = vmatprep.subr.mxu0 0.0
    %155 = vmatpush1.msra.mxu0 0.0
    %156 = vmatprep.subr.mxu0 0.0
    %157 = vmatpush1.msra.mxu0 0.0
    %158 = vmatprep.subr.mxu0 0.0
    %159 = vmatpush1.msra.mxu0 0.0
    %160 = vmatprep.subr.mxu0 0.0
    %161 = vmatpush1.msra.mxu0 0.0
    %162 = vmatprep.subr.mxu0 0.0
    %163 = vmatpush1.msra.mxu0 0.0
    %164 = vmatprep.subr.mxu0 0.0
    %165 = vmatpush1.msra.mxu0 0.0
    %166 = vmatprep.subr.mxu0 0.0
    %167 = vmatpush1.msra.mxu0 0.0
    %168 = vmatprep.subr.mxu0 0.0
    %169 = vmatpush1.msra.mxu0 0.0
    %170 = vmatprep.subr.mxu0 0.0
    %171 = vmatpush1.msra.mxu0 0.0
    %172 = vmatprep.subr.mxu0 0.0
    %173 = vmatpush1.msra.mxu0 0.0
    %174 = vmatprep.subr.mxu0 0.0
    %175 = vmatpush1.msra.mxu0 0.0
    %176 = vmatprep.subr.mxu0 0.0
    %177 = vmatpush1.msra.mxu0 0.0
    %178 = vmatprep.subr.mxu0 0.0
    %179 = vmatpush1.msra.mxu0 0.0
    %180 = vmatprep.subr.mxu0 0.0
    %181 = vmatpush1.msra.mxu0 0.0
    %182 = vmatprep.subr.mxu0 0.0
    %183 = vmatpush1.msra.mxu0 0.0
    %184 = vmatprep.subr.mxu0 0.0
    %185 = vmatpush1.msra.mxu0 0.0
    %186 = vmatprep.subr.mxu0 0.0
    %187 = vmatpush1.msra.mxu0 0.0
    %188 = vmatprep.subr.mxu0 0.0
    %189 = vmatpush1.msra.mxu0 0.0
    %190 = vmatprep.subr.mxu0 0.0
    %191 = vmatpush1.msra.mxu0 0.0
    %192 = vmatprep.subr.mxu0 0.0
    %193 = vmatpush1.msra.mxu0 0.0
    %194 = vmatprep.subr.mxu0 0.0
    %195 = vmatpush1.msra.mxu0 0.0
    %196 = vmatprep.subr.mxu0 0.0
    %197 = vmatpush1.msra.mxu0 0.0
    %198 = vmatprep.mubr.f32.mxu0 0.0
    %199 = vmatmul.mubr.f32.gmra.mrb[0].mxu0 %v132
    %v200 = vpop.f32.mrb[0].mxu0
    %v201 = vadd.f32 0.0, %v200
    %v202 = vpop.f32.mrb[0].mxu0
    %203 = vdwg.mxu0
    %v204 = vadd.f32 %v130, %v201
    %v205 = vxor.u32 %v204, 2147483648
    %v206 = vmul.f32 %v205, 1.442695
    %v207 = vpow.pop %v206
    %v208 = vadd.f32 %v207, 1.0
    %v209 = vrcp.pop %v208
    %v210 = vmul.f32 1.0, %v209
    %v211 = vtanh.pop %v204
    %v212 = vmul.f32 %v210, 0.0
    %214 = vrot.lane.b32.xlu0 %v211, 64
    %v215 = vpop.permute.xlu0 %214
    %v217 = vmul.f32 %v210, %v215
    %219 = vrot.lane.b32.xlu0 %v217, 32
    %v220 = vpop.permute.xlu0 %219
    %v222 = vadd.f32 %v212, %v220
    %v223 = vtanh.pop %v222
    %225 = vrot.lane.b32.xlu0 %v223, 64
    %v226 = vpop.permute.xlu0 %225
    %v228 = vmul.f32 %v210, %v226
    %v231 = vunpack.c.l.s4 1966171168
    %v232 = vunpack.c.0.s8 %v231
    %v233 = vlaneseq
    %v234 = vshrl.u32 %v233, 7
    %v235 = vsub.s32 %v232, %v234
    %v236 = vrot.slane %v228, %v235
    %v237 = vcombine.high %v236, %v236
    %v239 = vunpack.c.l.s4 1966171168
    %v240 = vunpack.c.0.s8 %v239
    %v241 = vlaneseq
    %v242 = vshrl.u32 %v241, 7
    %v243 = vsub.s32 %v240, %v242
    %v244 = vrot.slane %v236, %v243
    %v246 = vunpack.c.l.s4 1966171168
    %v247 = vunpack.c.0.s8 %v246
    %v248 = vlaneseq
    %v249 = vshrl.u32 %v248, 7
    %v250 = vsub.s32 %v247, %v249
    %v251 = vrot.slane %v237, %v250
    %v252 = vlaneseq
    %v253 = vshrl.u32 %v252, 7
    %v254 = vsub.s32 0, %v253
    %v255 = vrot.slane %v244, %v254
    %v256 = vlaneseq
    %v257 = vshrl.u32 %v256, 7
    %v258 = vsub.s32 0, %v257
    %v259 = vrot.slane %v251, %v258
    %260 = vrot.lane.b32.xlu0 %v255, 32
    %v261 = vpop.permute.xlu0 %260
    %262 = vrot.lane.b32.xlu0 %v259, 32
    %v263 = vpop.permute.xlu0 %262
    %vm266 = vcmask 253952
    %267 = vst.msk [vmem:[#allocation3] sm:$0x1] %vm266, %v261
    %268 = vst.msk [vmem:[#allocation3 + $0x8] sm:$0x1] %vm266, %v263
    %s269 = scalar_lea.vmem [#allocation2], 2
    %v270 = vld [vmem:[%s269] sm:$0x3]
    %271 = vrot.lane.b32.xlu0 %v228, 32
    %v272 = vpop.permute.xlu0 %271
    %v273 = vsel %vm46, %v272, 0
    %275 = vmatprep.subr.mxu0 0.0
    %276 = vmatpush1.msra.mxu0 %v19
    %277 = vmatprep.subr.mxu0 0.0
    %278 = vmatpush1.msra.mxu0 %v20
    %279 = vmatprep.subr.mxu0 0.0
    %280 = vmatpush1.msra.mxu0 %v21
    %281 = vmatprep.subr.mxu0 0.0
    %282 = vmatpush1.msra.mxu0 %v22
    %283 = vmatprep.subr.mxu0 0.0
    %284 = vmatpush1.msra.mxu0 0.0
    %285 = vmatprep.subr.mxu0 0.0
    %286 = vmatpush1.msra.mxu0 0.0
    %287 = vmatprep.subr.mxu0 0.0
    %288 = vmatpush1.msra.mxu0 0.0
    %289 = vmatprep.subr.mxu0 0.0
    %290 = vmatpush1.msra.mxu0 0.0
    %291 = vmatprep.subr.mxu0 0.0
    %292 = vmatpush1.msra.mxu0 0.0
    %293 = vmatprep.subr.mxu0 0.0
    %294 = vmatpush1.msra.mxu0 0.0
    %295 = vmatprep.subr.mxu0 0.0
    %296 = vmatpush1.msra.mxu0 0.0
    %297 = vmatprep.subr.mxu0 0.0
    %298 = vmatpush1.msra.mxu0 0.0
    %299 = vmatprep.subr.mxu0 0.0
    %300 = vmatpush1.msra.mxu0 0.0
    %301 = vmatprep.subr.mxu0 0.0
    %302 = vmatpush1.msra.mxu0 0.0
    %303 = vmatprep.subr.mxu0 0.0
    %304 = vmatpush1.msra.mxu0 0.0
    %305 = vmatprep.subr.mxu0 0.0
    %306 = vmatpush1.msra.mxu0 0.0
    %307 = vmatprep.subr.mxu0 0.0
    %308 = vmatpush1.msra.mxu0 0.0
    %309 = vmatprep.subr.mxu0 0.0
    %310 = vmatpush1.msra.mxu0 0.0
    %311 = vmatprep.subr.mxu0 0.0
    %312 = vmatpush1.msra.mxu0 0.0
    %313 = vmatprep.subr.mxu0 0.0
    %314 = vmatpush1.msra.mxu0 0.0
    %315 = vmatprep.subr.mxu0 0.0
    %316 = vmatpush1.msra.mxu0 0.0
    %317 = vmatprep.subr.mxu0 0.0
    %318 = vmatpush1.msra.mxu0 0.0
    %319 = vmatprep.subr.mxu0 0.0
    %320 = vmatpush1.msra.mxu0 0.0
    %321 = vmatprep.subr.mxu0 0.0
    %322 = vmatpush1.msra.mxu0 0.0
    %323 = vmatprep.subr.mxu0 0.0
    %324 = vmatpush1.msra.mxu0 0.0
    %325 = vmatprep.subr.mxu0 0.0
    %326 = vmatpush1.msra.mxu0 0.0
    %327 = vmatprep.subr.mxu0 0.0
    %328 = vmatpush1.msra.mxu0 0.0
    %329 = vmatprep.subr.mxu0 0.0
    %330 = vmatpush1.msra.mxu0 0.0
    %331 = vmatprep.subr.mxu0 0.0
    %332 = vmatpush1.msra.mxu0 0.0
    %333 = vmatprep.subr.mxu0 0.0
    %334 = vmatpush1.msra.mxu0 0.0
    %335 = vmatprep.subr.mxu0 0.0
    %336 = vmatpush1.msra.mxu0 0.0
    %337 = vmatprep.subr.mxu0 0.0
    %338 = vmatpush1.msra.mxu0 0.0
    %339 = vmatprep.mubr.f32.mxu0 0.0
    %340 = vmatmul.mubr.f32.gmra.mrb[0].mxu0 %v273
    %v341 = vpop.f32.mrb[0].mxu0
    %v342 = vadd.f32 0.0, %v341
    %v343 = vpop.f32.mrb[0].mxu0
    %344 = vdwg.mxu0
    %v345 = vadd.f32 %v270, %v342
    %v346 = vxor.u32 %v345, 2147483648
    %v347 = vmul.f32 %v346, 1.442695
    %v348 = vpow.pop %v347
    %v349 = vadd.f32 %v348, 1.0
    %v350 = vrcp.pop %v349
    %v351 = vmul.f32 1.0, %v350
    %v352 = vtanh.pop %v345
    %v353 = vmul.f32 %v351, %v222
    %355 = vrot.lane.b32.xlu0 %v352, 64
    %v356 = vpop.permute.xlu0 %355
    %v358 = vmul.f32 %v351, %v356
    %360 = vrot.lane.b32.xlu0 %v358, 32
    %v361 = vpop.permute.xlu0 %360
    %v363 = vadd.f32 %v353, %v361
    %v364 = vtanh.pop %v363
    %366 = vrot.lane.b32.xlu0 %v364, 64
    %v367 = vpop.permute.xlu0 %366
    %v369 = vmul.f32 %v351, %v367
    %v372 = vunpack.c.l.s4 1966171168
    %v373 = vunpack.c.0.s8 %v372
    %v374 = vlaneseq
    %v375 = vshrl.u32 %v374, 7
    %v376 = vsub.s32 %v373, %v375
    %v377 = vrot.slane %v369, %v376
    %v378 = vcombine.high %v377, %v377
    %v380 = vunpack.c.l.s4 1966171168
    %v381 = vunpack.c.0.s8 %v380
    %v382 = vlaneseq
    %v383 = vshrl.u32 %v382, 7
    %v384 = vsub.s32 %v381, %v383
    %v385 = vrot.slane %v377, %v384
    %v387 = vunpack.c.l.s4 1966171168
    %v388 = vunpack.c.0.s8 %v387
    %v389 = vlaneseq
    %v390 = vshrl.u32 %v389, 7
    %v391 = vsub.s32 %v388, %v390
    %v392 = vrot.slane %v378, %v391
    %v393 = vlaneseq
    %v394 = vshrl.u32 %v393, 7
    %v395 = vsub.s32 0, %v394
    %v396 = vrot.slane %v385, %v395
    %v397 = vlaneseq
    %v398 = vshrl.u32 %v397, 7
    %v399 = vsub.s32 0, %v398
    %v400 = vrot.slane %v392, %v399
    %401 = vrot.lane.b32.xlu0 %v396, 32
    %v402 = vpop.permute.xlu0 %401
    %403 = vrot.lane.b32.xlu0 %v400, 32
    %v404 = vpop.permute.xlu0 %403
    %407 = vst.msk [vmem:[#allocation3 + $0x1] sm:$0x1] %vm266, %v402
    %408 = vst.msk [vmem:[#allocation3 + $0x9] sm:$0x1] %vm266, %v404
    %s409 = scalar_lea.vmem [#allocation2], 4
    %v410 = vld [vmem:[%s409] sm:$0x3]
    %411 = vrot.lane.b32.xlu0 %v369, 32
    %v412 = vpop.permute.xlu0 %411
    %v413 = vsel %vm46, %v412, 0
    %415 = vmatprep.subr.mxu0 0.0
    %416 = vmatpush1.msra.mxu0 %v19
    %417 = vmatprep.subr.mxu0 0.0
    %418 = vmatpush1.msra.mxu0 %v20
    %419 = vmatprep.subr.mxu0 0.0
    %420 = vmatpush1.msra.mxu0 %v21
    %421 = vmatprep.subr.mxu0 0.0
    %422 = vmatpush1.msra.mxu0 %v22
    %423 = vmatprep.subr.mxu0 0.0
    %424 = vmatpush1.msra.mxu0 0.0
    %425 = vmatprep.subr.mxu0 0.0
    %426 = vmatpush1.msra.mxu0 0.0
    %427 = vmatprep.subr.mxu0 0.0
    %428 = vmatpush1.msra.mxu0 0.0
    %429 = vmatprep.subr.mxu0 0.0
    %430 = vmatpush1.msra.mxu0 0.0
    %431 = vmatprep.subr.mxu0 0.0
    %432 = vmatpush1.msra.mxu0 0.0
    %433 = vmatprep.subr.mxu0 0.0
    %434 = vmatpush1.msra.mxu0 0.0
    %435 = vmatprep.subr.mxu0 0.0
    %436 = vmatpush1.msra.mxu0 0.0
    %437 = vmatprep.subr.mxu0 0.0
    %438 = vmatpush1.msra.mxu0 0.0
    %439 = vmatprep.subr.mxu0 0.0
    %440 = vmatpush1.msra.mxu0 0.0
    %441 = vmatprep.subr.mxu0 0.0
    %442 = vmatpush1.msra.mxu0 0.0
    %443 = vmatprep.subr.mxu0 0.0
    %444 = vmatpush1.msra.mxu0 0.0
    %445 = vmatprep.subr.mxu0 0.0
    %446 = vmatpush1.msra.mxu0 0.0
    %447 = vmatprep.subr.mxu0 0.0
    %448 = vmatpush1.msra.mxu0 0.0
    %449 = vmatprep.subr.mxu0 0.0
    %450 = vmatpush1.msra.mxu0 0.0
    %451 = vmatprep.subr.mxu0 0.0
    %452 = vmatpush1.msra.mxu0 0.0
    %453 = vmatprep.subr.mxu0 0.0
    %454 = vmatpush1.msra.mxu0 0.0
    %455 = vmatprep.subr.mxu0 0.0
    %456 = vmatpush1.msra.mxu0 0.0
    %457 = vmatprep.subr.mxu0 0.0
    %458 = vmatpush1.msra.mxu0 0.0
    %459 = vmatprep.subr.mxu0 0.0
    %460 = vmatpush1.msra.mxu0 0.0
    %461 = vmatprep.subr.mxu0 0.0
    %462 = vmatpush1.msra.mxu0 0.0
    %463 = vmatprep.subr.mxu0 0.0
    %464 = vmatpush1.msra.mxu0 0.0
    %465 = vmatprep.subr.mxu0 0.0
    %466 = vmatpush1.msra.mxu0 0.0
    %467 = vmatprep.subr.mxu0 0.0
    %468 = vmatpush1.msra.mxu0 0.0
    %469 = vmatprep.subr.mxu0 0.0
    %470 = vmatpush1.msra.mxu0 0.0
    %471 = vmatprep.subr.mxu0 0.0
    %472 = vmatpush1.msra.mxu0 0.0
    %473 = vmatprep.subr.mxu0 0.0
    %474 = vmatpush1.msra.mxu0 0.0
    %475 = vmatprep.subr.mxu0 0.0
    %476 = vmatpush1.msra.mxu0 0.0
    %477 = vmatprep.subr.mxu0 0.0
    %478 = vmatpush1.msra.mxu0 0.0
    %479 = vmatprep.mubr.f32.mxu0 0.0
    %480 = vmatmul.mubr.f32.gmra.mrb[0].mxu0 %v413
    %v481 = vpop.f32.mrb[0].mxu0
    %v482 = vadd.f32 0.0, %v481
    %v483 = vpop.f32.mrb[0].mxu0
    %484 = vdwg.mxu0
    %v485 = vadd.f32 %v410, %v482
    %v486 = vxor.u32 %v485, 2147483648
    %v487 = vmul.f32 %v486, 1.442695
    %v488 = vpow.pop %v487
    %v489 = vadd.f32 %v488, 1.0
    %v490 = vrcp.pop %v489
    %v491 = vmul.f32 1.0, %v490
    %v492 = vtanh.pop %v485
    %v493 = vmul.f32 %v491, %v363
    %495 = vrot.lane.b32.xlu0 %v492, 64
    %v496 = vpop.permute.xlu0 %495
    %v498 = vmul.f32 %v491, %v496
    %500 = vrot.lane.b32.xlu0 %v498, 32
    %v501 = vpop.permute.xlu0 %500
    %v503 = vadd.f32 %v493, %v501
    %v504 = vtanh.pop %v503
    %506 = vrot.lane.b32.xlu0 %v504, 64
    %v507 = vpop.permute.xlu0 %506
    %v509 = vmul.f32 %v491, %v507
    %v512 = vunpack.c.l.s4 1966171168
    %v513 = vunpack.c.0.s8 %v512
    %v514 = vlaneseq
    %v515 = vshrl.u32 %v514, 7
    %v516 = vsub.s32 %v513, %v515
    %v517 = vrot.slane %v509, %v516
    %v518 = vcombine.high %v517, %v517
    %v520 = vunpack.c.l.s4 1966171168
    %v521 = vunpack.c.0.s8 %v520
    %v522 = vlaneseq
    %v523 = vshrl.u32 %v522, 7
    %v524 = vsub.s32 %v521, %v523
    %v525 = vrot.slane %v517, %v524
    %v527 = vunpack.c.l.s4 1966171168
    %v528 = vunpack.c.0.s8 %v527
    %v529 = vlaneseq
    %v530 = vshrl.u32 %v529, 7
    %v531 = vsub.s32 %v528, %v530
    %v532 = vrot.slane %v518, %v531
    %v533 = vlaneseq
    %v534 = vshrl.u32 %v533, 7
    %v535 = vsub.s32 0, %v534
    %v536 = vrot.slane %v525, %v535
    %v537 = vlaneseq
    %v538 = vshrl.u32 %v537, 7
    %v539 = vsub.s32 0, %v538
    %v540 = vrot.slane %v532, %v539
    %541 = vrot.lane.b32.xlu0 %v536, 32
    %v542 = vpop.permute.xlu0 %541
    %543 = vrot.lane.b32.xlu0 %v540, 32
    %v544 = vpop.permute.xlu0 %543
    %547 = vst.msk [vmem:[#allocation3 + $0x2] sm:$0x1] %vm266, %v542
    %548 = vst.msk [vmem:[#allocation3 + $0xa] sm:$0x1] %vm266, %v544
    %s549 = scalar_lea.vmem [#allocation2], 6
    %v550 = vld [vmem:[%s549] sm:$0x3]
    %551 = vrot.lane.b32.xlu0 %v509, 32
    %v552 = vpop.permute.xlu0 %551
    %v553 = vsel %vm46, %v552, 0
    %555 = vmatprep.subr.mxu0 0.0
    %556 = vmatpush1.msra.mxu0 %v19
    %557 = vmatprep.subr.mxu0 0.0
    %558 = vmatpush1.msra.mxu0 %v20
    %559 = vmatprep.subr.mxu0 0.0
    %560 = vmatpush1.msra.mxu0 %v21
    %561 = vmatprep.subr.mxu0 0.0
    %562 = vmatpush1.msra.mxu0 %v22
    %563 = vmatprep.subr.mxu0 0.0
    %564 = vmatpush1.msra.mxu0 0.0
    %565 = vmatprep.subr.mxu0 0.0
    %566 = vmatpush1.msra.mxu0 0.0
    %567 = vmatprep.subr.mxu0 0.0
    %568 = vmatpush1.msra.mxu0 0.0
    %569 = vmatprep.subr.mxu0 0.0
    %570 = vmatpush1.msra.mxu0 0.0
    %571 = vmatprep.subr.mxu0 0.0
    %572 = vmatpush1.msra.mxu0 0.0
    %573 = vmatprep.subr.mxu0 0.0
    %574 = vmatpush1.msra.mxu0 0.0
    %575 = vmatprep.subr.mxu0 0.0
    %576 = vmatpush1.msra.mxu0 0.0
    %577 = vmatprep.subr.mxu0 0.0
    %578 = vmatpush1.msra.mxu0 0.0
    %579 = vmatprep.subr.mxu0 0.0
    %580 = vmatpush1.msra.mxu0 0.0
    %581 = vmatprep.subr.mxu0 0.0
    %582 = vmatpush1.msra.mxu0 0.0
    %583 = vmatprep.subr.mxu0 0.0
    %584 = vmatpush1.msra.mxu0 0.0
    %585 = vmatprep.subr.mxu0 0.0
    %586 = vmatpush1.msra.mxu0 0.0
    %587 = vmatprep.subr.mxu0 0.0
    %588 = vmatpush1.msra.mxu0 0.0
    %589 = vmatprep.subr.mxu0 0.0
    %590 = vmatpush1.msra.mxu0 0.0
    %591 = vmatprep.subr.mxu0 0.0
    %592 = vmatpush1.msra.mxu0 0.0
    %593 = vmatprep.subr.mxu0 0.0
    %594 = vmatpush1.msra.mxu0 0.0
    %595 = vmatprep.subr.mxu0 0.0
    %596 = vmatpush1.msra.mxu0 0.0
    %597 = vmatprep.subr.mxu0 0.0
    %598 = vmatpush1.msra.mxu0 0.0
    %599 = vmatprep.subr.mxu0 0.0
    %600 = vmatpush1.msra.mxu0 0.0
    %601 = vmatprep.subr.mxu0 0.0
    %602 = vmatpush1.msra.mxu0 0.0
    %603 = vmatprep.subr.mxu0 0.0
    %604 = vmatpush1.msra.mxu0 0.0
    %605 = vmatprep.subr.mxu0 0.0
    %606 = vmatpush1.msra.mxu0 0.0
    %607 = vmatprep.subr.mxu0 0.0
    %608 = vmatpush1.msra.mxu0 0.0
    %609 = vmatprep.subr.mxu0 0.0
    %610 = vmatpush1.msra.mxu0 0.0
    %611 = vmatprep.subr.mxu0 0.0
    %612 = vmatpush1.msra.mxu0 0.0
    %613 = vmatprep.subr.mxu0 0.0
    %614 = vmatpush1.msra.mxu0 0.0
    %615 = vmatprep.subr.mxu0 0.0
    %616 = vmatpush1.msra.mxu0 0.0
    %617 = vmatprep.subr.mxu0 0.0
    %618 = vmatpush1.msra.mxu0 0.0
    %619 = vmatprep.mubr.f32.mxu0 0.0
    %620 = vmatmul.mubr.f32.gmra.mrb[0].mxu0 %v553
    %v621 = vpop.f32.mrb[0].mxu0
    %v622 = vadd.f32 0.0, %v621
    %v623 = vpop.f32.mrb[0].mxu0
    %624 = vdwg.mxu0
    %v625 = vadd.f32 %v550, %v622
    %v626 = vxor.u32 %v625, 2147483648
    %v627 = vmul.f32 %v626, 1.442695
    %v628 = vpow.pop %v627
    %v629 = vadd.f32 %v628, 1.0
    %v630 = vrcp.pop %v629
    %v631 = vmul.f32 1.0, %v630
    %v632 = vtanh.pop %v625
    %v633 = vmul.f32 %v631, %v503
    %635 = vrot.lane.b32.xlu0 %v632, 64
    %v636 = vpop.permute.xlu0 %635
    %v638 = vmul.f32 %v631, %v636
    %640 = vrot.lane.b32.xlu0 %v638, 32
    %v641 = vpop.permute.xlu0 %640
    %v643 = vadd.f32 %v633, %v641
    %v644 = vtanh.pop %v643
    %646 = vrot.lane.b32.xlu0 %v644, 64
    %v647 = vpop.permute.xlu0 %646
    %v649 = vmul.f32 %v631, %v647
    %v652 = vunpack.c.l.s4 1966171168
    %v653 = vunpack.c.0.s8 %v652
    %v654 = vlaneseq
    %v655 = vshrl.u32 %v654, 7
    %v656 = vsub.s32 %v653, %v655
    %v657 = vrot.slane %v649, %v656
    %v658 = vcombine.high %v657, %v657
    %v660 = vunpack.c.l.s4 1966171168
    %v661 = vunpack.c.0.s8 %v660
    %v662 = vlaneseq
    %v663 = vshrl.u32 %v662, 7
    %v664 = vsub.s32 %v661, %v663
    %v665 = vrot.slane %v657, %v664
    %v667 = vunpack.c.l.s4 1966171168
    %v668 = vunpack.c.0.s8 %v667
    %v669 = vlaneseq
    %v670 = vshrl.u32 %v669, 7
    %v671 = vsub.s32 %v668, %v670
    %v672 = vrot.slane %v658, %v671
    %v673 = vlaneseq
    %v674 = vshrl.u32 %v673, 7
    %v675 = vsub.s32 0, %v674
    %v676 = vrot.slane %v665, %v675
    %v677 = vlaneseq
    %v678 = vshrl.u32 %v677, 7
    %v679 = vsub.s32 0, %v678
    %v680 = vrot.slane %v672, %v679
    %681 = vrot.lane.b32.xlu0 %v676, 32
    %v682 = vpop.permute.xlu0 %681
    %683 = vrot.lane.b32.xlu0 %v680, 32
    %v684 = vpop.permute.xlu0 %683
    %687 = vst.msk [vmem:[#allocation3 + $0x3] sm:$0x1] %vm266, %v682
    %688 = vst.msk [vmem:[#allocation3 + $0xb] sm:$0x1] %vm266, %v684
    %s689 = scalar_lea.vmem [#allocation2], 8
    %v690 = vld [vmem:[%s689] sm:$0x3]
    %691 = vrot.lane.b32.xlu0 %v649, 32
    %v692 = vpop.permute.xlu0 %691
    %v693 = vsel %vm46, %v692, 0
    %695 = vmatprep.subr.mxu0 0.0
    %696 = vmatpush1.msra.mxu0 %v19
    %697 = vmatprep.subr.mxu0 0.0
    %698 = vmatpush1.msra.mxu0 %v20
    %699 = vmatprep.subr.mxu0 0.0
    %700 = vmatpush1.msra.mxu0 %v21
    %701 = vmatprep.subr.mxu0 0.0
    %702 = vmatpush1.msra.mxu0 %v22
    %703 = vmatprep.subr.mxu0 0.0
    %704 = vmatpush1.msra.mxu0 0.0
    %705 = vmatprep.subr.mxu0 0.0
    %706 = vmatpush1.msra.mxu0 0.0
    %707 = vmatprep.subr.mxu0 0.0
    %708 = vmatpush1.msra.mxu0 0.0
    %709 = vmatprep.subr.mxu0 0.0
    %710 = vmatpush1.msra.mxu0 0.0
    %711 = vmatprep.subr.mxu0 0.0
    %712 = vmatpush1.msra.mxu0 0.0
    %713 = vmatprep.subr.mxu0 0.0
    %714 = vmatpush1.msra.mxu0 0.0
    %715 = vmatprep.subr.mxu0 0.0
    %716 = vmatpush1.msra.mxu0 0.0
    %717 = vmatprep.subr.mxu0 0.0
    %718 = vmatpush1.msra.mxu0 0.0
    %719 = vmatprep.subr.mxu0 0.0
    %720 = vmatpush1.msra.mxu0 0.0
    %721 = vmatprep.subr.mxu0 0.0
    %722 = vmatpush1.msra.mxu0 0.0
    %723 = vmatprep.subr.mxu0 0.0
    %724 = vmatpush1.msra.mxu0 0.0
    %725 = vmatprep.subr.mxu0 0.0
    %726 = vmatpush1.msra.mxu0 0.0
    %727 = vmatprep.subr.mxu0 0.0
    %728 = vmatpush1.msra.mxu0 0.0
    %729 = vmatprep.subr.mxu0 0.0
    %730 = vmatpush1.msra.mxu0 0.0
    %731 = vmatprep.subr.mxu0 0.0
    %732 = vmatpush1.msra.mxu0 0.0
    %733 = vmatprep.subr.mxu0 0.0
    %734 = vmatpush1.msra.mxu0 0.0
    %735 = vmatprep.subr.mxu0 0.0
    %736 = vmatpush1.msra.mxu0 0.0
    %737 = vmatprep.subr.mxu0 0.0
    %738 = vmatpush1.msra.mxu0 0.0
    %739 = vmatprep.subr.mxu0 0.0
    %740 = vmatpush1.msra.mxu0 0.0
    %741 = vmatprep.subr.mxu0 0.0
    %742 = vmatpush1.msra.mxu0 0.0
    %743 = vmatprep.subr.mxu0 0.0
    %744 = vmatpush1.msra.mxu0 0.0
    %745 = vmatprep.subr.mxu0 0.0
    %746 = vmatpush1.msra.mxu0 0.0
    %747 = vmatprep.subr.mxu0 0.0
    %748 = vmatpush1.msra.mxu0 0.0
    %749 = vmatprep.subr.mxu0 0.0
    %750 = vmatpush1.msra.mxu0 0.0
    %751 = vmatprep.subr.mxu0 0.0
    %752 = vmatpush1.msra.mxu0 0.0
    %753 = vmatprep.subr.mxu0 0.0
    %754 = vmatpush1.msra.mxu0 0.0
    %755 = vmatprep.subr.mxu0 0.0
    %756 = vmatpush1.msra.mxu0 0.0
    %757 = vmatprep.subr.mxu0 0.0
    %758 = vmatpush1.msra.mxu0 0.0
    %759 = vmatprep.mubr.f32.mxu0 0.0
    %760 = vmatmul.mubr.f32.gmra.mrb[0].mxu0 %v693
    %v761 = vpop.f32.mrb[0].mxu0
    %v762 = vadd.f32 0.0, %v761
    %v763 = vpop.f32.mrb[0].mxu0
    %764 = vdwg.mxu0
    %v765 = vadd.f32 %v690, %v762
    %v766 = vxor.u32 %v765, 2147483648
    %v767 = vmul.f32 %v766, 1.442695
    %v768 = vpow.pop %v767
    %v769 = vadd.f32 %v768, 1.0
    %v770 = vrcp.pop %v769
    %v771 = vmul.f32 1.0, %v770
    %v772 = vtanh.pop %v765
    %v773 = vmul.f32 %v771, %v643
    %775 = vrot.lane.b32.xlu0 %v772, 64
    %v776 = vpop.permute.xlu0 %775
    %v778 = vmul.f32 %v771, %v776
    %780 = vrot.lane.b32.xlu0 %v778, 32
    %v781 = vpop.permute.xlu0 %780
    %v783 = vadd.f32 %v773, %v781
    %v784 = vtanh.pop %v783
    %786 = vrot.lane.b32.xlu0 %v784, 64
    %v787 = vpop.permute.xlu0 %786
    %v789 = vmul.f32 %v771, %v787
    %v792 = vunpack.c.l.s4 1966171168
    %v793 = vunpack.c.0.s8 %v792
    %v794 = vlaneseq
    %v795 = vshrl.u32 %v794, 7
    %v796 = vsub.s32 %v793, %v795
    %v797 = vrot.slane %v789, %v796
    %v798 = vcombine.high %v797, %v797
    %v800 = vunpack.c.l.s4 1966171168
    %v801 = vunpack.c.0.s8 %v800
    %v802 = vlaneseq
    %v803 = vshrl.u32 %v802, 7
    %v804 = vsub.s32 %v801, %v803
    %v805 = vrot.slane %v797, %v804
    %v807 = vunpack.c.l.s4 1966171168
    %v808 = vunpack.c.0.s8 %v807
    %v809 = vlaneseq
    %v810 = vshrl.u32 %v809, 7
    %v811 = vsub.s32 %v808, %v810
    %v812 = vrot.slane %v798, %v811
    %v813 = vlaneseq
    %v814 = vshrl.u32 %v813, 7
    %v815 = vsub.s32 0, %v814
    %v816 = vrot.slane %v805, %v815
    %v817 = vlaneseq
    %v818 = vshrl.u32 %v817, 7
    %v819 = vsub.s32 0, %v818
    %v820 = vrot.slane %v812, %v819
    %821 = vrot.lane.b32.xlu0 %v816, 32
    %v822 = vpop.permute.xlu0 %821
    %823 = vrot.lane.b32.xlu0 %v820, 32
    %v824 = vpop.permute.xlu0 %823
    %827 = vst.msk [vmem:[#allocation3 + $0x4] sm:$0x1] %vm266, %v822
    %828 = vst.msk [vmem:[#allocation3 + $0xc] sm:$0x1] %vm266, %v824
    %s829 = scalar_lea.vmem [#allocation2], 10
    %v830 = vld [vmem:[%s829] sm:$0x3]
    %831 = vrot.lane.b32.xlu0 %v789, 32
    %v832 = vpop.permute.xlu0 %831
    %v833 = vsel %vm46, %v832, 0
    %835 = vmatprep.subr.mxu0 0.0
    %836 = vmatpush1.msra.mxu0 %v19
    %837 = vmatprep.subr.mxu0 0.0
    %838 = vmatpush1.msra.mxu0 %v20
    %839 = vmatprep.subr.mxu0 0.0
    %840 = vmatpush1.msra.mxu0 %v21
    %841 = vmatprep.subr.mxu0 0.0
    %842 = vmatpush1.msra.mxu0 %v22
    %843 = vmatprep.subr.mxu0 0.0
    %844 = vmatpush1.msra.mxu0 0.0
    %845 = vmatprep.subr.mxu0 0.0
    %846 = vmatpush1.msra.mxu0 0.0
    %847 = vmatprep.subr.mxu0 0.0
    %848 = vmatpush1.msra.mxu0 0.0
    %849 = vmatprep.subr.mxu0 0.0
    %850 = vmatpush1.msra.mxu0 0.0
    %851 = vmatprep.subr.mxu0 0.0
    %852 = vmatpush1.msra.mxu0 0.0
    %853 = vmatprep.subr.mxu0 0.0
    %854 = vmatpush1.msra.mxu0 0.0
    %855 = vmatprep.subr.mxu0 0.0
    %856 = vmatpush1.msra.mxu0 0.0
    %857 = vmatprep.subr.mxu0 0.0
    %858 = vmatpush1.msra.mxu0 0.0
    %859 = vmatprep.subr.mxu0 0.0
    %860 = vmatpush1.msra.mxu0 0.0
    %861 = vmatprep.subr.mxu0 0.0
    %862 = vmatpush1.msra.mxu0 0.0
    %863 = vmatprep.subr.mxu0 0.0
    %864 = vmatpush1.msra.mxu0 0.0
    %865 = vmatprep.subr.mxu0 0.0
    %866 = vmatpush1.msra.mxu0 0.0
    %867 = vmatprep.subr.mxu0 0.0
    %868 = vmatpush1.msra.mxu0 0.0
    %869 = vmatprep.subr.mxu0 0.0
    %870 = vmatpush1.msra.mxu0 0.0
    %871 = vmatprep.subr.mxu0 0.0
    %872 = vmatpush1.msra.mxu0 0.0
    %873 = vmatprep.subr.mxu0 0.0
    %874 = vmatpush1.msra.mxu0 0.0
    %875 = vmatprep.subr.mxu0 0.0
    %876 = vmatpush1.msra.mxu0 0.0
    %877 = vmatprep.subr.mxu0 0.0
    %878 = vmatpush1.msra.mxu0 0.0
    %879 = vmatprep.subr.mxu0 0.0
    %880 = vmatpush1.msra.mxu0 0.0
    %881 = vmatprep.subr.mxu0 0.0
    %882 = vmatpush1.msra.mxu0 0.0
    %883 = vmatprep.subr.mxu0 0.0
    %884 = vmatpush1.msra.mxu0 0.0
    %885 = vmatprep.subr.mxu0 0.0
    %886 = vmatpush1.msra.mxu0 0.0
    %887 = vmatprep.subr.mxu0 0.0
    %888 = vmatpush1.msra.mxu0 0.0
    %889 = vmatprep.subr.mxu0 0.0
    %890 = vmatpush1.msra.mxu0 0.0
    %891 = vmatprep.subr.mxu0 0.0
    %892 = vmatpush1.msra.mxu0 0.0
    %893 = vmatprep.subr.mxu0 0.0
    %894 = vmatpush1.msra.mxu0 0.0
    %895 = vmatprep.subr.mxu0 0.0
    %896 = vmatpush1.msra.mxu0 0.0
    %897 = vmatprep.subr.mxu0 0.0
    %898 = vmatpush1.msra.mxu0 0.0
    %899 = vmatprep.mubr.f32.mxu0 0.0
    %900 = vmatmul.mubr.f32.gmra.mrb[0].mxu0 %v833
    %v901 = vpop.f32.mrb[0].mxu0
    %v902 = vadd.f32 0.0, %v901
    %v903 = vpop.f32.mrb[0].mxu0
    %904 = vdwg.mxu0
    %v905 = vadd.f32 %v830, %v902
    %v906 = vxor.u32 %v905, 2147483648
    %v907 = vmul.f32 %v906, 1.442695
    %v908 = vpow.pop %v907
    %v909 = vadd.f32 %v908, 1.0
    %v910 = vrcp.pop %v909
    %v911 = vmul.f32 1.0, %v910
    %v912 = vtanh.pop %v905
    %v913 = vmul.f32 %v911, %v783
    %915 = vrot.lane.b32.xlu0 %v912, 64
    %v916 = vpop.permute.xlu0 %915
    %v918 = vmul.f32 %v911, %v916
    %920 = vrot.lane.b32.xlu0 %v918, 32
    %v921 = vpop.permute.xlu0 %920
    %v923 = vadd.f32 %v913, %v921
    %v924 = vtanh.pop %v923
    %926 = vrot.lane.b32.xlu0 %v924, 64
    %v927 = vpop.permute.xlu0 %926
    %v929 = vmul.f32 %v911, %v927
    %v932 = vunpack.c.l.s4 1966171168
    %v933 = vunpack.c.0.s8 %v932
    %v934 = vlaneseq
    %v935 = vshrl.u32 %v934, 7
    %v936 = vsub.s32 %v933, %v935
    %v937 = vrot.slane %v929, %v936
    %v938 = vcombine.high %v937, %v937
    %v940 = vunpack.c.l.s4 1966171168
    %v941 = vunpack.c.0.s8 %v940
    %v942 = vlaneseq
    %v943 = vshrl.u32 %v942, 7
    %v944 = vsub.s32 %v941, %v943
    %v945 = vrot.slane %v937, %v944
    %v947 = vunpack.c.l.s4 1966171168
    %v948 = vunpack.c.0.s8 %v947
    %v949 = vlaneseq
    %v950 = vshrl.u32 %v949, 7
    %v951 = vsub.s32 %v948, %v950
    %v952 = vrot.slane %v938, %v951
    %v953 = vlaneseq
    %v954 = vshrl.u32 %v953, 7
    %v955 = vsub.s32 0, %v954
    %v956 = vrot.slane %v945, %v955
    %v957 = vlaneseq
    %v958 = vshrl.u32 %v957, 7
    %v959 = vsub.s32 0, %v958
    %v960 = vrot.slane %v952, %v959
    %961 = vrot.lane.b32.xlu0 %v956, 32
    %v962 = vpop.permute.xlu0 %961
    %963 = vrot.lane.b32.xlu0 %v960, 32
    %v964 = vpop.permute.xlu0 %963
    %967 = vst.msk [vmem:[#allocation3 + $0x5] sm:$0x1] %vm266, %v962
    %968 = vst.msk [vmem:[#allocation3 + $0xd] sm:$0x1] %vm266, %v964
    %s969 = scalar_lea.vmem [#allocation2], 12
    %v970 = vld [vmem:[%s969] sm:$0x3]
    %971 = vrot.lane.b32.xlu0 %v929, 32
    %v972 = vpop.permute.xlu0 %971
    %v973 = vsel %vm46, %v972, 0
    %975 = vmatprep.subr.mxu0 0.0
    %976 = vmatpush1.msra.mxu0 %v19
    %977 = vmatprep.subr.mxu0 0.0
    %978 = vmatpush1.msra.mxu0 %v20
    %979 = vmatprep.subr.mxu0 0.0
    %980 = vmatpush1.msra.mxu0 %v21
    %981 = vmatprep.subr.mxu0 0.0
    %982 = vmatpush1.msra.mxu0 %v22
    %983 = vmatprep.subr.mxu0 0.0
    %984 = vmatpush1.msra.mxu0 0.0
    %985 = vmatprep.subr.mxu0 0.0
    %986 = vmatpush1.msra.mxu0 0.0
    %987 = vmatprep.subr.mxu0 0.0
    %988 = vmatpush1.msra.mxu0 0.0
    %989 = vmatprep.subr.mxu0 0.0
    %990 = vmatpush1.msra.mxu0 0.0
    %991 = vmatprep.subr.mxu0 0.0
    %992 = vmatpush1.msra.mxu0 0.0
    %993 = vmatprep.subr.mxu0 0.0
    %994 = vmatpush1.msra.mxu0 0.0
    %995 = vmatprep.subr.mxu0 0.0
    %996 = vmatpush1.msra.mxu0 0.0
    %997 = vmatprep.subr.mxu0 0.0
    %998 = vmatpush1.msra.mxu0 0.0
    %999 = vmatprep.subr.mxu0 0.0
    %1000 = vmatpush1.msra.mxu0 0.0
    %1001 = vmatprep.subr.mxu0 0.0
    %1002 = vmatpush1.msra.mxu0 0.0
    %1003 = vmatprep.subr.mxu0 0.0
    %1004 = vmatpush1.msra.mxu0 0.0
    %1005 = vmatprep.subr.mxu0 0.0
    %1006 = vmatpush1.msra.mxu0 0.0
    %1007 = vmatprep.subr.mxu0 0.0
    %1008 = vmatpush1.msra.mxu0 0.0
    %1009 = vmatprep.subr.mxu0 0.0
    %1010 = vmatpush1.msra.mxu0 0.0
    %1011 = vmatprep.subr.mxu0 0.0
    %1012 = vmatpush1.msra.mxu0 0.0
    %1013 = vmatprep.subr.mxu0 0.0
    %1014 = vmatpush1.msra.mxu0 0.0
    %1015 = vmatprep.subr.mxu0 0.0
    %1016 = vmatpush1.msra.mxu0 0.0
    %1017 = vmatprep.subr.mxu0 0.0
    %1018 = vmatpush1.msra.mxu0 0.0
    %1019 = vmatprep.subr.mxu0 0.0
    %1020 = vmatpush1.msra.mxu0 0.0
    %1021 = vmatprep.subr.mxu0 0.0
    %1022 = vmatpush1.msra.mxu0 0.0
    %1023 = vmatprep.subr.mxu0 0.0
    %1024 = vmatpush1.msra.mxu0 0.0
    %1025 = vmatprep.subr.mxu0 0.0
    %1026 = vmatpush1.msra.mxu0 0.0
    %1027 = vmatprep.subr.mxu0 0.0
    %1028 = vmatpush1.msra.mxu0 0.0
    %1029 = vmatprep.subr.mxu0 0.0
    %1030 = vmatpush1.msra.mxu0 0.0
    %1031 = vmatprep.subr.mxu0 0.0
    %1032 = vmatpush1.msra.mxu0 0.0
    %1033 = vmatprep.subr.mxu0 0.0
    %1034 = vmatpush1.msra.mxu0 0.0
    %1035 = vmatprep.subr.mxu0 0.0
    %1036 = vmatpush1.msra.mxu0 0.0
    %1037 = vmatprep.subr.mxu0 0.0
    %1038 = vmatpush1.msra.mxu0 0.0
    %1039 = vmatprep.mubr.f32.mxu0 0.0
    %1040 = vmatmul.mubr.f32.gmra.mrb[0].mxu0 %v973
    %v1041 = vpop.f32.mrb[0].mxu0
    %v1042 = vadd.f32 0.0, %v1041
    %v1043 = vpop.f32.mrb[0].mxu0
    %1044 = vdwg.mxu0
    %v1045 = vadd.f32 %v970, %v1042
    %v1046 = vxor.u32 %v1045, 2147483648
    %v1047 = vmul.f32 %v1046, 1.442695
    %v1048 = vpow.pop %v1047
    %v1049 = vadd.f32 %v1048, 1.0
    %v1050 = vrcp.pop %v1049
    %v1051 = vmul.f32 1.0, %v1050
    %v1052 = vtanh.pop %v1045
    %v1053 = vmul.f32 %v1051, %v923
    %1055 = vrot.lane.b32.xlu0 %v1052, 64
    %v1056 = vpop.permute.xlu0 %1055
    %v1058 = vmul.f32 %v1051, %v1056
    %1060 = vrot.lane.b32.xlu0 %v1058, 32
    %v1061 = vpop.permute.xlu0 %1060
    %v1063 = vadd.f32 %v1053, %v1061
    %v1064 = vtanh.pop %v1063
    %1066 = vrot.lane.b32.xlu0 %v1064, 64
    %v1067 = vpop.permute.xlu0 %1066
    %v1069 = vmul.f32 %v1051, %v1067
    %v1072 = vunpack.c.l.s4 1966171168
    %v1073 = vunpack.c.0.s8 %v1072
    %v1074 = vlaneseq
    %v1075 = vshrl.u32 %v1074, 7
    %v1076 = vsub.s32 %v1073, %v1075
    %v1077 = vrot.slane %v1069, %v1076
    %v1078 = vcombine.high %v1077, %v1077
    %v1080 = vunpack.c.l.s4 1966171168
    %v1081 = vunpack.c.0.s8 %v1080
    %v1082 = vlaneseq
    %v1083 = vshrl.u32 %v1082, 7
    %v1084 = vsub.s32 %v1081, %v1083
    %v1085 = vrot.slane %v1077, %v1084
    %v1087 = vunpack.c.l.s4 1966171168
    %v1088 = vunpack.c.0.s8 %v1087
    %v1089 = vlaneseq
    %v1090 = vshrl.u32 %v1089, 7
    %v1091 = vsub.s32 %v1088, %v1090
    %v1092 = vrot.slane %v1078, %v1091
    %v1093 = vlaneseq
    %v1094 = vshrl.u32 %v1093, 7
    %v1095 = vsub.s32 0, %v1094
    %v1096 = vrot.slane %v1085, %v1095
    %v1097 = vlaneseq
    %v1098 = vshrl.u32 %v1097, 7
    %v1099 = vsub.s32 0, %v1098
    %v1100 = vrot.slane %v1092, %v1099
    %1101 = vrot.lane.b32.xlu0 %v1096, 32
    %v1102 = vpop.permute.xlu0 %1101
    %1103 = vrot.lane.b32.xlu0 %v1100, 32
    %v1104 = vpop.permute.xlu0 %1103
    %1107 = vst.msk [vmem:[#allocation3 + $0x6] sm:$0x1] %vm266, %v1102
    %1108 = vst.msk [vmem:[#allocation3 + $0xe] sm:$0x1] %vm266, %v1104
    %s1109 = scalar_lea.vmem [#allocation2], 14
    %v1110 = vld [vmem:[%s1109] sm:$0x3]
    %1111 = vrot.lane.b32.xlu0 %v1069, 32
    %v1112 = vpop.permute.xlu0 %1111
    %v1113 = vsel %vm46, %v1112, 0
    %1115 = vmatprep.subr.mxu0 0.0
    %1116 = vmatpush1.msra.mxu0 %v19
    %1117 = vmatprep.subr.mxu0 0.0
    %1118 = vmatpush1.msra.mxu0 %v20
    %1119 = vmatprep.subr.mxu0 0.0
    %1120 = vmatpush1.msra.mxu0 %v21
    %1121 = vmatprep.subr.mxu0 0.0
    %1122 = vmatpush1.msra.mxu0 %v22
    %1123 = vmatprep.subr.mxu0 0.0
    %1124 = vmatpush1.msra.mxu0 0.0
    %1125 = vmatprep.subr.mxu0 0.0
    %1126 = vmatpush1.msra.mxu0 0.0
    %1127 = vmatprep.subr.mxu0 0.0
    %1128 = vmatpush1.msra.mxu0 0.0
    %1129 = vmatprep.subr.mxu0 0.0
    %1130 = vmatpush1.msra.mxu0 0.0
    %1131 = vmatprep.subr.mxu0 0.0
    %1132 = vmatpush1.msra.mxu0 0.0
    %1133 = vmatprep.subr.mxu0 0.0
    %1134 = vmatpush1.msra.mxu0 0.0
    %1135 = vmatprep.subr.mxu0 0.0
    %1136 = vmatpush1.msra.mxu0 0.0
    %1137 = vmatprep.subr.mxu0 0.0
    %1138 = vmatpush1.msra.mxu0 0.0
    %1139 = vmatprep.subr.mxu0 0.0
    %1140 = vmatpush1.msra.mxu0 0.0
    %1141 = vmatprep.subr.mxu0 0.0
    %1142 = vmatpush1.msra.mxu0 0.0
    %1143 = vmatprep.subr.mxu0 0.0
    %1144 = vmatpush1.msra.mxu0 0.0
    %1145 = vmatprep.subr.mxu0 0.0
    %1146 = vmatpush1.msra.mxu0 0.0
    %1147 = vmatprep.subr.mxu0 0.0
    %1148 = vmatpush1.msra.mxu0 0.0
    %1149 = vmatprep.subr.mxu0 0.0
    %1150 = vmatpush1.msra.mxu0 0.0
    %1151 = vmatprep.subr.mxu0 0.0
    %1152 = vmatpush1.msra.mxu0 0.0
    %1153 = vmatprep.subr.mxu0 0.0
    %1154 = vmatpush1.msra.mxu0 0.0
    %1155 = vmatprep.subr.mxu0 0.0
    %1156 = vmatpush1.msra.mxu0 0.0
    %1157 = vmatprep.subr.mxu0 0.0
    %1158 = vmatpush1.msra.mxu0 0.0
    %1159 = vmatprep.subr.mxu0 0.0
    %1160 = vmatpush1.msra.mxu0 0.0
    %1161 = vmatprep.subr.mxu0 0.0
    %1162 = vmatpush1.msra.mxu0 0.0
    %1163 = vmatprep.subr.mxu0 0.0
    %1164 = vmatpush1.msra.mxu0 0.0
    %1165 = vmatprep.subr.mxu0 0.0
    %1166 = vmatpush1.msra.mxu0 0.0
    %1167 = vmatprep.subr.mxu0 0.0
    %1168 = vmatpush1.msra.mxu0 0.0
    %1169 = vmatprep.subr.mxu0 0.0
    %1170 = vmatpush1.msra.mxu0 0.0
    %1171 = vmatprep.subr.mxu0 0.0
    %1172 = vmatpush1.msra.mxu0 0.0
    %1173 = vmatprep.subr.mxu0 0.0
    %1174 = vmatpush1.msra.mxu0 0.0
    %1175 = vmatprep.subr.mxu0 0.0
    %1176 = vmatpush1.msra.mxu0 0.0
    %1177 = vmatprep.subr.mxu0 0.0
    %1178 = vmatpush1.msra.mxu0 0.0
    %1179 = vmatprep.mubr.f32.mxu0 0.0
    %1180 = vmatmul.mubr.f32.gmra.mrb[0].mxu0 %v1113
    %v1181 = vpop.f32.mrb[0].mxu0
    %v1182 = vadd.f32 0.0, %v1181
    %v1183 = vpop.f32.mrb[0].mxu0
    %1184 = vdwg.mxu0
    %v1185 = vadd.f32 %v1110, %v1182
    %v1186 = vxor.u32 %v1185, 2147483648
    %v1187 = vmul.f32 %v1186, 1.442695
    %v1188 = vpow.pop %v1187
    %v1189 = vadd.f32 %v1188, 1.0
    %v1190 = vrcp.pop %v1189
    %v1191 = vmul.f32 1.0, %v1190
    %v1192 = vtanh.pop %v1185
    %v1193 = vmul.f32 %v1191, %v1063
    %1195 = vrot.lane.b32.xlu0 %v1192, 64
    %v1196 = vpop.permute.xlu0 %1195
    %v1198 = vmul.f32 %v1191, %v1196
    %1200 = vrot.lane.b32.xlu0 %v1198, 32
    %v1201 = vpop.permute.xlu0 %1200
    %v1203 = vadd.f32 %v1193, %v1201
    %v1204 = vtanh.pop %v1203
    %1206 = vrot.lane.b32.xlu0 %v1204, 64
    %v1207 = vpop.permute.xlu0 %1206
    %v1209 = vmul.f32 %v1191, %v1207
    %v1212 = vunpack.c.l.s4 1966171168
    %v1213 = vunpack.c.0.s8 %v1212
    %v1214 = vlaneseq
    %v1215 = vshrl.u32 %v1214, 7
    %v1216 = vsub.s32 %v1213, %v1215
    %v1217 = vrot.slane %v1209, %v1216
    %v1218 = vcombine.high %v1217, %v1217
    %v1220 = vunpack.c.l.s4 1966171168
    %v1221 = vunpack.c.0.s8 %v1220
    %v1222 = vlaneseq
    %v1223 = vshrl.u32 %v1222, 7
    %v1224 = vsub.s32 %v1221, %v1223
    %v1225 = vrot.slane %v1217, %v1224
    %v1227 = vunpack.c.l.s4 1966171168
    %v1228 = vunpack.c.0.s8 %v1227
    %v1229 = vlaneseq
    %v1230 = vshrl.u32 %v1229, 7
    %v1231 = vsub.s32 %v1228, %v1230
    %v1232 = vrot.slane %v1218, %v1231
    %v1233 = vlaneseq
    %v1234 = vshrl.u32 %v1233, 7
    %v1235 = vsub.s32 0, %v1234
    %v1236 = vrot.slane %v1225, %v1235
    %v1237 = vlaneseq
    %v1238 = vshrl.u32 %v1237, 7
    %v1239 = vsub.s32 0, %v1238
    %v1240 = vrot.slane %v1232, %v1239
    %1241 = vrot.lane.b32.xlu0 %v1236, 32
    %v1242 = vpop.permute.xlu0 %1241
    %1243 = vrot.lane.b32.xlu0 %v1240, 32
    %v1244 = vpop.permute.xlu0 %1243
    %1247 = vst.msk [vmem:[#allocation3 + $0x7] sm:$0x1] %vm266, %v1242
    %1248 = vst.msk [vmem:[#allocation3 + $0xf] sm:$0x1] %vm266, %v1244
    %v1249 = vld [vmem:[#allocation3] sm:$0xff]
    %v1250 = vld [vmem:[#allocation3 + $0x8] sm:$0xff]
    %v1252 = vsel %vm46, %v1249, 0
    %v1255 = vsel %vm46, %v1250, 0
    %1257 = vmatprep.subr.mxu0 0.0
    %1258 = vmatpush1.msra.mxu0 %v27
    %1259 = vmatprep.subr.mxu0 0.0
    %1260 = vmatpush1.msra.mxu0 %v28
    %1261 = vmatprep.subr.mxu0 0.0
    %1262 = vmatpush1.msra.mxu0 %v29
    %1263 = vmatprep.subr.mxu0 0.0
    %1264 = vmatpush1.msra.mxu0 %v30
    %1265 = vmatprep.subr.mxu0 0.0
    %1266 = vmatpush1.msra.mxu0 0.0
    %1267 = vmatprep.subr.mxu0 0.0
    %1268 = vmatpush1.msra.mxu0 0.0
    %1269 = vmatprep.subr.mxu0 0.0
    %1270 = vmatpush1.msra.mxu0 0.0
    %1271 = vmatprep.subr.mxu0 0.0
    %1272 = vmatpush1.msra.mxu0 0.0
    %1273 = vmatprep.subr.mxu0 0.0
    %1274 = vmatpush1.msra.mxu0 0.0
    %1275 = vmatprep.subr.mxu0 0.0
    %1276 = vmatpush1.msra.mxu0 0.0
    %1277 = vmatprep.subr.mxu0 0.0
    %1278 = vmatpush1.msra.mxu0 0.0
    %1279 = vmatprep.subr.mxu0 0.0
    %1280 = vmatpush1.msra.mxu0 0.0
    %1281 = vmatprep.subr.mxu0 0.0
    %1282 = vmatpush1.msra.mxu0 0.0
    %1283 = vmatprep.subr.mxu0 0.0
    %1284 = vmatpush1.msra.mxu0 0.0
    %1285 = vmatprep.subr.mxu0 0.0
    %1286 = vmatpush1.msra.mxu0 0.0
    %1287 = vmatprep.subr.mxu0 0.0
    %1288 = vmatpush1.msra.mxu0 0.0
    %1289 = vmatprep.subr.mxu0 0.0
    %1290 = vmatpush1.msra.mxu0 0.0
    %1291 = vmatprep.subr.mxu0 0.0
    %1292 = vmatpush1.msra.mxu0 0.0
    %1293 = vmatprep.subr.mxu0 0.0
    %1294 = vmatpush1.msra.mxu0 0.0
    %1295 = vmatprep.subr.mxu0 0.0
    %1296 = vmatpush1.msra.mxu0 0.0
    %1297 = vmatprep.subr.mxu0 0.0
    %1298 = vmatpush1.msra.mxu0 0.0
    %1299 = vmatprep.subr.mxu0 0.0
    %1300 = vmatpush1.msra.mxu0 0.0
    %1301 = vmatprep.subr.mxu0 0.0
    %1302 = vmatpush1.msra.mxu0 0.0
    %1303 = vmatprep.subr.mxu0 0.0
    %1304 = vmatpush1.msra.mxu0 0.0
    %1305 = vmatprep.subr.mxu0 0.0
    %1306 = vmatpush1.msra.mxu0 0.0
    %1307 = vmatprep.subr.mxu0 0.0
    %1308 = vmatpush1.msra.mxu0 0.0
    %1309 = vmatprep.subr.mxu0 0.0
    %1310 = vmatpush1.msra.mxu0 0.0
    %1311 = vmatprep.subr.mxu0 0.0
    %1312 = vmatpush1.msra.mxu0 0.0
    %1313 = vmatprep.subr.mxu0 0.0
    %1314 = vmatpush1.msra.mxu0 0.0
    %1315 = vmatprep.subr.mxu0 0.0
    %1316 = vmatpush1.msra.mxu0 0.0
    %1317 = vmatprep.subr.mxu0 0.0
    %1318 = vmatpush1.msra.mxu0 0.0
    %1319 = vmatprep.subr.mxu0 0.0
    %1320 = vmatpush1.msra.mxu0 0.0
    %1321 = vmatprep.mubr.f32.mxu0 0.0
    %1322 = vmatmul.mubr.f32.gmra.mrb[0].mxu0 %v1252
    %v1323 = vpop.f32.mrb[0].mxu0
    %v1324 = vadd.f32 0.0, %v1323
    %v1325 = vpop.f32.mrb[0].mxu0
    %1326 = vmatprep.mubr.f32.mxu0 0.0
    %1327 = vmatmul.mubr.f32.gmra.mrb[0].mxu0 %v1255
    %v1328 = vpop.f32.mrb[0].mxu0
    %v1329 = vadd.f32 0.0, %v1328
    %v1330 = vpop.f32.mrb[0].mxu0
    %1331 = vdwg.mxu0
    %v1333 = vlaneseq
    %v1334 = vshrl.u32 %v1333, 7
    %v1335 = vsub.s32 0, %v1334
    %v1336 = vrot.slane %v37, %v1335
    %v1339 = vlaneseq
    %v1340 = vshrl.u32 %v1339, 7
    %v1341 = vsub.s32 0, %v1340
    %v1342 = vrot.slane %v36, %v1341
    %1344 = vmatprep.subr.mxu0 0.0
    %1345 = vmatpush1.msra.mxu0 %v23
    %1346 = vmatprep.subr.mxu0 0.0
    %1347 = vmatpush1.msra.mxu0 %v24
    %1348 = vmatprep.subr.mxu0 0.0
    %1349 = vmatpush1.msra.mxu0 %v25
    %1350 = vmatprep.subr.mxu0 0.0
    %1351 = vmatpush1.msra.mxu0 %v26
    %1352 = vmatprep.subr.mxu0 0.0
    %1353 = vmatpush1.msra.mxu0 0.0
    %1354 = vmatprep.subr.mxu0 0.0
    %1355 = vmatpush1.msra.mxu0 0.0
    %1356 = vmatprep.subr.mxu0 0.0
    %1357 = vmatpush1.msra.mxu0 0.0
    %1358 = vmatprep.subr.mxu0 0.0
    %1359 = vmatpush1.msra.mxu0 0.0
    %1360 = vmatprep.subr.mxu0 0.0
    %1361 = vmatpush1.msra.mxu0 0.0
    %1362 = vmatprep.subr.mxu0 0.0
    %1363 = vmatpush1.msra.mxu0 0.0
    %1364 = vmatprep.subr.mxu0 0.0
    %1365 = vmatpush1.msra.mxu0 0.0
    %1366 = vmatprep.subr.mxu0 0.0
    %1367 = vmatpush1.msra.mxu0 0.0
    %1368 = vmatprep.subr.mxu0 0.0
    %1369 = vmatpush1.msra.mxu0 0.0
    %1370 = vmatprep.subr.mxu0 0.0
    %1371 = vmatpush1.msra.mxu0 0.0
    %1372 = vmatprep.subr.mxu0 0.0
    %1373 = vmatpush1.msra.mxu0 0.0
    %1374 = vmatprep.subr.mxu0 0.0
    %1375 = vmatpush1.msra.mxu0 0.0
    %1376 = vmatprep.subr.mxu0 0.0
    %1377 = vmatpush1.msra.mxu0 0.0
    %1378 = vmatprep.subr.mxu0 0.0
    %1379 = vmatpush1.msra.mxu0 0.0
    %1380 = vmatprep.subr.mxu0 0.0
    %1381 = vmatpush1.msra.mxu0 0.0
    %1382 = vmatprep.subr.mxu0 0.0
    %1383 = vmatpush1.msra.mxu0 0.0
    %1384 = vmatprep.subr.mxu0 0.0
    %1385 = vmatpush1.msra.mxu0 0.0
    %1386 = vmatprep.subr.mxu0 0.0
    %1387 = vmatpush1.msra.mxu0 0.0
    %1388 = vmatprep.subr.mxu0 0.0
    %1389 = vmatpush1.msra.mxu0 0.0
    %1390 = vmatprep.subr.mxu0 0.0
    %1391 = vmatpush1.msra.mxu0 0.0
    %1392 = vmatprep.subr.mxu0 0.0
    %1393 = vmatpush1.msra.mxu0 0.0
    %1394 = vmatprep.subr.mxu0 0.0
    %1395 = vmatpush1.msra.mxu0 0.0
    %1396 = vmatprep.subr.mxu0 0.0
    %1397 = vmatpush1.msra.mxu0 0.0
    %1398 = vmatprep.subr.mxu0 0.0
    %1399 = vmatpush1.msra.mxu0 0.0
    %1400 = vmatprep.subr.mxu0 0.0
    %1401 = vmatpush1.msra.mxu0 0.0
    %1402 = vmatprep.subr.mxu0 0.0
    %1403 = vmatpush1.msra.mxu0 0.0
    %1404 = vmatprep.subr.mxu0 0.0
    %1405 = vmatpush1.msra.mxu0 0.0
    %1406 = vmatprep.subr.mxu0 0.0
    %1407 = vmatpush1.msra.mxu0 0.0
    %1408 = vmatprep.mubr.f32.mxu0 0.0
    %1409 = vmatmul.mubr.f32.gmra.mrb[0].mxu0 %v132
    %v1410 = vpop.f32.mrb[0].mxu0
    %v1411 = vadd.f32 %v1342, %v1410
    %v1412 = vpop.f32.mrb[0].mxu0
    %1413 = vdwg.mxu0
    %v1414 = vxor.u32 %v1411, 2147483648
    %v1415 = vmul.f32 %v1414, 1.442695
    %v1416 = vpow.pop %v1415
    %v1417 = vadd.f32 %v1416, 1.0
    %v1418 = vrcp.pop %v1417
    %v1419 = vmul.f32 1.0, %v1418
    %v1420 = vtanh.pop %v1411
    %1421 = vrot.lane.b32.xlu0 %v1209, 64
    %v1422 = vpop.permute.xlu0 %1421
    %v1424 = vmul.f32 %v1419, %v1422
    %1426 = vrot.lane.b32.xlu0 %v1420, 64
    %v1427 = vpop.permute.xlu0 %1426
    %v1429 = vmul.f32 %v1419, %v1427
    %1431 = vrot.lane.b32.xlu0 %v1429, 32
    %v1432 = vpop.permute.xlu0 %1431
    %v1434 = vadd.f32 %v1424, %v1432
    %v1435 = vtanh.pop %v1434
    %1437 = vrot.lane.b32.xlu0 %v1435, 64
    %v1438 = vpop.permute.xlu0 %1437
    %v1440 = vmul.f32 %v1419, %v1438
    %1442 = vrot.lane.b32.xlu0 %v1440, 32
    %v1443 = vpop.permute.xlu0 %1442
    %v1444 = vsel %vm46, %v1443, 0
    %1446 = vmatprep.subr.mxu0 0.0
    %1447 = vmatpush1.msra.mxu0 %v31
    %1448 = vmatprep.subr.mxu0 0.0
    %1449 = vmatpush1.msra.mxu0 %v32
    %1450 = vmatprep.subr.mxu0 0.0
    %1451 = vmatpush1.msra.mxu0 %v33
    %1452 = vmatprep.subr.mxu0 0.0
    %1453 = vmatpush1.msra.mxu0 %v34
    %1454 = vmatprep.subr.mxu0 0.0
    %1455 = vmatpush1.msra.mxu0 0.0
    %1456 = vmatprep.subr.mxu0 0.0
    %1457 = vmatpush1.msra.mxu0 0.0
    %1458 = vmatprep.subr.mxu0 0.0
    %1459 = vmatpush1.msra.mxu0 0.0
    %1460 = vmatprep.subr.mxu0 0.0
    %1461 = vmatpush1.msra.mxu0 0.0
    %1462 = vmatprep.subr.mxu0 0.0
    %1463 = vmatpush1.msra.mxu0 0.0
    %1464 = vmatprep.subr.mxu0 0.0
    %1465 = vmatpush1.msra.mxu0 0.0
    %1466 = vmatprep.subr.mxu0 0.0
    %1467 = vmatpush1.msra.mxu0 0.0
    %1468 = vmatprep.subr.mxu0 0.0
    %1469 = vmatpush1.msra.mxu0 0.0
    %1470 = vmatprep.subr.mxu0 0.0
    %1471 = vmatpush1.msra.mxu0 0.0
    %1472 = vmatprep.subr.mxu0 0.0
    %1473 = vmatpush1.msra.mxu0 0.0
    %1474 = vmatprep.subr.mxu0 0.0
    %1475 = vmatpush1.msra.mxu0 0.0
    %1476 = vmatprep.subr.mxu0 0.0
    %1477 = vmatpush1.msra.mxu0 0.0
    %1478 = vmatprep.subr.mxu0 0.0
    %1479 = vmatpush1.msra.mxu0 0.0
    %1480 = vmatprep.subr.mxu0 0.0
    %1481 = vmatpush1.msra.mxu0 0.0
    %1482 = vmatprep.subr.mxu0 0.0
    %1483 = vmatpush1.msra.mxu0 0.0
    %1484 = vmatprep.subr.mxu0 0.0
    %1485 = vmatpush1.msra.mxu0 0.0
    %1486 = vmatprep.subr.mxu0 0.0
    %1487 = vmatpush1.msra.mxu0 0.0
    %1488 = vmatprep.subr.mxu0 0.0
    %1489 = vmatpush1.msra.mxu0 0.0
    %1490 = vmatprep.subr.mxu0 0.0
    %1491 = vmatpush1.msra.mxu0 0.0
    %1492 = vmatprep.subr.mxu0 0.0
    %1493 = vmatpush1.msra.mxu0 0.0
    %1494 = vmatprep.subr.mxu0 0.0
    %1495 = vmatpush1.msra.mxu0 0.0
    %1496 = vmatprep.subr.mxu0 0.0
    %1497 = vmatpush1.msra.mxu0 0.0
    %1498 = vmatprep.subr.mxu0 0.0
    %1499 = vmatpush1.msra.mxu0 0.0
    %1500 = vmatprep.subr.mxu0 0.0
    %1501 = vmatpush1.msra.mxu0 0.0
    %1502 = vmatprep.subr.mxu0 0.0
    %1503 = vmatpush1.msra.mxu0 0.0
    %1504 = vmatprep.subr.mxu0 0.0
    %1505 = vmatpush1.msra.mxu0 0.0
    %1506 = vmatprep.subr.mxu0 0.0
    %1507 = vmatpush1.msra.mxu0 0.0
    %1508 = vmatprep.subr.mxu0 0.0
    %1509 = vmatpush1.msra.mxu0 0.0
    %1510 = vmatprep.mubr.f32.mxu0 0.0
    %1511 = vmatmul.mubr.f32.gmra.mrb[0].mxu0 %v1444
    %v1512 = vpop.f32.mrb[0].mxu0
    %v1513 = vadd.f32 0.0, %v1512
    %v1514 = vpop.f32.mrb[0].mxu0
    %1515 = vdwg.mxu0
    %v1518 = vunpack.c.l.s4 1966171168
    %v1519 = vunpack.c.0.s8 %v1518
    %v1520 = vlaneseq
    %v1521 = vshrl.u32 %v1520, 7
    %v1522 = vsub.s32 %v1519, %v1521
    %v1523 = vrot.slane %v1513, %v1522
    %v1524 = vcombine.high %v1523, %v1523
    %v1526 = vunpack.c.l.s4 1966171168
    %v1527 = vunpack.c.0.s8 %v1526
    %v1528 = vlaneseq
    %v1529 = vshrl.u32 %v1528, 7
    %v1530 = vsub.s32 %v1527, %v1529
    %v1531 = vrot.slane %v1523, %v1530
    %v1533 = vunpack.c.l.s4 1966171168
    %v1534 = vunpack.c.0.s8 %v1533
    %v1535 = vlaneseq
    %v1536 = vshrl.u32 %v1535, 7
    %v1537 = vsub.s32 %v1534, %v1536
    %v1538 = vrot.slane %v1524, %v1537
    %v1539 = vlaneseq
    %v1540 = vshrl.u32 %v1539, 7
    %v1541 = vsub.s32 0, %v1540
    %v1542 = vrot.slane %v1531, %v1541
    %v1543 = vlaneseq
    %v1544 = vshrl.u32 %v1543, 7
    %v1545 = vsub.s32 0, %v1544
    %v1546 = vrot.slane %v1538, %v1545
    %v1549 = vadd.f32 %v1324, %v1542
    %v1550 = vadd.f32 %v1329, %v1546
    %v1551 = vtanh.pop %v1549
    %v1552 = vtanh.pop %v1550
    %v1553 = vmul.f32 %v1551, %v1336
    %v1554 = vmul.f32 %v1552, %v1336
    %v1555 = vsel %vm46, %v1553, 0.0
    %1556 = vadd.xlane.f32.xlu0 %v1555
    %v1557 = vpop.xlane.xlu0 %1556
    %v1558 = vsel %vm46, %v1554, 0.0
    %1559 = vadd.xlane.f32.xlu0 %v1558
    %v1560 = vpop.xlane.xlu0 %1559
    %v1563 = vlaneseq
    %v1564 = vand.u32 %v1563, 127
    %v1565 = vlaneseq
    %v1566 = vshrl.u32 %v1565, 7
    %v1567 = vsub.s32 %v1564, %v1566
    %v1568 = vrot.slane %v1557, %v1567
    %v1569 = vlaneseq
    %v1570 = vshrl.u32 %v1569, 7
    %v1571 = vsub.s32 %v1564, %v1570
    %v1572 = vrot.slane %v1560, %v1571
    %vm1573 = vcmask 1041409
    %v1574 = vsel %vm1573, %v1572, %v1568
    %vm1576 = vcmask 58368
    %v1577 = vsel %vm1576, %v1574, -inf
    %1578 = vmax.xlane.f32.xlu0 %v1577
    %v1579 = vpop.xlane.xlu0 %1578
    %v1581 = vlaneseq
    %v1582 = vshrl.u32 %v1581, 7
    %v1583 = vsub.s32 0, %v1582
    %v1584 = vrot.slane %v1579, %v1583
    %v1585 = vlaneseq
    %v1586 = vshrl.u32 %v1585, 7
    %v1587 = vsub.s32 1, %v1586
    %v1588 = vrot.slane %v1579, %v1587
    %v1591 = vsub.f32 %v1557, %v1584
    %v1592 = vsub.f32 %v1560, %v1588
    %v1593 = vmul.f32 %v1591, 1.442695
    %v1594 = vpow.pop %v1593
    %v1595 = vmul.f32 %v1592, 1.442695
    %v1596 = vpow.pop %v1595
    %1599 = vset.pattern.permute.xlu0 0
    %1600 = vperm.xlu0 %1599, %v1594
    %v1601 = vpop.permute.xlu0 %1600
    %1602 = vset.pattern.permute.xlu0 0
    %1603 = vperm.xlu0 %1602, %v1596
    %v1604 = vpop.permute.xlu0 %1603
    %v1605 = vlaneseq
    %v1606 = vshrl.u32 %v1605, 7
    %v1607 = vsub.s32 %v1564, %v1606
    %v1608 = vrot.slane %v1601, %v1607
    %v1609 = vlaneseq
    %v1610 = vshrl.u32 %v1609, 7
    %v1611 = vsub.s32 %v1564, %v1610
    %v1612 = vrot.slane %v1604, %v1611
    %v1613 = vsel %vm1573, %v1612, %v1608
    %v1615 = vsel %vm1576, %v1613, 0.0
    %1616 = vadd.xlane.f32.xlu0 %v1615
    %v1617 = vpop.xlane.xlu0 %1616
    %v1618 = vlog2.pop %v1617
    %v1619 = vmul.f32 %v1618, 0.6931472
    %v1621 = vlaneseq
    %v1622 = vshrl.u32 %v1621, 7
    %v1623 = vsub.s32 0, %v1622
    %v1624 = vrot.slane %v1619, %v1623
    %v1625 = vlaneseq
    %v1626 = vshrl.u32 %v1625, 7
    %v1627 = vsub.s32 1, %v1626
    %v1628 = vrot.slane %v1619, %v1627
    %v1631 = vsub.f32 %v1591, %v1624
    %v1632 = vsub.f32 %v1592, %v1628
    %1635 = vset.pattern.permute.xlu0 0
    %1636 = vperm.xlu0 %1635, %v1631
    %v1637 = vpop.permute.xlu0 %1636
    %1638 = vset.pattern.permute.xlu0 0
    %1639 = vperm.xlu0 %1638, %v1632
    %v1640 = vpop.permute.xlu0 %1639
    %v1641 = vlaneseq
    %v1642 = vshrl.u32 %v1641, 7
    %v1643 = vsub.s32 %v1564, %v1642
    %v1644 = vrot.slane %v1637, %v1643
    %v1645 = vlaneseq
    %v1646 = vshrl.u32 %v1645, 7
    %v1647 = vsub.s32 %v1564, %v1646
    %v1648 = vrot.slane %v1640, %v1647
    %vm1651 = vcmask 57344
    %1652 = vst.msk [vmem:[#allocation4] sm:$0x1] %vm1651, %v1644
    %1653 = vst.msk [vmem:[#allocation4 + $0x8] sm:$0x1] %vm1651, %v1648
    %1654 = vmatprep.subr.mxu0 0.0
    %1655 = vmatpush1.msra.mxu0 %v23
    %1656 = vmatprep.subr.mxu0 0.0
    %1657 = vmatpush1.msra.mxu0 %v24
    %1658 = vmatprep.subr.mxu0 0.0
    %1659 = vmatpush1.msra.mxu0 %v25
    %1660 = vmatprep.subr.mxu0 0.0
    %1661 = vmatpush1.msra.mxu0 %v26
    %1662 = vmatprep.subr.mxu0 0.0
    %1663 = vmatpush1.msra.mxu0 0.0
    %1664 = vmatprep.subr.mxu0 0.0
    %1665 = vmatpush1.msra.mxu0 0.0
    %1666 = vmatprep.subr.mxu0 0.0
    %1667 = vmatpush1.msra.mxu0 0.0
    %1668 = vmatprep.subr.mxu0 0.0
    %1669 = vmatpush1.msra.mxu0 0.0
    %1670 = vmatprep.subr.mxu0 0.0
    %1671 = vmatpush1.msra.mxu0 0.0
    %1672 = vmatprep.subr.mxu0 0.0
    %1673 = vmatpush1.msra.mxu0 0.0
    %1674 = vmatprep.subr.mxu0 0.0
    %1675 = vmatpush1.msra.mxu0 0.0
    %1676 = vmatprep.subr.mxu0 0.0
    %1677 = vmatpush1.msra.mxu0 0.0
    %1678 = vmatprep.subr.mxu0 0.0
    %1679 = vmatpush1.msra.mxu0 0.0
    %1680 = vmatprep.subr.mxu0 0.0
    %1681 = vmatpush1.msra.mxu0 0.0
    %1682 = vmatprep.subr.mxu0 0.0
    %1683 = vmatpush1.msra.mxu0 0.0
    %1684 = vmatprep.subr.mxu0 0.0
    %1685 = vmatpush1.msra.mxu0 0.0
    %1686 = vmatprep.subr.mxu0 0.0
    %1687 = vmatpush1.msra.mxu0 0.0
    %1688 = vmatprep.subr.mxu0 0.0
    %1689 = vmatpush1.msra.mxu0 0.0
    %1690 = vmatprep.subr.mxu0 0.0
    %1691 = vmatpush1.msra.mxu0 0.0
    %1692 = vmatprep.subr.mxu0 0.0
    %1693 = vmatpush1.msra.mxu0 0.0
    %1694 = vmatprep.subr.mxu0 0.0
    %1695 = vmatpush1.msra.mxu0 0.0
    %1696 = vmatprep.subr.mxu0 0.0
    %1697 = vmatpush1.msra.mxu0 0.0
    %1698 = vmatprep.subr.mxu0 0.0
    %1699 = vmatpush1.msra.mxu0 0.0
    %1700 = vmatprep.subr.mxu0 0.0
    %1701 = vmatpush1.msra.mxu0 0.0
    %1702 = vmatprep.subr.mxu0 0.0
    %1703 = vmatpush1.msra.mxu0 0.0
    %1704 = vmatprep.subr.mxu0 0.0
    %1705 = vmatpush1.msra.mxu0 0.0
    %1706 = vmatprep.subr.mxu0 0.0
    %1707 = vmatpush1.msra.mxu0 0.0
    %1708 = vmatprep.subr.mxu0 0.0
    %1709 = vmatpush1.msra.mxu0 0.0
    %1710 = vmatprep.subr.mxu0 0.0
    %1711 = vmatpush1.msra.mxu0 0.0
    %1712 = vmatprep.subr.mxu0 0.0
    %1713 = vmatpush1.msra.mxu0 0.0
    %1714 = vmatprep.subr.mxu0 0.0
    %1715 = vmatpush1.msra.mxu0 0.0
    %1716 = vmatprep.subr.mxu0 0.0
    %1717 = vmatpush1.msra.mxu0 0.0
    %1718 = vmatprep.mubr.f32.mxu0 0.0
    %1719 = vmatmul.mubr.f32.gmra.mrb[0].mxu0 %v1444
    %v1720 = vpop.f32.mrb[0].mxu0
    %v1721 = vadd.f32 %v1342, %v1720
    %v1722 = vpop.f32.mrb[0].mxu0
    %1723 = vdwg.mxu0
    %v1724 = vxor.u32 %v1721, 2147483648
    %v1725 = vmul.f32 %v1724, 1.442695
    %v1726 = vpow.pop %v1725
    %v1727 = vadd.f32 %v1726, 1.0
    %v1728 = vrcp.pop %v1727
    %v1729 = vmul.f32 1.0, %v1728
    %v1730 = vtanh.pop %v1721
    %v1731 = vmul.f32 %v1729, %v1434
    %1733 = vrot.lane.b32.xlu0 %v1730, 64
    %v1734 = vpop.permute.xlu0 %1733
    %v1736 = vmul.f32 %v1729, %v1734
    %1738 = vrot.lane.b32.xlu0 %v1736, 32
    %v1739 = vpop.permute.xlu0 %1738
    %v1741 = vadd.f32 %v1731, %v1739
    %v1742 = vtanh.pop %v1741
    %1744 = vrot.lane.b32.xlu0 %v1742, 64
    %v1745 = vpop.permute.xlu0 %1744
    %v1747 = vmul.f32 %v1729, %v1745
    %1749 = vrot.lane.b32.xlu0 %v1747, 32
    %v1750 = vpop.permute.xlu0 %1749
    %v1751 = vsel %vm46, %v1750, 0
    %1753 = vmatprep.subr.mxu0 0.0
    %1754 = vmatpush1.msra.mxu0 %v31
    %1755 = vmatprep.subr.mxu0 0.0
    %1756 = vmatpush1.msra.mxu0 %v32
    %1757 = vmatprep.subr.mxu0 0.0
    %1758 = vmatpush1.msra.mxu0 %v33
    %1759 = vmatprep.subr.mxu0 0.0
    %1760 = vmatpush1.msra.mxu0 %v34
    %1761 = vmatprep.subr.mxu0 0.0
    %1762 = vmatpush1.msra.mxu0 0.0
    %1763 = vmatprep.subr.mxu0 0.0
    %1764 = vmatpush1.msra.mxu0 0.0
    %1765 = vmatprep.subr.mxu0 0.0
    %1766 = vmatpush1.msra.mxu0 0.0
    %1767 = vmatprep.subr.mxu0 0.0
    %1768 = vmatpush1.msra.mxu0 0.0
    %1769 = vmatprep.subr.mxu0 0.0
    %1770 = vmatpush1.msra.mxu0 0.0
    %1771 = vmatprep.subr.mxu0 0.0
    %1772 = vmatpush1.msra.mxu0 0.0
    %1773 = vmatprep.subr.mxu0 0.0
    %1774 = vmatpush1.msra.mxu0 0.0
    %1775 = vmatprep.subr.mxu0 0.0
    %1776 = vmatpush1.msra.mxu0 0.0
    %1777 = vmatprep.subr.mxu0 0.0
    %1778 = vmatpush1.msra.mxu0 0.0
    %1779 = vmatprep.subr.mxu0 0.0
    %1780 = vmatpush1.msra.mxu0 0.0
    %1781 = vmatprep.subr.mxu0 0.0
    %1782 = vmatpush1.msra.mxu0 0.0
    %1783 = vmatprep.subr.mxu0 0.0
    %1784 = vmatpush1.msra.mxu0 0.0
    %1785 = vmatprep.subr.mxu0 0.0
    %1786 = vmatpush1.msra.mxu0 0.0
    %1787 = vmatprep.subr.mxu0 0.0
    %1788 = vmatpush1.msra.mxu0 0.0
    %1789 = vmatprep.subr.mxu0 0.0
    %1790 = vmatpush1.msra.mxu0 0.0
    %1791 = vmatprep.subr.mxu0 0.0
    %1792 = vmatpush1.msra.mxu0 0.0
    %1793 = vmatprep.subr.mxu0 0.0
    %1794 = vmatpush1.msra.mxu0 0.0
    %1795 = vmatprep.subr.mxu0 0.0
    %1796 = vmatpush1.msra.mxu0 0.0
    %1797 = vmatprep.subr.mxu0 0.0
    %1798 = vmatpush1.msra.mxu0 0.0
    %1799 = vmatprep.subr.mxu0 0.0
    %1800 = vmatpush1.msra.mxu0 0.0
    %1801 = vmatprep.subr.mxu0 0.0
    %1802 = vmatpush1.msra.mxu0 0.0
    %1803 = vmatprep.subr.mxu0 0.0
    %1804 = vmatpush1.msra.mxu0 0.0
    %1805 = vmatprep.subr.mxu0 0.0
    %1806 = vmatpush1.msra.mxu0 0.0
    %1807 = vmatprep.subr.mxu0 0.0
    %1808 = vmatpush1.msra.mxu0 0.0
    %1809 = vmatprep.subr.mxu0 0.0
    %1810 = vmatpush1.msra.mxu0 0.0
    %1811 = vmatprep.subr.mxu0 0.0
    %1812 = vmatpush1.msra.mxu0 0.0
    %1813 = vmatprep.subr.mxu0 0.0
    %1814 = vmatpush1.msra.mxu0 0.0
    %1815 = vmatprep.subr.mxu0 0.0
    %1816 = vmatpush1.msra.mxu0 0.0
    %1817 = vmatprep.mubr.f32.mxu0 0.0
    %1818 = vmatmul.mubr.f32.gmra.mrb[0].mxu0 %v1751
    %v1819 = vpop.f32.mrb[0].mxu0
    %v1820 = vadd.f32 0.0, %v1819
    %v1821 = vpop.f32.mrb[0].mxu0
    %1822 = vdwg.mxu0
    %v1825 = vunpack.c.l.s4 1966171168
    %v1826 = vunpack.c.0.s8 %v1825
    %v1827 = vlaneseq
    %v1828 = vshrl.u32 %v1827, 7
    %v1829 = vsub.s32 %v1826, %v1828
    %v1830 = vrot.slane %v1820, %v1829
    %v1831 = vcombine.high %v1830, %v1830
    %v1833 = vunpack.c.l.s4 1966171168
    %v1834 = vunpack.c.0.s8 %v1833
    %v1835 = vlaneseq
    %v1836 = vshrl.u32 %v1835, 7
    %v1837 = vsub.s32 %v1834, %v1836
    %v1838 = vrot.slane %v1830, %v1837
    %v1840 = vunpack.c.l.s4 1966171168
    %v1841 = vunpack.c.0.s8 %v1840
    %v1842 = vlaneseq
    %v1843 = vshrl.u32 %v1842, 7
    %v1844 = vsub.s32 %v1841, %v1843
    %v1845 = vrot.slane %v1831, %v1844
    %v1846 = vlaneseq
    %v1847 = vshrl.u32 %v1846, 7
    %v1848 = vsub.s32 0, %v1847
    %v1849 = vrot.slane %v1838, %v1848
    %v1850 = vlaneseq
    %v1851 = vshrl.u32 %v1850, 7
    %v1852 = vsub.s32 0, %v1851
    %v1853 = vrot.slane %v1845, %v1852
    %v1856 = vadd.f32 %v1324, %v1849
    %v1857 = vadd.f32 %v1329, %v1853
    %v1858 = vtanh.pop %v1856
    %v1859 = vtanh.pop %v1857
    %v1860 = vmul.f32 %v1858, %v1336
    %v1861 = vmul.f32 %v1859, %v1336
    %v1862 = vsel %vm46, %v1860, 0.0
    %1863 = vadd.xlane.f32.xlu0 %v1862
    %v1864 = vpop.xlane.xlu0 %1863
    %v1865 = vsel %vm46, %v1861, 0.0
    %1866 = vadd.xlane.f32.xlu0 %v1865
    %v1867 = vpop.xlane.xlu0 %1866
    %v1870 = vlaneseq
    %v1871 = vshrl.u32 %v1870, 7
    %v1872 = vsub.s32 %v1564, %v1871
    %v1873 = vrot.slane %v1864, %v1872
    %v1874 = vlaneseq
    %v1875 = vshrl.u32 %v1874, 7
    %v1876 = vsub.s32 %v1564, %v1875
    %v1877 = vrot.slane %v1867, %v1876
    %v1878 = vsel %vm1573, %v1877, %v1873
    %v1880 = vsel %vm1576, %v1878, -inf
    %1881 = vmax.xlane.f32.xlu0 %v1880
    %v1882 = vpop.xlane.xlu0 %1881
    %v1884 = vlaneseq
    %v1885 = vshrl.u32 %v1884, 7
    %v1886 = vsub.s32 0, %v1885
    %v1887 = vrot.slane %v1882, %v1886
    %v1888 = vlaneseq
    %v1889 = vshrl.u32 %v1888, 7
    %v1890 = vsub.s32 1, %v1889
    %v1891 = vrot.slane %v1882, %v1890
    %v1894 = vsub.f32 %v1864, %v1887
    %v1895 = vsub.f32 %v1867, %v1891
    %v1896 = vmul.f32 %v1894, 1.442695
    %v1897 = vpow.pop %v1896
    %v1898 = vmul.f32 %v1895, 1.442695
    %v1899 = vpow.pop %v1898
    %1902 = vset.pattern.permute.xlu0 0
    %1903 = vperm.xlu0 %1902, %v1897
    %v1904 = vpop.permute.xlu0 %1903
    %1905 = vset.pattern.permute.xlu0 0
    %1906 = vperm.xlu0 %1905, %v1899
    %v1907 = vpop.permute.xlu0 %1906
    %v1908 = vlaneseq
    %v1909 = vshrl.u32 %v1908, 7
    %v1910 = vsub.s32 %v1564, %v1909
    %v1911 = vrot.slane %v1904, %v1910
    %v1912 = vlaneseq
    %v1913 = vshrl.u32 %v1912, 7
    %v1914 = vsub.s32 %v1564, %v1913
    %v1915 = vrot.slane %v1907, %v1914
    %v1916 = vsel %vm1573, %v1915, %v1911
    %v1918 = vsel %vm1576, %v1916, 0.0
    %1919 = vadd.xlane.f32.xlu0 %v1918
    %v1920 = vpop.xlane.xlu0 %1919
    %v1921 = vlog2.pop %v1920
    %v1922 = vmul.f32 %v1921, 0.6931472
    %v1924 = vlaneseq
    %v1925 = vshrl.u32 %v1924, 7
    %v1926 = vsub.s32 0, %v1925
    %v1927 = vrot.slane %v1922, %v1926
    %v1928 = vlaneseq
    %v1929 = vshrl.u32 %v1928, 7
    %v1930 = vsub.s32 1, %v1929
    %v1931 = vrot.slane %v1922, %v1930
    %v1934 = vsub.f32 %v1894, %v1927
    %v1935 = vsub.f32 %v1895, %v1931
    %1938 = vset.pattern.permute.xlu0 0
    %1939 = vperm.xlu0 %1938, %v1934
    %v1940 = vpop.permute.xlu0 %1939
    %1941 = vset.pattern.permute.xlu0 0
    %1942 = vperm.xlu0 %1941, %v1935
    %v1943 = vpop.permute.xlu0 %1942
    %v1944 = vlaneseq
    %v1945 = vshrl.u32 %v1944, 7
    %v1946 = vsub.s32 %v1564, %v1945
    %v1947 = vrot.slane %v1940, %v1946
    %v1948 = vlaneseq
    %v1949 = vshrl.u32 %v1948, 7
    %v1950 = vsub.s32 %v1564, %v1949
    %v1951 = vrot.slane %v1943, %v1950
    %1954 = vst.msk [vmem:[#allocation4 + $0x1] sm:$0x1] %vm1651, %v1947
    %1955 = vst.msk [vmem:[#allocation4 + $0x9] sm:$0x1] %vm1651, %v1951
    %1956 = vmatprep.subr.mxu0 0.0
    %1957 = vmatpush1.msra.mxu0 %v23
    %1958 = vmatprep.subr.mxu0 0.0
    %1959 = vmatpush1.msra.mxu0 %v24
    %1960 = vmatprep.subr.mxu0 0.0
    %1961 = vmatpush1.msra.mxu0 %v25
    %1962 = vmatprep.subr.mxu0 0.0
    %1963 = vmatpush1.msra.mxu0 %v26
    %1964 = vmatprep.subr.mxu0 0.0
    %1965 = vmatpush1.msra.mxu0 0.0
    %1966 = vmatprep.subr.mxu0 0.0
    %1967 = vmatpush1.msra.mxu0 0.0
    %1968 = vmatprep.subr.mxu0 0.0
    %1969 = vmatpush1.msra.mxu0 0.0
    %1970 = vmatprep.subr.mxu0 0.0
    %1971 = vmatpush1.msra.mxu0 0.0
    %1972 = vmatprep.subr.mxu0 0.0
    %1973 = vmatpush1.msra.mxu0 0.0
    %1974 = vmatprep.subr.mxu0 0.0
    %1975 = vmatpush1.msra.mxu0 0.0
    %1976 = vmatprep.subr.mxu0 0.0
    %1977 = vmatpush1.msra.mxu0 0.0
    %1978 = vmatprep.subr.mxu0 0.0
    %1979 = vmatpush1.msra.mxu0 0.0
    %1980 = vmatprep.subr.mxu0 0.0
    %1981 = vmatpush1.msra.mxu0 0.0
    %1982 = vmatprep.subr.mxu0 0.0
    %1983 = vmatpush1.msra.mxu0 0.0
    %1984 = vmatprep.subr.mxu0 0.0
    %1985 = vmatpush1.msra.mxu0 0.0
    %1986 = vmatprep.subr.mxu0 0.0
    %1987 = vmatpush1.msra.mxu0 0.0
    %1988 = vmatprep.subr.mxu0 0.0
    %1989 = vmatpush1.msra.mxu0 0.0
    %1990 = vmatprep.subr.mxu0 0.0
    %1991 = vmatpush1.msra.mxu0 0.0
    %1992 = vmatprep.subr.mxu0 0.0
    %1993 = vmatpush1.msra.mxu0 0.0
    %1994 = vmatprep.subr.mxu0 0.0
    %1995 = vmatpush1.msra.mxu0 0.0
    %1996 = vmatprep.subr.mxu0 0.0
    %1997 = vmatpush1.msra.mxu0 0.0
    %1998 = vmatprep.subr.mxu0 0.0
    %1999 = vmatpush1.msra.mxu0 0.0
    %2000 = vmatprep.subr.mxu0 0.0
    %2001 = vmatpush1.msra.mxu0 0.0
    %2002 = vmatprep.subr.mxu0 0.0
    %2003 = vmatpush1.msra.mxu0 0.0
    %2004 = vmatprep.subr.mxu0 0.0
    %2005 = vmatpush1.msra.mxu0 0.0
    %2006 = vmatprep.subr.mxu0 0.0
    %2007 = vmatpush1.msra.mxu0 0.0
    %2008 = vmatprep.subr.mxu0 0.0
    %2009 = vmatpush1.msra.mxu0 0.0
    %2010 = vmatprep.subr.mxu0 0.0
    %2011 = vmatpush1.msra.mxu0 0.0
    %2012 = vmatprep.subr.mxu0 0.0
    %2013 = vmatpush1.msra.mxu0 0.0
    %2014 = vmatprep.subr.mxu0 0.0
    %2015 = vmatpush1.msra.mxu0 0.0
    %2016 = vmatprep.subr.mxu0 0.0
    %2017 = vmatpush1.msra.mxu0 0.0
    %2018 = vmatprep.subr.mxu0 0.0
    %2019 = vmatpush1.msra.mxu0 0.0
    %2020 = vmatprep.mubr.f32.mxu0 0.0
    %2021 = vmatmul.mubr.f32.gmra.mrb[0].mxu0 %v1751
    %v2022 = vpop.f32.mrb[0].mxu0
    %v2023 = vadd.f32 %v1342, %v2022
    %v2024 = vpop.f32.mrb[0].mxu0
    %2025 = vdwg.mxu0
    %v2026 = vxor.u32 %v2023, 2147483648
    %v2027 = vmul.f32 %v2026, 1.442695
    %v2028 = vpow.pop %v2027
    %v2029 = vadd.f32 %v2028, 1.0
    %v2030 = vrcp.pop %v2029
    %v2031 = vmul.f32 1.0, %v2030
    %v2032 = vtanh.pop %v2023
    %v2033 = vmul.f32 %v2031, %v1741
    %2035 = vrot.lane.b32.xlu0 %v2032, 64
    %v2036 = vpop.permute.xlu0 %2035
    %v2038 = vmul.f32 %v2031, %v2036
    %2040 = vrot.lane.b32.xlu0 %v2038, 32
    %v2041 = vpop.permute.xlu0 %2040
    %v2043 = vadd.f32 %v2033, %v2041
    %v2044 = vtanh.pop %v2043
    %2046 = vrot.lane.b32.xlu0 %v2044, 64
    %v2047 = vpop.permute.xlu0 %2046
    %v2049 = vmul.f32 %v2031, %v2047
    %2051 = vrot.lane.b32.xlu0 %v2049, 32
    %v2052 = vpop.permute.xlu0 %2051
    %v2053 = vsel %vm46, %v2052, 0
    %2055 = vmatprep.subr.mxu0 0.0
    %2056 = vmatpush1.msra.mxu0 %v31
    %2057 = vmatprep.subr.mxu0 0.0
    %2058 = vmatpush1.msra.mxu0 %v32
    %2059 = vmatprep.subr.mxu0 0.0
    %2060 = vmatpush1.msra.mxu0 %v33
    %2061 = vmatprep.subr.mxu0 0.0
    %2062 = vmatpush1.msra.mxu0 %v34
    %2063 = vmatprep.subr.mxu0 0.0
    %2064 = vmatpush1.msra.mxu0 0.0
    %2065 = vmatprep.subr.mxu0 0.0
    %2066 = vmatpush1.msra.mxu0 0.0
    %2067 = vmatprep.subr.mxu0 0.0
    %2068 = vmatpush1.msra.mxu0 0.0
    %2069 = vmatprep.subr.mxu0 0.0
    %2070 = vmatpush1.msra.mxu0 0.0
    %2071 = vmatprep.subr.mxu0 0.0
    %2072 = vmatpush1.msra.mxu0 0.0
    %2073 = vmatprep.subr.mxu0 0.0
    %2074 = vmatpush1.msra.mxu0 0.0
    %2075 = vmatprep.subr.mxu0 0.0
    %2076 = vmatpush1.msra.mxu0 0.0
    %2077 = vmatprep.subr.mxu0 0.0
    %2078 = vmatpush1.msra.mxu0 0.0
    %2079 = vmatprep.subr.mxu0 0.0
    %2080 = vmatpush1.msra.mxu0 0.0
    %2081 = vmatprep.subr.mxu0 0.0
    %2082 = vmatpush1.msra.mxu0 0.0
    %2083 = vmatprep.subr.mxu0 0.0
    %2084 = vmatpush1.msra.mxu0 0.0
    %2085 = vmatprep.subr.mxu0 0.0
    %2086 = vmatpush1.msra.mxu0 0.0
    %2087 = vmatprep.subr.mxu0 0.0
    %2088 = vmatpush1.msra.mxu0 0.0
    %2089 = vmatprep.subr.mxu0 0.0
    %2090 = vmatpush1.msra.mxu0 0.0
    %2091 = vmatprep.subr.mxu0 0.0
    %2092 = vmatpush1.msra.mxu0 0.0
    %2093 = vmatprep.subr.mxu0 0.0
    %2094 = vmatpush1.msra.mxu0 0.0
    %2095 = vmatprep.subr.mxu0 0.0
    %2096 = vmatpush1.msra.mxu0 0.0
    %2097 = vmatprep.subr.mxu0 0.0
    %2098 = vmatpush1.msra.mxu0 0.0
    %2099 = vmatprep.subr.mxu0 0.0
    %2100 = vmatpush1.msra.mxu0 0.0
    %2101 = vmatprep.subr.mxu0 0.0
    %2102 = vmatpush1.msra.mxu0 0.0
    %2103 = vmatprep.subr.mxu0 0.0
    %2104 = vmatpush1.msra.mxu0 0.0
    %2105 = vmatprep.subr.mxu0 0.0
    %2106 = vmatpush1.msra.mxu0 0.0
    %2107 = vmatprep.subr.mxu0 0.0
    %2108 = vmatpush1.msra.mxu0 0.0
    %2109 = vmatprep.subr.mxu0 0.0
    %2110 = vmatpush1.msra.mxu0 0.0
    %2111 = vmatprep.subr.mxu0 0.0
    %2112 = vmatpush1.msra.mxu0 0.0
    %2113 = vmatprep.subr.mxu0 0.0
    %2114 = vmatpush1.msra.mxu0 0.0
    %2115 = vmatprep.subr.mxu0 0.0
    %2116 = vmatpush1.msra.mxu0 0.0
    %2117 = vmatprep.subr.mxu0 0.0
    %2118 = vmatpush1.msra.mxu0 0.0
    %2119 = vmatprep.mubr.f32.mxu0 0.0
    %2120 = vmatmul.mubr.f32.gmra.mrb[0].mxu0 %v2053
    %v2121 = vpop.f32.mrb[0].mxu0
    %v2122 = vadd.f32 0.0, %v2121
    %v2123 = vpop.f32.mrb[0].mxu0
    %2124 = vdwg.mxu0
    %v2127 = vunpack.c.l.s4 1966171168
    %v2128 = vunpack.c.0.s8 %v2127
    %v2129 = vlaneseq
    %v2130 = vshrl.u32 %v2129, 7
    %v2131 = vsub.s32 %v2128, %v2130
    %v2132 = vrot.slane %v2122, %v2131
    %v2133 = vcombine.high %v2132, %v2132
    %v2135 = vunpack.c.l.s4 1966171168
    %v2136 = vunpack.c.0.s8 %v2135
    %v2137 = vlaneseq
    %v2138 = vshrl.u32 %v2137, 7
    %v2139 = vsub.s32 %v2136, %v2138
    %v2140 = vrot.slane %v2132, %v2139
    %v2142 = vunpack.c.l.s4 1966171168
    %v2143 = vunpack.c.0.s8 %v2142
    %v2144 = vlaneseq
    %v2145 = vshrl.u32 %v2144, 7
    %v2146 = vsub.s32 %v2143, %v2145
    %v2147 = vrot.slane %v2133, %v2146
    %v2148 = vlaneseq
    %v2149 = vshrl.u32 %v2148, 7
    %v2150 = vsub.s32 0, %v2149
    %v2151 = vrot.slane %v2140, %v2150
    %v2152 = vlaneseq
    %v2153 = vshrl.u32 %v2152, 7
    %v2154 = vsub.s32 0, %v2153
    %v2155 = vrot.slane %v2147, %v2154
    %v2158 = vadd.f32 %v1324, %v2151
    %v2159 = vadd.f32 %v1329, %v2155
    %v2160 = vtanh.pop %v2158
    %v2161 = vtanh.pop %v2159
    %v2162 = vmul.f32 %v2160, %v1336
    %v2163 = vmul.f32 %v2161, %v1336
    %v2164 = vsel %vm46, %v2162, 0.0
    %2165 = vadd.xlane.f32.xlu0 %v2164
    %v2166 = vpop.xlane.xlu0 %2165
    %v2167 = vsel %vm46, %v2163, 0.0
    %2168 = vadd.xlane.f32.xlu0 %v2167
    %v2169 = vpop.xlane.xlu0 %2168
    %v2172 = vlaneseq
    %v2173 = vshrl.u32 %v2172, 7
    %v2174 = vsub.s32 %v1564, %v2173
    %v2175 = vrot.slane %v2166, %v2174
    %v2176 = vlaneseq
    %v2177 = vshrl.u32 %v2176, 7
    %v2178 = vsub.s32 %v1564, %v2177
    %v2179 = vrot.slane %v2169, %v2178
    %v2180 = vsel %vm1573, %v2179, %v2175
    %v2182 = vsel %vm1576, %v2180, -inf
    %2183 = vmax.xlane.f32.xlu0 %v2182
    %v2184 = vpop.xlane.xlu0 %2183
    %v2186 = vlaneseq
    %v2187 = vshrl.u32 %v2186, 7
    %v2188 = vsub.s32 0, %v2187
    %v2189 = vrot.slane %v2184, %v2188
    %v2190 = vlaneseq
    %v2191 = vshrl.u32 %v2190, 7
    %v2192 = vsub.s32 1, %v2191
    %v2193 = vrot.slane %v2184, %v2192
    %v2196 = vsub.f32 %v2166, %v2189
    %v2197 = vsub.f32 %v2169, %v2193
    %v2198 = vmul.f32 %v2196, 1.442695
    %v2199 = vpow.pop %v2198
    %v2200 = vmul.f32 %v2197, 1.442695
    %v2201 = vpow.pop %v2200
    %2204 = vset.pattern.permute.xlu0 0
    %2205 = vperm.xlu0 %2204, %v2199
    %v2206 = vpop.permute.xlu0 %2205
    %2207 = vset.pattern.permute.xlu0 0
    %2208 = vperm.xlu0 %2207, %v2201
    %v2209 = vpop.permute.xlu0 %2208
    %v2210 = vlaneseq
    %v2211 = vshrl.u32 %v2210, 7
    %v2212 = vsub.s32 %v1564, %v2211
    %v2213 = vrot.slane %v2206, %v2212
    %v2214 = vlaneseq
    %v2215 = vshrl.u32 %v2214, 7
    %v2216 = vsub.s32 %v1564, %v2215
    %v2217 = vrot.slane %v2209, %v2216
    %v2218 = vsel %vm1573, %v2217, %v2213
    %v2220 = vsel %vm1576, %v2218, 0.0
    %2221 = vadd.xlane.f32.xlu0 %v2220
    %v2222 = vpop.xlane.xlu0 %2221
    %v2223 = vlog2.pop %v2222
    %v2224 = vmul.f32 %v2223, 0.6931472
    %v2226 = vlaneseq
    %v2227 = vshrl.u32 %v2226, 7
    %v2228 = vsub.s32 0, %v2227
    %v2229 = vrot.slane %v2224, %v2228
    %v2230 = vlaneseq
    %v2231 = vshrl.u32 %v2230, 7
    %v2232 = vsub.s32 1, %v2231
    %v2233 = vrot.slane %v2224, %v2232
    %v2236 = vsub.f32 %v2196, %v2229
    %v2237 = vsub.f32 %v2197, %v2233
    %2240 = vset.pattern.permute.xlu0 0
    %2241 = vperm.xlu0 %2240, %v2236
    %v2242 = vpop.permute.xlu0 %2241
    %2243 = vset.pattern.permute.xlu0 0
    %2244 = vperm.xlu0 %2243, %v2237
    %v2245 = vpop.permute.xlu0 %2244
    %v2246 = vlaneseq
    %v2247 = vshrl.u32 %v2246, 7
    %v2248 = vsub.s32 %v1564, %v2247
    %v2249 = vrot.slane %v2242, %v2248
    %v2250 = vlaneseq
    %v2251 = vshrl.u32 %v2250, 7
    %v2252 = vsub.s32 %v1564, %v2251
    %v2253 = vrot.slane %v2245, %v2252
    %2256 = vst.msk [vmem:[#allocation4 + $0x2] sm:$0x1] %vm1651, %v2249
    %2257 = vst.msk [vmem:[#allocation4 + $0xa] sm:$0x1] %vm1651, %v2253
    %2258 = vmatprep.subr.mxu0 0.0
    %2259 = vmatpush1.msra.mxu0 %v23
    %2260 = vmatprep.subr.mxu0 0.0
    %2261 = vmatpush1.msra.mxu0 %v24
    %2262 = vmatprep.subr.mxu0 0.0
    %2263 = vmatpush1.msra.mxu0 %v25
    %2264 = vmatprep.subr.mxu0 0.0
    %2265 = vmatpush1.msra.mxu0 %v26
    %2266 = vmatprep.subr.mxu0 0.0
    %2267 = vmatpush1.msra.mxu0 0.0
    %2268 = vmatprep.subr.mxu0 0.0
    %2269 = vmatpush1.msra.mxu0 0.0
    %2270 = vmatprep.subr.mxu0 0.0
    %2271 = vmatpush1.msra.mxu0 0.0
    %2272 = vmatprep.subr.mxu0 0.0
    %2273 = vmatpush1.msra.mxu0 0.0
    %2274 = vmatprep.subr.mxu0 0.0
    %2275 = vmatpush1.msra.mxu0 0.0
    %2276 = vmatprep.subr.mxu0 0.0
    %2277 = vmatpush1.msra.mxu0 0.0
    %2278 = vmatprep.subr.mxu0 0.0
    %2279 = vmatpush1.msra.mxu0 0.0
    %2280 = vmatprep.subr.mxu0 0.0
    %2281 = vmatpush1.msra.mxu0 0.0
    %2282 = vmatprep.subr.mxu0 0.0
    %2283 = vmatpush1.msra.mxu0 0.0
    %2284 = vmatprep.subr.mxu0 0.0
    %2285 = vmatpush1.msra.mxu0 0.0
    %2286 = vmatprep.subr.mxu0 0.0
    %2287 = vmatpush1.msra.mxu0 0.0
    %2288 = vmatprep.subr.mxu0 0.0
    %2289 = vmatpush1.msra.mxu0 0.0
    %2290 = vmatprep.subr.mxu0 0.0
    %2291 = vmatpush1.msra.mxu0 0.0
    %2292 = vmatprep.subr.mxu0 0.0
    %2293 = vmatpush1.msra.mxu0 0.0
    %2294 = vmatprep.subr.mxu0 0.0
    %2295 = vmatpush1.msra.mxu0 0.0
    %2296 = vmatprep.subr.mxu0 0.0
    %2297 = vmatpush1.msra.mxu0 0.0
    %2298 = vmatprep.subr.mxu0 0.0
    %2299 = vmatpush1.msra.mxu0 0.0
    %2300 = vmatprep.subr.mxu0 0.0
    %2301 = vmatpush1.msra.mxu0 0.0
    %2302 = vmatprep.subr.mxu0 0.0
    %2303 = vmatpush1.msra.mxu0 0.0
    %2304 = vmatprep.subr.mxu0 0.0
    %2305 = vmatpush1.msra.mxu0 0.0
    %2306 = vmatprep.subr.mxu0 0.0
    %2307 = vmatpush1.msra.mxu0 0.0
    %2308 = vmatprep.subr.mxu0 0.0
    %2309 = vmatpush1.msra.mxu0 0.0
    %2310 = vmatprep.subr.mxu0 0.0
    %2311 = vmatpush1.msra.mxu0 0.0
    %2312 = vmatprep.subr.mxu0 0.0
    %2313 = vmatpush1.msra.mxu0 0.0
    %2314 = vmatprep.subr.mxu0 0.0
    %2315 = vmatpush1.msra.mxu0 0.0
    %2316 = vmatprep.subr.mxu0 0.0
    %2317 = vmatpush1.msra.mxu0 0.0
    %2318 = vmatprep.subr.mxu0 0.0
    %2319 = vmatpush1.msra.mxu0 0.0
    %2320 = vmatprep.subr.mxu0 0.0
    %2321 = vmatpush1.msra.mxu0 0.0
    %2322 = vmatprep.mubr.f32.mxu0 0.0
    %2323 = vmatmul.mubr.f32.gmra.mrb[0].mxu0 %v2053
    %v2324 = vpop.f32.mrb[0].mxu0
    %v2325 = vadd.f32 %v1342, %v2324
    %v2326 = vpop.f32.mrb[0].mxu0
    %2327 = vdwg.mxu0
    %v2328 = vxor.u32 %v2325, 2147483648
    %v2329 = vmul.f32 %v2328, 1.442695
    %v2330 = vpow.pop %v2329
    %v2331 = vadd.f32 %v2330, 1.0
    %v2332 = vrcp.pop %v2331
    %v2333 = vmul.f32 1.0, %v2332
    %v2334 = vtanh.pop %v2325
    %v2335 = vmul.f32 %v2333, %v2043
    %2337 = vrot.lane.b32.xlu0 %v2334, 64
    %v2338 = vpop.permute.xlu0 %2337
    %v2340 = vmul.f32 %v2333, %v2338
    %2342 = vrot.lane.b32.xlu0 %v2340, 32
    %v2343 = vpop.permute.xlu0 %2342
    %v2345 = vadd.f32 %v2335, %v2343
    %v2346 = vtanh.pop %v2345
    %2348 = vrot.lane.b32.xlu0 %v2346, 64
    %v2349 = vpop.permute.xlu0 %2348
    %v2351 = vmul.f32 %v2333, %v2349
    %2353 = vrot.lane.b32.xlu0 %v2351, 32
    %v2354 = vpop.permute.xlu0 %2353
    %v2355 = vsel %vm46, %v2354, 0
    %2357 = vmatprep.subr.mxu0 0.0
    %2358 = vmatpush1.msra.mxu0 %v31
    %2359 = vmatprep.subr.mxu0 0.0
    %2360 = vmatpush1.msra.mxu0 %v32
    %2361 = vmatprep.subr.mxu0 0.0
    %2362 = vmatpush1.msra.mxu0 %v33
    %2363 = vmatprep.subr.mxu0 0.0
    %2364 = vmatpush1.msra.mxu0 %v34
    %2365 = vmatprep.subr.mxu0 0.0
    %2366 = vmatpush1.msra.mxu0 0.0
    %2367 = vmatprep.subr.mxu0 0.0
    %2368 = vmatpush1.msra.mxu0 0.0
    %2369 = vmatprep.subr.mxu0 0.0
    %2370 = vmatpush1.msra.mxu0 0.0
    %2371 = vmatprep.subr.mxu0 0.0
    %2372 = vmatpush1.msra.mxu0 0.0
    %2373 = vmatprep.subr.mxu0 0.0
    %2374 = vmatpush1.msra.mxu0 0.0
    %2375 = vmatprep.subr.mxu0 0.0
    %2376 = vmatpush1.msra.mxu0 0.0
    %2377 = vmatprep.subr.mxu0 0.0
    %2378 = vmatpush1.msra.mxu0 0.0
    %2379 = vmatprep.subr.mxu0 0.0
    %2380 = vmatpush1.msra.mxu0 0.0
    %2381 = vmatprep.subr.mxu0 0.0
    %2382 = vmatpush1.msra.mxu0 0.0
    %2383 = vmatprep.subr.mxu0 0.0
    %2384 = vmatpush1.msra.mxu0 0.0
    %2385 = vmatprep.subr.mxu0 0.0
    %2386 = vmatpush1.msra.mxu0 0.0
    %2387 = vmatprep.subr.mxu0 0.0
    %2388 = vmatpush1.msra.mxu0 0.0
    %2389 = vmatprep.subr.mxu0 0.0
    %2390 = vmatpush1.msra.mxu0 0.0
    %2391 = vmatprep.subr.mxu0 0.0
    %2392 = vmatpush1.msra.mxu0 0.0
    %2393 = vmatprep.subr.mxu0 0.0
    %2394 = vmatpush1.msra.mxu0 0.0
    %2395 = vmatprep.subr.mxu0 0.0
    %2396 = vmatpush1.msra.mxu0 0.0
    %2397 = vmatprep.subr.mxu0 0.0
    %2398 = vmatpush1.msra.mxu0 0.0
    %2399 = vmatprep.subr.mxu0 0.0
    %2400 = vmatpush1.msra.mxu0 0.0
    %2401 = vmatprep.subr.mxu0 0.0
    %2402 = vmatpush1.msra.mxu0 0.0
    %2403 = vmatprep.subr.mxu0 0.0
    %2404 = vmatpush1.msra.mxu0 0.0
    %2405 = vmatprep.subr.mxu0 0.0
    %2406 = vmatpush1.msra.mxu0 0.0
    %2407 = vmatprep.subr.mxu0 0.0
    %2408 = vmatpush1.msra.mxu0 0.0
    %2409 = vmatprep.subr.mxu0 0.0
    %2410 = vmatpush1.msra.mxu0 0.0
    %2411 = vmatprep.subr.mxu0 0.0
    %2412 = vmatpush1.msra.mxu0 0.0
    %2413 = vmatprep.subr.mxu0 0.0
    %2414 = vmatpush1.msra.mxu0 0.0
    %2415 = vmatprep.subr.mxu0 0.0
    %2416 = vmatpush1.msra.mxu0 0.0
    %2417 = vmatprep.subr.mxu0 0.0
    %2418 = vmatpush1.msra.mxu0 0.0
    %2419 = vmatprep.subr.mxu0 0.0
    %2420 = vmatpush1.msra.mxu0 0.0
    %2421 = vmatprep.mubr.f32.mxu0 0.0
    %2422 = vmatmul.mubr.f32.gmra.mrb[0].mxu0 %v2355
    %v2423 = vpop.f32.mrb[0].mxu0
    %v2424 = vadd.f32 0.0, %v2423
    %v2425 = vpop.f32.mrb[0].mxu0
    %2426 = vdwg.mxu0
    %v2429 = vunpack.c.l.s4 1966171168
    %v2430 = vunpack.c.0.s8 %v2429
    %v2431 = vlaneseq
    %v2432 = vshrl.u32 %v2431, 7
    %v2433 = vsub.s32 %v2430, %v2432
    %v2434 = vrot.slane %v2424, %v2433
    %v2435 = vcombine.high %v2434, %v2434
    %v2437 = vunpack.c.l.s4 1966171168
    %v2438 = vunpack.c.0.s8 %v2437
    %v2439 = vlaneseq
    %v2440 = vshrl.u32 %v2439, 7
    %v2441 = vsub.s32 %v2438, %v2440
    %v2442 = vrot.slane %v2434, %v2441
    %v2444 = vunpack.c.l.s4 1966171168
    %v2445 = vunpack.c.0.s8 %v2444
    %v2446 = vlaneseq
    %v2447 = vshrl.u32 %v2446, 7
    %v2448 = vsub.s32 %v2445, %v2447
    %v2449 = vrot.slane %v2435, %v2448
    %v2450 = vlaneseq
    %v2451 = vshrl.u32 %v2450, 7
    %v2452 = vsub.s32 0, %v2451
    %v2453 = vrot.slane %v2442, %v2452
    %v2454 = vlaneseq
    %v2455 = vshrl.u32 %v2454, 7
    %v2456 = vsub.s32 0, %v2455
    %v2457 = vrot.slane %v2449, %v2456
    %v2460 = vadd.f32 %v1324, %v2453
    %v2461 = vadd.f32 %v1329, %v2457
    %v2462 = vtanh.pop %v2460
    %v2463 = vtanh.pop %v2461
    %v2464 = vmul.f32 %v2462, %v1336
    %v2465 = vmul.f32 %v2463, %v1336
    %v2466 = vsel %vm46, %v2464, 0.0
    %2467 = vadd.xlane.f32.xlu0 %v2466
    %v2468 = vpop.xlane.xlu0 %2467
    %v2469 = vsel %vm46, %v2465, 0.0
    %2470 = vadd.xlane.f32.xlu0 %v2469
    %v2471 = vpop.xlane.xlu0 %2470
    %v2474 = vlaneseq
    %v2475 = vshrl.u32 %v2474, 7
    %v2476 = vsub.s32 %v1564, %v2475
    %v2477 = vrot.slane %v2468, %v2476
    %v2478 = vlaneseq
    %v2479 = vshrl.u32 %v2478, 7
    %v2480 = vsub.s32 %v1564, %v2479
    %v2481 = vrot.slane %v2471, %v2480
    %v2482 = vsel %vm1573, %v2481, %v2477
    %v2484 = vsel %vm1576, %v2482, -inf
    %2485 = vmax.xlane.f32.xlu0 %v2484
    %v2486 = vpop.xlane.xlu0 %2485
    %v2488 = vlaneseq
    %v2489 = vshrl.u32 %v2488, 7
    %v2490 = vsub.s32 0, %v2489
    %v2491 = vrot.slane %v2486, %v2490
    %v2492 = vlaneseq
    %v2493 = vshrl.u32 %v2492, 7
    %v2494 = vsub.s32 1, %v2493
    %v2495 = vrot.slane %v2486, %v2494
    %v2498 = vsub.f32 %v2468, %v2491
    %v2499 = vsub.f32 %v2471, %v2495
    %v2500 = vmul.f32 %v2498, 1.442695
    %v2501 = vpow.pop %v2500
    %v2502 = vmul.f32 %v2499, 1.442695
    %v2503 = vpow.pop %v2502
    %2506 = vset.pattern.permute.xlu0 0
    %2507 = vperm.xlu0 %2506, %v2501
    %v2508 = vpop.permute.xlu0 %2507
    %2509 = vset.pattern.permute.xlu0 0
    %2510 = vperm.xlu0 %2509, %v2503
    %v2511 = vpop.permute.xlu0 %2510
    %v2512 = vlaneseq
    %v2513 = vshrl.u32 %v2512, 7
    %v2514 = vsub.s32 %v1564, %v2513
    %v2515 = vrot.slane %v2508, %v2514
    %v2516 = vlaneseq
    %v2517 = vshrl.u32 %v2516, 7
    %v2518 = vsub.s32 %v1564, %v2517
    %v2519 = vrot.slane %v2511, %v2518
    %v2520 = vsel %vm1573, %v2519, %v2515
    %v2522 = vsel %vm1576, %v2520, 0.0
    %2523 = vadd.xlane.f32.xlu0 %v2522
    %v2524 = vpop.xlane.xlu0 %2523
    %v2525 = vlog2.pop %v2524
    %v2526 = vmul.f32 %v2525, 0.6931472
    %v2528 = vlaneseq
    %v2529 = vshrl.u32 %v2528, 7
    %v2530 = vsub.s32 0, %v2529
    %v2531 = vrot.slane %v2526, %v2530
    %v2532 = vlaneseq
    %v2533 = vshrl.u32 %v2532, 7
    %v2534 = vsub.s32 1, %v2533
    %v2535 = vrot.slane %v2526, %v2534
    %v2538 = vsub.f32 %v2498, %v2531
    %v2539 = vsub.f32 %v2499, %v2535
    %2542 = vset.pattern.permute.xlu0 0
    %2543 = vperm.xlu0 %2542, %v2538
    %v2544 = vpop.permute.xlu0 %2543
    %2545 = vset.pattern.permute.xlu0 0
    %2546 = vperm.xlu0 %2545, %v2539
    %v2547 = vpop.permute.xlu0 %2546
    %v2548 = vlaneseq
    %v2549 = vshrl.u32 %v2548, 7
    %v2550 = vsub.s32 %v1564, %v2549
    %v2551 = vrot.slane %v2544, %v2550
    %v2552 = vlaneseq
    %v2553 = vshrl.u32 %v2552, 7
    %v2554 = vsub.s32 %v1564, %v2553
    %v2555 = vrot.slane %v2547, %v2554
    %2558 = vst.msk [vmem:[#allocation4 + $0x3] sm:$0x1] %vm1651, %v2551
    %2559 = vst.msk [vmem:[#allocation4 + $0xb] sm:$0x1] %vm1651, %v2555
    %2560 = vmatprep.subr.mxu0 0.0
    %2561 = vmatpush1.msra.mxu0 %v23
    %2562 = vmatprep.subr.mxu0 0.0
    %2563 = vmatpush1.msra.mxu0 %v24
    %2564 = vmatprep.subr.mxu0 0.0
    %2565 = vmatpush1.msra.mxu0 %v25
    %2566 = vmatprep.subr.mxu0 0.0
    %2567 = vmatpush1.msra.mxu0 %v26
    %2568 = vmatprep.subr.mxu0 0.0
    %2569 = vmatpush1.msra.mxu0 0.0
    %2570 = vmatprep.subr.mxu0 0.0
    %2571 = vmatpush1.msra.mxu0 0.0
    %2572 = vmatprep.subr.mxu0 0.0
    %2573 = vmatpush1.msra.mxu0 0.0
    %2574 = vmatprep.subr.mxu0 0.0
    %2575 = vmatpush1.msra.mxu0 0.0
    %2576 = vmatprep.subr.mxu0 0.0
    %2577 = vmatpush1.msra.mxu0 0.0
    %2578 = vmatprep.subr.mxu0 0.0
    %2579 = vmatpush1.msra.mxu0 0.0
    %2580 = vmatprep.subr.mxu0 0.0
    %2581 = vmatpush1.msra.mxu0 0.0
    %2582 = vmatprep.subr.mxu0 0.0
    %2583 = vmatpush1.msra.mxu0 0.0
    %2584 = vmatprep.subr.mxu0 0.0
    %2585 = vmatpush1.msra.mxu0 0.0
    %2586 = vmatprep.subr.mxu0 0.0
    %2587 = vmatpush1.msra.mxu0 0.0
    %2588 = vmatprep.subr.mxu0 0.0
    %2589 = vmatpush1.msra.mxu0 0.0
    %2590 = vmatprep.subr.mxu0 0.0
    %2591 = vmatpush1.msra.mxu0 0.0
    %2592 = vmatprep.subr.mxu0 0.0
    %2593 = vmatpush1.msra.mxu0 0.0
    %2594 = vmatprep.subr.mxu0 0.0
    %2595 = vmatpush1.msra.mxu0 0.0
    %2596 = vmatprep.subr.mxu0 0.0
    %2597 = vmatpush1.msra.mxu0 0.0
    %2598 = vmatprep.subr.mxu0 0.0
    %2599 = vmatpush1.msra.mxu0 0.0
    %2600 = vmatprep.subr.mxu0 0.0
    %2601 = vmatpush1.msra.mxu0 0.0
    %2602 = vmatprep.subr.mxu0 0.0
    %2603 = vmatpush1.msra.mxu0 0.0
    %2604 = vmatprep.subr.mxu0 0.0
    %2605 = vmatpush1.msra.mxu0 0.0
    %2606 = vmatprep.subr.mxu0 0.0
    %2607 = vmatpush1.msra.mxu0 0.0
    %2608 = vmatprep.subr.mxu0 0.0
    %2609 = vmatpush1.msra.mxu0 0.0
    %2610 = vmatprep.subr.mxu0 0.0
    %2611 = vmatpush1.msra.mxu0 0.0
    %2612 = vmatprep.subr.mxu0 0.0
    %2613 = vmatpush1.msra.mxu0 0.0
    %2614 = vmatprep.subr.mxu0 0.0
    %2615 = vmatpush1.msra.mxu0 0.0
    %2616 = vmatprep.subr.mxu0 0.0
    %2617 = vmatpush1.msra.mxu0 0.0
    %2618 = vmatprep.subr.mxu0 0.0
    %2619 = vmatpush1.msra.mxu0 0.0
    %2620 = vmatprep.subr.mxu0 0.0
    %2621 = vmatpush1.msra.mxu0 0.0
    %2622 = vmatprep.subr.mxu0 0.0
    %2623 = vmatpush1.msra.mxu0 0.0
    %2624 = vmatprep.mubr.f32.mxu0 0.0
    %2625 = vmatmul.mubr.f32.gmra.mrb[0].mxu0 %v2355
    %v2626 = vpop.f32.mrb[0].mxu0
    %v2627 = vadd.f32 %v1342, %v2626
    %v2628 = vpop.f32.mrb[0].mxu0
    %2629 = vdwg.mxu0
    %v2630 = vxor.u32 %v2627, 2147483648
    %v2631 = vmul.f32 %v2630, 1.442695
    %v2632 = vpow.pop %v2631
    %v2633 = vadd.f32 %v2632, 1.0
    %v2634 = vrcp.pop %v2633
    %v2635 = vmul.f32 1.0, %v2634
    %v2636 = vtanh.pop %v2627
    %v2637 = vmul.f32 %v2635, %v2345
    %2639 = vrot.lane.b32.xlu0 %v2636, 64
    %v2640 = vpop.permute.xlu0 %2639
    %v2642 = vmul.f32 %v2635, %v2640
    %2644 = vrot.lane.b32.xlu0 %v2642, 32
    %v2645 = vpop.permute.xlu0 %2644
    %v2647 = vadd.f32 %v2637, %v2645
    %v2648 = vtanh.pop %v2647
    %2650 = vrot.lane.b32.xlu0 %v2648, 64
    %v2651 = vpop.permute.xlu0 %2650
    %v2653 = vmul.f32 %v2635, %v2651
    %2655 = vrot.lane.b32.xlu0 %v2653, 32
    %v2656 = vpop.permute.xlu0 %2655
    %v2657 = vsel %vm46, %v2656, 0
    %2659 = vmatprep.subr.mxu0 0.0
    %2660 = vmatpush1.msra.mxu0 %v31
    %2661 = vmatprep.subr.mxu0 0.0
    %2662 = vmatpush1.msra.mxu0 %v32
    %2663 = vmatprep.subr.mxu0 0.0
    %2664 = vmatpush1.msra.mxu0 %v33
    %2665 = vmatprep.subr.mxu0 0.0
    %2666 = vmatpush1.msra.mxu0 %v34
    %2667 = vmatprep.subr.mxu0 0.0
    %2668 = vmatpush1.msra.mxu0 0.0
    %2669 = vmatprep.subr.mxu0 0.0
    %2670 = vmatpush1.msra.mxu0 0.0
    %2671 = vmatprep.subr.mxu0 0.0
    %2672 = vmatpush1.msra.mxu0 0.0
    %2673 = vmatprep.subr.mxu0 0.0
    %2674 = vmatpush1.msra.mxu0 0.0
    %2675 = vmatprep.subr.mxu0 0.0
    %2676 = vmatpush1.msra.mxu0 0.0
    %2677 = vmatprep.subr.mxu0 0.0
    %2678 = vmatpush1.msra.mxu0 0.0
    %2679 = vmatprep.subr.mxu0 0.0
    %2680 = vmatpush1.msra.mxu0 0.0
    %2681 = vmatprep.subr.mxu0 0.0
    %2682 = vmatpush1.msra.mxu0 0.0
    %2683 = vmatprep.subr.mxu0 0.0
    %2684 = vmatpush1.msra.mxu0 0.0
    %2685 = vmatprep.subr.mxu0 0.0
    %2686 = vmatpush1.msra.mxu0 0.0
    %2687 = vmatprep.subr.mxu0 0.0
    %2688 = vmatpush1.msra.mxu0 0.0
    %2689 = vmatprep.subr.mxu0 0.0
    %2690 = vmatpush1.msra.mxu0 0.0
    %2691 = vmatprep.subr.mxu0 0.0
    %2692 = vmatpush1.msra.mxu0 0.0
    %2693 = vmatprep.subr.mxu0 0.0
    %2694 = vmatpush1.msra.mxu0 0.0
    %2695 = vmatprep.subr.mxu0 0.0
    %2696 = vmatpush1.msra.mxu0 0.0
    %2697 = vmatprep.subr.mxu0 0.0
    %2698 = vmatpush1.msra.mxu0 0.0
    %2699 = vmatprep.subr.mxu0 0.0
    %2700 = vmatpush1.msra.mxu0 0.0
    %2701 = vmatprep.subr.mxu0 0.0
    %2702 = vmatpush1.msra.mxu0 0.0
    %2703 = vmatprep.subr.mxu0 0.0
    %2704 = vmatpush1.msra.mxu0 0.0
    %2705 = vmatprep.subr.mxu0 0.0
    %2706 = vmatpush1.msra.mxu0 0.0
    %2707 = vmatprep.subr.mxu0 0.0
    %2708 = vmatpush1.msra.mxu0 0.0
    %2709 = vmatprep.subr.mxu0 0.0
    %2710 = vmatpush1.msra.mxu0 0.0
    %2711 = vmatprep.subr.mxu0 0.0
    %2712 = vmatpush1.msra.mxu0 0.0
    %2713 = vmatprep.subr.mxu0 0.0
    %2714 = vmatpush1.msra.mxu0 0.0
    %2715 = vmatprep.subr.mxu0 0.0
    %2716 = vmatpush1.msra.mxu0 0.0
    %2717 = vmatprep.subr.mxu0 0.0
    %2718 = vmatpush1.msra.mxu0 0.0
    %2719 = vmatprep.subr.mxu0 0.0
    %2720 = vmatpush1.msra.mxu0 0.0
    %2721 = vmatprep.subr.mxu0 0.0
    %2722 = vmatpush1.msra.mxu0 0.0
    %2723 = vmatprep.mubr.f32.mxu0 0.0
    %2724 = vmatmul.mubr.f32.gmra.mrb[0].mxu0 %v2657
    %v2725 = vpop.f32.mrb[0].mxu0
    %v2726 = vadd.f32 0.0, %v2725
    %v2727 = vpop.f32.mrb[0].mxu0
    %2728 = vdwg.mxu0
    %v2731 = vunpack.c.l.s4 1966171168
    %v2732 = vunpack.c.0.s8 %v2731
    %v2733 = vlaneseq
    %v2734 = vshrl.u32 %v2733, 7
    %v2735 = vsub.s32 %v2732, %v2734
    %v2736 = vrot.slane %v2726, %v2735
    %v2737 = vcombine.high %v2736, %v2736
    %v2739 = vunpack.c.l.s4 1966171168
    %v2740 = vunpack.c.0.s8 %v2739
    %v2741 = vlaneseq
    %v2742 = vshrl.u32 %v2741, 7
    %v2743 = vsub.s32 %v2740, %v2742
    %v2744 = vrot.slane %v2736, %v2743
    %v2746 = vunpack.c.l.s4 1966171168
    %v2747 = vunpack.c.0.s8 %v2746
    %v2748 = vlaneseq
    %v2749 = vshrl.u32 %v2748, 7
    %v2750 = vsub.s32 %v2747, %v2749
    %v2751 = vrot.slane %v2737, %v2750
    %v2752 = vlaneseq
    %v2753 = vshrl.u32 %v2752, 7
    %v2754 = vsub.s32 0, %v2753
    %v2755 = vrot.slane %v2744, %v2754
    %v2756 = vlaneseq
    %v2757 = vshrl.u32 %v2756, 7
    %v2758 = vsub.s32 0, %v2757
    %v2759 = vrot.slane %v2751, %v2758
    %v2762 = vadd.f32 %v1324, %v2755
    %v2763 = vadd.f32 %v1329, %v2759
    %v2764 = vtanh.pop %v2762
    %v2765 = vtanh.pop %v2763
    %v2766 = vmul.f32 %v2764, %v1336
    %v2767 = vmul.f32 %v2765, %v1336
    %v2768 = vsel %vm46, %v2766, 0.0
    %2769 = vadd.xlane.f32.xlu0 %v2768
    %v2770 = vpop.xlane.xlu0 %2769
    %v2771 = vsel %vm46, %v2767, 0.0
    %2772 = vadd.xlane.f32.xlu0 %v2771
    %v2773 = vpop.xlane.xlu0 %2772
    %v2776 = vlaneseq
    %v2777 = vshrl.u32 %v2776, 7
    %v2778 = vsub.s32 %v1564, %v2777
    %v2779 = vrot.slane %v2770, %v2778
    %v2780 = vlaneseq
    %v2781 = vshrl.u32 %v2780, 7
    %v2782 = vsub.s32 %v1564, %v2781
    %v2783 = vrot.slane %v2773, %v2782
    %v2784 = vsel %vm1573, %v2783, %v2779
    %v2786 = vsel %vm1576, %v2784, -inf
    %2787 = vmax.xlane.f32.xlu0 %v2786
    %v2788 = vpop.xlane.xlu0 %2787
    %v2790 = vlaneseq
    %v2791 = vshrl.u32 %v2790, 7
    %v2792 = vsub.s32 0, %v2791
    %v2793 = vrot.slane %v2788, %v2792
    %v2794 = vlaneseq
    %v2795 = vshrl.u32 %v2794, 7
    %v2796 = vsub.s32 1, %v2795
    %v2797 = vrot.slane %v2788, %v2796
    %v2800 = vsub.f32 %v2770, %v2793
    %v2801 = vsub.f32 %v2773, %v2797
    %v2802 = vmul.f32 %v2800, 1.442695
    %v2803 = vpow.pop %v2802
    %v2804 = vmul.f32 %v2801, 1.442695
    %v2805 = vpow.pop %v2804
    %2808 = vset.pattern.permute.xlu0 0
    %2809 = vperm.xlu0 %2808, %v2803
    %v2810 = vpop.permute.xlu0 %2809
    %2811 = vset.pattern.permute.xlu0 0
    %2812 = vperm.xlu0 %2811, %v2805
    %v2813 = vpop.permute.xlu0 %2812
    %v2814 = vlaneseq
    %v2815 = vshrl.u32 %v2814, 7
    %v2816 = vsub.s32 %v1564, %v2815
    %v2817 = vrot.slane %v2810, %v2816
    %v2818 = vlaneseq
    %v2819 = vshrl.u32 %v2818, 7
    %v2820 = vsub.s32 %v1564, %v2819
    %v2821 = vrot.slane %v2813, %v2820
    %v2822 = vsel %vm1573, %v2821, %v2817
    %v2824 = vsel %vm1576, %v2822, 0.0
    %2825 = vadd.xlane.f32.xlu0 %v2824
    %v2826 = vpop.xlane.xlu0 %2825
    %v2827 = vlog2.pop %v2826
    %v2828 = vmul.f32 %v2827, 0.6931472
    %v2830 = vlaneseq
    %v2831 = vshrl.u32 %v2830, 7
    %v2832 = vsub.s32 0, %v2831
    %v2833 = vrot.slane %v2828, %v2832
    %v2834 = vlaneseq
    %v2835 = vshrl.u32 %v2834, 7
    %v2836 = vsub.s32 1, %v2835
    %v2837 = vrot.slane %v2828, %v2836
    %v2840 = vsub.f32 %v2800, %v2833
    %v2841 = vsub.f32 %v2801, %v2837
    %2844 = vset.pattern.permute.xlu0 0
    %2845 = vperm.xlu0 %2844, %v2840
    %v2846 = vpop.permute.xlu0 %2845
    %2847 = vset.pattern.permute.xlu0 0
    %2848 = vperm.xlu0 %2847, %v2841
    %v2849 = vpop.permute.xlu0 %2848
    %v2850 = vlaneseq
    %v2851 = vshrl.u32 %v2850, 7
    %v2852 = vsub.s32 %v1564, %v2851
    %v2853 = vrot.slane %v2846, %v2852
    %v2854 = vlaneseq
    %v2855 = vshrl.u32 %v2854, 7
    %v2856 = vsub.s32 %v1564, %v2855
    %v2857 = vrot.slane %v2849, %v2856
    %2860 = vst.msk [vmem:[#allocation4 + $0x4] sm:$0x1] %vm1651, %v2853
    %2861 = vst.msk [vmem:[#allocation4 + $0xc] sm:$0x1] %vm1651, %v2857
    %2862 = vmatprep.subr.mxu0 0.0
    %2863 = vmatpush1.msra.mxu0 %v23
    %2864 = vmatprep.subr.mxu0 0.0
    %2865 = vmatpush1.msra.mxu0 %v24
    %2866 = vmatprep.subr.mxu0 0.0
    %2867 = vmatpush1.msra.mxu0 %v25
    %2868 = vmatprep.subr.mxu0 0.0
    %2869 = vmatpush1.msra.mxu0 %v26
    %2870 = vmatprep.subr.mxu0 0.0
    %2871 = vmatpush1.msra.mxu0 0.0
    %2872 = vmatprep.subr.mxu0 0.0
    %2873 = vmatpush1.msra.mxu0 0.0
    %2874 = vmatprep.subr.mxu0 0.0
    %2875 = vmatpush1.msra.mxu0 0.0
    %2876 = vmatprep.subr.mxu0 0.0
    %2877 = vmatpush1.msra.mxu0 0.0
    %2878 = vmatprep.subr.mxu0 0.0
    %2879 = vmatpush1.msra.mxu0 0.0
    %2880 = vmatprep.subr.mxu0 0.0
    %2881 = vmatpush1.msra.mxu0 0.0
    %2882 = vmatprep.subr.mxu0 0.0
    %2883 = vmatpush1.msra.mxu0 0.0
    %2884 = vmatprep.subr.mxu0 0.0
    %2885 = vmatpush1.msra.mxu0 0.0
    %2886 = vmatprep.subr.mxu0 0.0
    %2887 = vmatpush1.msra.mxu0 0.0
    %2888 = vmatprep.subr.mxu0 0.0
    %2889 = vmatpush1.msra.mxu0 0.0
    %2890 = vmatprep.subr.mxu0 0.0
    %2891 = vmatpush1.msra.mxu0 0.0
    %2892 = vmatprep.subr.mxu0 0.0
    %2893 = vmatpush1.msra.mxu0 0.0
    %2894 = vmatprep.subr.mxu0 0.0
    %2895 = vmatpush1.msra.mxu0 0.0
    %2896 = vmatprep.subr.mxu0 0.0
    %2897 = vmatpush1.msra.mxu0 0.0
    %2898 = vmatprep.subr.mxu0 0.0
    %2899 = vmatpush1.msra.mxu0 0.0
    %2900 = vmatprep.subr.mxu0 0.0
    %2901 = vmatpush1.msra.mxu0 0.0
    %2902 = vmatprep.subr.mxu0 0.0
    %2903 = vmatpush1.msra.mxu0 0.0
    %2904 = vmatprep.subr.mxu0 0.0
    %2905 = vmatpush1.msra.mxu0 0.0
    %2906 = vmatprep.subr.mxu0 0.0
    %2907 = vmatpush1.msra.mxu0 0.0
    %2908 = vmatprep.subr.mxu0 0.0
    %2909 = vmatpush1.msra.mxu0 0.0
    %2910 = vmatprep.subr.mxu0 0.0
    %2911 = vmatpush1.msra.mxu0 0.0
    %2912 = vmatprep.subr.mxu0 0.0
    %2913 = vmatpush1.msra.mxu0 0.0
    %2914 = vmatprep.subr.mxu0 0.0
    %2915 = vmatpush1.msra.mxu0 0.0
    %2916 = vmatprep.subr.mxu0 0.0
    %2917 = vmatpush1.msra.mxu0 0.0
    %2918 = vmatprep.subr.mxu0 0.0
    %2919 = vmatpush1.msra.mxu0 0.0
    %2920 = vmatprep.subr.mxu0 0.0
    %2921 = vmatpush1.msra.mxu0 0.0
    %2922 = vmatprep.subr.mxu0 0.0
    %2923 = vmatpush1.msra.mxu0 0.0
    %2924 = vmatprep.subr.mxu0 0.0
    %2925 = vmatpush1.msra.mxu0 0.0
    %2926 = vmatprep.mubr.f32.mxu0 0.0
    %2927 = vmatmul.mubr.f32.gmra.mrb[0].mxu0 %v2657
    %v2928 = vpop.f32.mrb[0].mxu0
    %v2929 = vadd.f32 %v1342, %v2928
    %v2930 = vpop.f32.mrb[0].mxu0
    %2931 = vdwg.mxu0
    %v2932 = vxor.u32 %v2929, 2147483648
    %v2933 = vmul.f32 %v2932, 1.442695
    %v2934 = vpow.pop %v2933
    %v2935 = vadd.f32 %v2934, 1.0
    %v2936 = vrcp.pop %v2935
    %v2937 = vmul.f32 1.0, %v2936
    %v2938 = vtanh.pop %v2929
    %v2939 = vmul.f32 %v2937, %v2647
    %2941 = vrot.lane.b32.xlu0 %v2938, 64
    %v2942 = vpop.permute.xlu0 %2941
    %v2944 = vmul.f32 %v2937, %v2942
    %2946 = vrot.lane.b32.xlu0 %v2944, 32
    %v2947 = vpop.permute.xlu0 %2946
    %v2949 = vadd.f32 %v2939, %v2947
    %v2950 = vtanh.pop %v2949
    %2952 = vrot.lane.b32.xlu0 %v2950, 64
    %v2953 = vpop.permute.xlu0 %2952
    %v2955 = vmul.f32 %v2937, %v2953
    %2957 = vrot.lane.b32.xlu0 %v2955, 32
    %v2958 = vpop.permute.xlu0 %2957
    %v2959 = vsel %vm46, %v2958, 0
    %2961 = vmatprep.subr.mxu0 0.0
    %2962 = vmatpush1.msra.mxu0 %v31
    %2963 = vmatprep.subr.mxu0 0.0
    %2964 = vmatpush1.msra.mxu0 %v32
    %2965 = vmatprep.subr.mxu0 0.0
    %2966 = vmatpush1.msra.mxu0 %v33
    %2967 = vmatprep.subr.mxu0 0.0
    %2968 = vmatpush1.msra.mxu0 %v34
    %2969 = vmatprep.subr.mxu0 0.0
    %2970 = vmatpush1.msra.mxu0 0.0
    %2971 = vmatprep.subr.mxu0 0.0
    %2972 = vmatpush1.msra.mxu0 0.0
    %2973 = vmatprep.subr.mxu0 0.0
    %2974 = vmatpush1.msra.mxu0 0.0
    %2975 = vmatprep.subr.mxu0 0.0
    %2976 = vmatpush1.msra.mxu0 0.0
    %2977 = vmatprep.subr.mxu0 0.0
    %2978 = vmatpush1.msra.mxu0 0.0
    %2979 = vmatprep.subr.mxu0 0.0
    %2980 = vmatpush1.msra.mxu0 0.0
    %2981 = vmatprep.subr.mxu0 0.0
    %2982 = vmatpush1.msra.mxu0 0.0
    %2983 = vmatprep.subr.mxu0 0.0
    %2984 = vmatpush1.msra.mxu0 0.0
    %2985 = vmatprep.subr.mxu0 0.0
    %2986 = vmatpush1.msra.mxu0 0.0
    %2987 = vmatprep.subr.mxu0 0.0
    %2988 = vmatpush1.msra.mxu0 0.0
    %2989 = vmatprep.subr.mxu0 0.0
    %2990 = vmatpush1.msra.mxu0 0.0
    %2991 = vmatprep.subr.mxu0 0.0
    %2992 = vmatpush1.msra.mxu0 0.0
    %2993 = vmatprep.subr.mxu0 0.0
    %2994 = vmatpush1.msra.mxu0 0.0
    %2995 = vmatprep.subr.mxu0 0.0
    %2996 = vmatpush1.msra.mxu0 0.0
    %2997 = vmatprep.subr.mxu0 0.0
    %2998 = vmatpush1.msra.mxu0 0.0
    %2999 = vmatprep.subr.mxu0 0.0
    %3000 = vmatpush1.msra.mxu0 0.0
    %3001 = vmatprep.subr.mxu0 0.0
    %3002 = vmatpush1.msra.mxu0 0.0
    %3003 = vmatprep.subr.mxu0 0.0
    %3004 = vmatpush1.msra.mxu0 0.0
    %3005 = vmatprep.subr.mxu0 0.0
    %3006 = vmatpush1.msra.mxu0 0.0
    %3007 = vmatprep.subr.mxu0 0.0
    %3008 = vmatpush1.msra.mxu0 0.0
    %3009 = vmatprep.subr.mxu0 0.0
    %3010 = vmatpush1.msra.mxu0 0.0
    %3011 = vmatprep.subr.mxu0 0.0
    %3012 = vmatpush1.msra.mxu0 0.0
    %3013 = vmatprep.subr.mxu0 0.0
    %3014 = vmatpush1.msra.mxu0 0.0
    %3015 = vmatprep.subr.mxu0 0.0
    %3016 = vmatpush1.msra.mxu0 0.0
    %3017 = vmatprep.subr.mxu0 0.0
    %3018 = vmatpush1.msra.mxu0 0.0
    %3019 = vmatprep.subr.mxu0 0.0
    %3020 = vmatpush1.msra.mxu0 0.0
    %3021 = vmatprep.subr.mxu0 0.0
    %3022 = vmatpush1.msra.mxu0 0.0
    %3023 = vmatprep.subr.mxu0 0.0
    %3024 = vmatpush1.msra.mxu0 0.0
    %3025 = vmatprep.mubr.f32.mxu0 0.0
    %3026 = vmatmul.mubr.f32.gmra.mrb[0].mxu0 %v2959
    %v3027 = vpop.f32.mrb[0].mxu0
    %v3028 = vadd.f32 0.0, %v3027
    %v3029 = vpop.f32.mrb[0].mxu0
    %3030 = vdwg.mxu0
    %v3033 = vunpack.c.l.s4 1966171168
    %v3034 = vunpack.c.0.s8 %v3033
    %v3035 = vlaneseq
    %v3036 = vshrl.u32 %v3035, 7
    %v3037 = vsub.s32 %v3034, %v3036
    %v3038 = vrot.slane %v3028, %v3037
    %v3039 = vcombine.high %v3038, %v3038
    %v3041 = vunpack.c.l.s4 1966171168
    %v3042 = vunpack.c.0.s8 %v3041
    %v3043 = vlaneseq
    %v3044 = vshrl.u32 %v3043, 7
    %v3045 = vsub.s32 %v3042, %v3044
    %v3046 = vrot.slane %v3038, %v3045
    %v3048 = vunpack.c.l.s4 1966171168
    %v3049 = vunpack.c.0.s8 %v3048
    %v3050 = vlaneseq
    %v3051 = vshrl.u32 %v3050, 7
    %v3052 = vsub.s32 %v3049, %v3051
    %v3053 = vrot.slane %v3039, %v3052
    %v3054 = vlaneseq
    %v3055 = vshrl.u32 %v3054, 7
    %v3056 = vsub.s32 0, %v3055
    %v3057 = vrot.slane %v3046, %v3056
    %v3058 = vlaneseq
    %v3059 = vshrl.u32 %v3058, 7
    %v3060 = vsub.s32 0, %v3059
    %v3061 = vrot.slane %v3053, %v3060
    %v3064 = vadd.f32 %v1324, %v3057
    %v3065 = vadd.f32 %v1329, %v3061
    %v3066 = vtanh.pop %v3064
    %v3067 = vtanh.pop %v3065
    %v3068 = vmul.f32 %v3066, %v1336
    %v3069 = vmul.f32 %v3067, %v1336
    %v3070 = vsel %vm46, %v3068, 0.0
    %3071 = vadd.xlane.f32.xlu0 %v3070
    %v3072 = vpop.xlane.xlu0 %3071
    %v3073 = vsel %vm46, %v3069, 0.0
    %3074 = vadd.xlane.f32.xlu0 %v3073
    %v3075 = vpop.xlane.xlu0 %3074
    %v3078 = vlaneseq
    %v3079 = vshrl.u32 %v3078, 7
    %v3080 = vsub.s32 %v1564, %v3079
    %v3081 = vrot.slane %v3072, %v3080
    %v3082 = vlaneseq
    %v3083 = vshrl.u32 %v3082, 7
    %v3084 = vsub.s32 %v1564, %v3083
    %v3085 = vrot.slane %v3075, %v3084
    %v3086 = vsel %vm1573, %v3085, %v3081
    %v3088 = vsel %vm1576, %v3086, -inf
    %3089 = vmax.xlane.f32.xlu0 %v3088
    %v3090 = vpop.xlane.xlu0 %3089
    %v3092 = vlaneseq
    %v3093 = vshrl.u32 %v3092, 7
    %v3094 = vsub.s32 0, %v3093
    %v3095 = vrot.slane %v3090, %v3094
    %v3096 = vlaneseq
    %v3097 = vshrl.u32 %v3096, 7
    %v3098 = vsub.s32 1, %v3097
    %v3099 = vrot.slane %v3090, %v3098
    %v3102 = vsub.f32 %v3072, %v3095
    %v3103 = vsub.f32 %v3075, %v3099
    %v3104 = vmul.f32 %v3102, 1.442695
    %v3105 = vpow.pop %v3104
    %v3106 = vmul.f32 %v3103, 1.442695
    %v3107 = vpow.pop %v3106
    %3110 = vset.pattern.permute.xlu0 0
    %3111 = vperm.xlu0 %3110, %v3105
    %v3112 = vpop.permute.xlu0 %3111
    %3113 = vset.pattern.permute.xlu0 0
    %3114 = vperm.xlu0 %3113, %v3107
    %v3115 = vpop.permute.xlu0 %3114
    %v3116 = vlaneseq
    %v3117 = vshrl.u32 %v3116, 7
    %v3118 = vsub.s32 %v1564, %v3117
    %v3119 = vrot.slane %v3112, %v3118
    %v3120 = vlaneseq
    %v3121 = vshrl.u32 %v3120, 7
    %v3122 = vsub.s32 %v1564, %v3121
    %v3123 = vrot.slane %v3115, %v3122
    %v3124 = vsel %vm1573, %v3123, %v3119
    %v3126 = vsel %vm1576, %v3124, 0.0
    %3127 = vadd.xlane.f32.xlu0 %v3126
    %v3128 = vpop.xlane.xlu0 %3127
    %v3129 = vlog2.pop %v3128
    %v3130 = vmul.f32 %v3129, 0.6931472
    %v3132 = vlaneseq
    %v3133 = vshrl.u32 %v3132, 7
    %v3134 = vsub.s32 0, %v3133
    %v3135 = vrot.slane %v3130, %v3134
    %v3136 = vlaneseq
    %v3137 = vshrl.u32 %v3136, 7
    %v3138 = vsub.s32 1, %v3137
    %v3139 = vrot.slane %v3130, %v3138
    %v3142 = vsub.f32 %v3102, %v3135
    %v3143 = vsub.f32 %v3103, %v3139
    %3146 = vset.pattern.permute.xlu0 0
    %3147 = vperm.xlu0 %3146, %v3142
    %v3148 = vpop.permute.xlu0 %3147
    %3149 = vset.pattern.permute.xlu0 0
    %3150 = vperm.xlu0 %3149, %v3143
    %v3151 = vpop.permute.xlu0 %3150
    %v3152 = vlaneseq
    %v3153 = vshrl.u32 %v3152, 7
    %v3154 = vsub.s32 %v1564, %v3153
    %v3155 = vrot.slane %v3148, %v3154
    %v3156 = vlaneseq
    %v3157 = vshrl.u32 %v3156, 7
    %v3158 = vsub.s32 %v1564, %v3157
    %v3159 = vrot.slane %v3151, %v3158
    %3162 = vst.msk [vmem:[#allocation4 + $0x5] sm:$0x1] %vm1651, %v3155
    %3163 = vst.msk [vmem:[#allocation4 + $0xd] sm:$0x1] %vm1651, %v3159
    %3164 = vmatprep.subr.mxu0 0.0
    %3165 = vmatpush1.msra.mxu0 %v23
    %3166 = vmatprep.subr.mxu0 0.0
    %3167 = vmatpush1.msra.mxu0 %v24
    %3168 = vmatprep.subr.mxu0 0.0
    %3169 = vmatpush1.msra.mxu0 %v25
    %3170 = vmatprep.subr.mxu0 0.0
    %3171 = vmatpush1.msra.mxu0 %v26
    %3172 = vmatprep.subr.mxu0 0.0
    %3173 = vmatpush1.msra.mxu0 0.0
    %3174 = vmatprep.subr.mxu0 0.0
    %3175 = vmatpush1.msra.mxu0 0.0
    %3176 = vmatprep.subr.mxu0 0.0
    %3177 = vmatpush1.msra.mxu0 0.0
    %3178 = vmatprep.subr.mxu0 0.0
    %3179 = vmatpush1.msra.mxu0 0.0
    %3180 = vmatprep.subr.mxu0 0.0
    %3181 = vmatpush1.msra.mxu0 0.0
    %3182 = vmatprep.subr.mxu0 0.0
    %3183 = vmatpush1.msra.mxu0 0.0
    %3184 = vmatprep.subr.mxu0 0.0
    %3185 = vmatpush1.msra.mxu0 0.0
    %3186 = vmatprep.subr.mxu0 0.0
    %3187 = vmatpush1.msra.mxu0 0.0
    %3188 = vmatprep.subr.mxu0 0.0
    %3189 = vmatpush1.msra.mxu0 0.0
    %3190 = vmatprep.subr.mxu0 0.0
    %3191 = vmatpush1.msra.mxu0 0.0
    %3192 = vmatprep.subr.mxu0 0.0
    %3193 = vmatpush1.msra.mxu0 0.0
    %3194 = vmatprep.subr.mxu0 0.0
    %3195 = vmatpush1.msra.mxu0 0.0
    %3196 = vmatprep.subr.mxu0 0.0
    %3197 = vmatpush1.msra.mxu0 0.0
    %3198 = vmatprep.subr.mxu0 0.0
    %3199 = vmatpush1.msra.mxu0 0.0
    %3200 = vmatprep.subr.mxu0 0.0
    %3201 = vmatpush1.msra.mxu0 0.0
    %3202 = vmatprep.subr.mxu0 0.0
    %3203 = vmatpush1.msra.mxu0 0.0
    %3204 = vmatprep.subr.mxu0 0.0
    %3205 = vmatpush1.msra.mxu0 0.0
    %3206 = vmatprep.subr.mxu0 0.0
    %3207 = vmatpush1.msra.mxu0 0.0
    %3208 = vmatprep.subr.mxu0 0.0
    %3209 = vmatpush1.msra.mxu0 0.0
    %3210 = vmatprep.subr.mxu0 0.0
    %3211 = vmatpush1.msra.mxu0 0.0
    %3212 = vmatprep.subr.mxu0 0.0
    %3213 = vmatpush1.msra.mxu0 0.0
    %3214 = vmatprep.subr.mxu0 0.0
    %3215 = vmatpush1.msra.mxu0 0.0
    %3216 = vmatprep.subr.mxu0 0.0
    %3217 = vmatpush1.msra.mxu0 0.0
    %3218 = vmatprep.subr.mxu0 0.0
    %3219 = vmatpush1.msra.mxu0 0.0
    %3220 = vmatprep.subr.mxu0 0.0
    %3221 = vmatpush1.msra.mxu0 0.0
    %3222 = vmatprep.subr.mxu0 0.0
    %3223 = vmatpush1.msra.mxu0 0.0
    %3224 = vmatprep.subr.mxu0 0.0
    %3225 = vmatpush1.msra.mxu0 0.0
    %3226 = vmatprep.subr.mxu0 0.0
    %3227 = vmatpush1.msra.mxu0 0.0
    %3228 = vmatprep.mubr.f32.mxu0 0.0
    %3229 = vmatmul.mubr.f32.gmra.mrb[0].mxu0 %v2959
    %v3230 = vpop.f32.mrb[0].mxu0
    %v3231 = vadd.f32 %v1342, %v3230
    %v3232 = vpop.f32.mrb[0].mxu0
    %3233 = vdwg.mxu0
    %v3234 = vxor.u32 %v3231, 2147483648
    %v3235 = vmul.f32 %v3234, 1.442695
    %v3236 = vpow.pop %v3235
    %v3237 = vadd.f32 %v3236, 1.0
    %v3238 = vrcp.pop %v3237
    %v3239 = vmul.f32 1.0, %v3238
    %v3240 = vtanh.pop %v3231
    %v3241 = vmul.f32 %v3239, %v2949
    %3243 = vrot.lane.b32.xlu0 %v3240, 64
    %v3244 = vpop.permute.xlu0 %3243
    %v3246 = vmul.f32 %v3239, %v3244
    %3248 = vrot.lane.b32.xlu0 %v3246, 32
    %v3249 = vpop.permute.xlu0 %3248
    %v3251 = vadd.f32 %v3241, %v3249
    %v3252 = vtanh.pop %v3251
    %3254 = vrot.lane.b32.xlu0 %v3252, 64
    %v3255 = vpop.permute.xlu0 %3254
    %v3257 = vmul.f32 %v3239, %v3255
    %3259 = vrot.lane.b32.xlu0 %v3257, 32
    %v3260 = vpop.permute.xlu0 %3259
    %v3261 = vsel %vm46, %v3260, 0
    %3263 = vmatprep.subr.mxu0 0.0
    %3264 = vmatpush1.msra.mxu0 %v31
    %3265 = vmatprep.subr.mxu0 0.0
    %3266 = vmatpush1.msra.mxu0 %v32
    %3267 = vmatprep.subr.mxu0 0.0
    %3268 = vmatpush1.msra.mxu0 %v33
    %3269 = vmatprep.subr.mxu0 0.0
    %3270 = vmatpush1.msra.mxu0 %v34
    %3271 = vmatprep.subr.mxu0 0.0
    %3272 = vmatpush1.msra.mxu0 0.0
    %3273 = vmatprep.subr.mxu0 0.0
    %3274 = vmatpush1.msra.mxu0 0.0
    %3275 = vmatprep.subr.mxu0 0.0
    %3276 = vmatpush1.msra.mxu0 0.0
    %3277 = vmatprep.subr.mxu0 0.0
    %3278 = vmatpush1.msra.mxu0 0.0
    %3279 = vmatprep.subr.mxu0 0.0
    %3280 = vmatpush1.msra.mxu0 0.0
    %3281 = vmatprep.subr.mxu0 0.0
    %3282 = vmatpush1.msra.mxu0 0.0
    %3283 = vmatprep.subr.mxu0 0.0
    %3284 = vmatpush1.msra.mxu0 0.0
    %3285 = vmatprep.subr.mxu0 0.0
    %3286 = vmatpush1.msra.mxu0 0.0
    %3287 = vmatprep.subr.mxu0 0.0
    %3288 = vmatpush1.msra.mxu0 0.0
    %3289 = vmatprep.subr.mxu0 0.0
    %3290 = vmatpush1.msra.mxu0 0.0
    %3291 = vmatprep.subr.mxu0 0.0
    %3292 = vmatpush1.msra.mxu0 0.0
    %3293 = vmatprep.subr.mxu0 0.0
    %3294 = vmatpush1.msra.mxu0 0.0
    %3295 = vmatprep.subr.mxu0 0.0
    %3296 = vmatpush1.msra.mxu0 0.0
    %3297 = vmatprep.subr.mxu0 0.0
    %3298 = vmatpush1.msra.mxu0 0.0
    %3299 = vmatprep.subr.mxu0 0.0
    %3300 = vmatpush1.msra.mxu0 0.0
    %3301 = vmatprep.subr.mxu0 0.0
    %3302 = vmatpush1.msra.mxu0 0.0
    %3303 = vmatprep.subr.mxu0 0.0
    %3304 = vmatpush1.msra.mxu0 0.0
    %3305 = vmatprep.subr.mxu0 0.0
    %3306 = vmatpush1.msra.mxu0 0.0
    %3307 = vmatprep.subr.mxu0 0.0
    %3308 = vmatpush1.msra.mxu0 0.0
    %3309 = vmatprep.subr.mxu0 0.0
    %3310 = vmatpush1.msra.mxu0 0.0
    %3311 = vmatprep.subr.mxu0 0.0
    %3312 = vmatpush1.msra.mxu0 0.0
    %3313 = vmatprep.subr.mxu0 0.0
    %3314 = vmatpush1.msra.mxu0 0.0
    %3315 = vmatprep.subr.mxu0 0.0
    %3316 = vmatpush1.msra.mxu0 0.0
    %3317 = vmatprep.subr.mxu0 0.0
    %3318 = vmatpush1.msra.mxu0 0.0
    %3319 = vmatprep.subr.mxu0 0.0
    %3320 = vmatpush1.msra.mxu0 0.0
    %3321 = vmatprep.subr.mxu0 0.0
    %3322 = vmatpush1.msra.mxu0 0.0
    %3323 = vmatprep.subr.mxu0 0.0
    %3324 = vmatpush1.msra.mxu0 0.0
    %3325 = vmatprep.subr.mxu0 0.0
    %3326 = vmatpush1.msra.mxu0 0.0
    %3327 = vmatprep.mubr.f32.mxu0 0.0
    %3328 = vmatmul.mubr.f32.gmra.mrb[0].mxu0 %v3261
    %v3329 = vpop.f32.mrb[0].mxu0
    %v3330 = vadd.f32 0.0, %v3329
    %v3331 = vpop.f32.mrb[0].mxu0
    %3332 = vdwg.mxu0
    %v3335 = vunpack.c.l.s4 1966171168
    %v3336 = vunpack.c.0.s8 %v3335
    %v3337 = vlaneseq
    %v3338 = vshrl.u32 %v3337, 7
    %v3339 = vsub.s32 %v3336, %v3338
    %v3340 = vrot.slane %v3330, %v3339
    %v3341 = vcombine.high %v3340, %v3340
    %v3343 = vunpack.c.l.s4 1966171168
    %v3344 = vunpack.c.0.s8 %v3343
    %v3345 = vlaneseq
    %v3346 = vshrl.u32 %v3345, 7
    %v3347 = vsub.s32 %v3344, %v3346
    %v3348 = vrot.slane %v3340, %v3347
    %v3350 = vunpack.c.l.s4 1966171168
    %v3351 = vunpack.c.0.s8 %v3350
    %v3352 = vlaneseq
    %v3353 = vshrl.u32 %v3352, 7
    %v3354 = vsub.s32 %v3351, %v3353
    %v3355 = vrot.slane %v3341, %v3354
    %v3356 = vlaneseq
    %v3357 = vshrl.u32 %v3356, 7
    %v3358 = vsub.s32 0, %v3357
    %v3359 = vrot.slane %v3348, %v3358
    %v3360 = vlaneseq
    %v3361 = vshrl.u32 %v3360, 7
    %v3362 = vsub.s32 0, %v3361
    %v3363 = vrot.slane %v3355, %v3362
    %v3366 = vadd.f32 %v1324, %v3359
    %v3367 = vadd.f32 %v1329, %v3363
    %v3368 = vtanh.pop %v3366
    %v3369 = vtanh.pop %v3367
    %v3370 = vmul.f32 %v3368, %v1336
    %v3371 = vmul.f32 %v3369, %v1336
    %v3372 = vsel %vm46, %v3370, 0.0
    %3373 = vadd.xlane.f32.xlu0 %v3372
    %v3374 = vpop.xlane.xlu0 %3373
    %v3375 = vsel %vm46, %v3371, 0.0
    %3376 = vadd.xlane.f32.xlu0 %v3375
    %v3377 = vpop.xlane.xlu0 %3376
    %v3380 = vlaneseq
    %v3381 = vshrl.u32 %v3380, 7
    %v3382 = vsub.s32 %v1564, %v3381
    %v3383 = vrot.slane %v3374, %v3382
    %v3384 = vlaneseq
    %v3385 = vshrl.u32 %v3384, 7
    %v3386 = vsub.s32 %v1564, %v3385
    %v3387 = vrot.slane %v3377, %v3386
    %v3388 = vsel %vm1573, %v3387, %v3383
    %v3390 = vsel %vm1576, %v3388, -inf
    %3391 = vmax.xlane.f32.xlu0 %v3390
    %v3392 = vpop.xlane.xlu0 %3391
    %v3394 = vlaneseq
    %v3395 = vshrl.u32 %v3394, 7
    %v3396 = vsub.s32 0, %v3395
    %v3397 = vrot.slane %v3392, %v3396
    %v3398 = vlaneseq
    %v3399 = vshrl.u32 %v3398, 7
    %v3400 = vsub.s32 1, %v3399
    %v3401 = vrot.slane %v3392, %v3400
    %v3404 = vsub.f32 %v3374, %v3397
    %v3405 = vsub.f32 %v3377, %v3401
    %v3406 = vmul.f32 %v3404, 1.442695
    %v3407 = vpow.pop %v3406
    %v3408 = vmul.f32 %v3405, 1.442695
    %v3409 = vpow.pop %v3408
    %3412 = vset.pattern.permute.xlu0 0
    %3413 = vperm.xlu0 %3412, %v3407
    %v3414 = vpop.permute.xlu0 %3413
    %3415 = vset.pattern.permute.xlu0 0
    %3416 = vperm.xlu0 %3415, %v3409
    %v3417 = vpop.permute.xlu0 %3416
    %v3418 = vlaneseq
    %v3419 = vshrl.u32 %v3418, 7
    %v3420 = vsub.s32 %v1564, %v3419
    %v3421 = vrot.slane %v3414, %v3420
    %v3422 = vlaneseq
    %v3423 = vshrl.u32 %v3422, 7
    %v3424 = vsub.s32 %v1564, %v3423
    %v3425 = vrot.slane %v3417, %v3424
    %v3426 = vsel %vm1573, %v3425, %v3421
    %v3428 = vsel %vm1576, %v3426, 0.0
    %3429 = vadd.xlane.f32.xlu0 %v3428
    %v3430 = vpop.xlane.xlu0 %3429
    %v3431 = vlog2.pop %v3430
    %v3432 = vmul.f32 %v3431, 0.6931472
    %v3434 = vlaneseq
    %v3435 = vshrl.u32 %v3434, 7
    %v3436 = vsub.s32 0, %v3435
    %v3437 = vrot.slane %v3432, %v3436
    %v3438 = vlaneseq
    %v3439 = vshrl.u32 %v3438, 7
    %v3440 = vsub.s32 1, %v3439
    %v3441 = vrot.slane %v3432, %v3440
    %v3444 = vsub.f32 %v3404, %v3437
    %v3445 = vsub.f32 %v3405, %v3441
    %3448 = vset.pattern.permute.xlu0 0
    %3449 = vperm.xlu0 %3448, %v3444
    %v3450 = vpop.permute.xlu0 %3449
    %3451 = vset.pattern.permute.xlu0 0
    %3452 = vperm.xlu0 %3451, %v3445
    %v3453 = vpop.permute.xlu0 %3452
    %v3454 = vlaneseq
    %v3455 = vshrl.u32 %v3454, 7
    %v3456 = vsub.s32 %v1564, %v3455
    %v3457 = vrot.slane %v3450, %v3456
    %v3458 = vlaneseq
    %v3459 = vshrl.u32 %v3458, 7
    %v3460 = vsub.s32 %v1564, %v3459
    %v3461 = vrot.slane %v3453, %v3460
    %3464 = vst.msk [vmem:[#allocation4 + $0x6] sm:$0x1] %vm1651, %v3457
    %3465 = vst.msk [vmem:[#allocation4 + $0xe] sm:$0x1] %vm1651, %v3461
    %3466 = vmatprep.subr.mxu0 0.0
    %3467 = vmatpush1.msra.mxu0 %v23
    %3468 = vmatprep.subr.mxu0 0.0
    %3469 = vmatpush1.msra.mxu0 %v24
    %3470 = vmatprep.subr.mxu0 0.0
    %3471 = vmatpush1.msra.mxu0 %v25
    %3472 = vmatprep.subr.mxu0 0.0
    %3473 = vmatpush1.msra.mxu0 %v26
    %3474 = vmatprep.subr.mxu0 0.0
    %3475 = vmatpush1.msra.mxu0 0.0
    %3476 = vmatprep.subr.mxu0 0.0
    %3477 = vmatpush1.msra.mxu0 0.0
    %3478 = vmatprep.subr.mxu0 0.0
    %3479 = vmatpush1.msra.mxu0 0.0
    %3480 = vmatprep.subr.mxu0 0.0
    %3481 = vmatpush1.msra.mxu0 0.0
    %3482 = vmatprep.subr.mxu0 0.0
    %3483 = vmatpush1.msra.mxu0 0.0
    %3484 = vmatprep.subr.mxu0 0.0
    %3485 = vmatpush1.msra.mxu0 0.0
    %3486 = vmatprep.subr.mxu0 0.0
    %3487 = vmatpush1.msra.mxu0 0.0
    %3488 = vmatprep.subr.mxu0 0.0
    %3489 = vmatpush1.msra.mxu0 0.0
    %3490 = vmatprep.subr.mxu0 0.0
    %3491 = vmatpush1.msra.mxu0 0.0
    %3492 = vmatprep.subr.mxu0 0.0
    %3493 = vmatpush1.msra.mxu0 0.0
    %3494 = vmatprep.subr.mxu0 0.0
    %3495 = vmatpush1.msra.mxu0 0.0
    %3496 = vmatprep.subr.mxu0 0.0
    %3497 = vmatpush1.msra.mxu0 0.0
    %3498 = vmatprep.subr.mxu0 0.0
    %3499 = vmatpush1.msra.mxu0 0.0
    %3500 = vmatprep.subr.mxu0 0.0
    %3501 = vmatpush1.msra.mxu0 0.0
    %3502 = vmatprep.subr.mxu0 0.0
    %3503 = vmatpush1.msra.mxu0 0.0
    %3504 = vmatprep.subr.mxu0 0.0
    %3505 = vmatpush1.msra.mxu0 0.0
    %3506 = vmatprep.subr.mxu0 0.0
    %3507 = vmatpush1.msra.mxu0 0.0
    %3508 = vmatprep.subr.mxu0 0.0
    %3509 = vmatpush1.msra.mxu0 0.0
    %3510 = vmatprep.subr.mxu0 0.0
    %3511 = vmatpush1.msra.mxu0 0.0
    %3512 = vmatprep.subr.mxu0 0.0
    %3513 = vmatpush1.msra.mxu0 0.0
    %3514 = vmatprep.subr.mxu0 0.0
    %3515 = vmatpush1.msra.mxu0 0.0
    %3516 = vmatprep.subr.mxu0 0.0
    %3517 = vmatpush1.msra.mxu0 0.0
    %3518 = vmatprep.subr.mxu0 0.0
    %3519 = vmatpush1.msra.mxu0 0.0
    %3520 = vmatprep.subr.mxu0 0.0
    %3521 = vmatpush1.msra.mxu0 0.0
    %3522 = vmatprep.subr.mxu0 0.0
    %3523 = vmatpush1.msra.mxu0 0.0
    %3524 = vmatprep.subr.mxu0 0.0
    %3525 = vmatpush1.msra.mxu0 0.0
    %3526 = vmatprep.subr.mxu0 0.0
    %3527 = vmatpush1.msra.mxu0 0.0
    %3528 = vmatprep.subr.mxu0 0.0
    %3529 = vmatpush1.msra.mxu0 0.0
    %3530 = vmatprep.mubr.f32.mxu0 0.0
    %3531 = vmatmul.mubr.f32.gmra.mrb[0].mxu0 %v3261
    %v3532 = vpop.f32.mrb[0].mxu0
    %v3533 = vadd.f32 %v1342, %v3532
    %v3534 = vpop.f32.mrb[0].mxu0
    %3535 = vdwg.mxu0
    %v3536 = vxor.u32 %v3533, 2147483648
    %v3537 = vmul.f32 %v3536, 1.442695
    %v3538 = vpow.pop %v3537
    %v3539 = vadd.f32 %v3538, 1.0
    %v3540 = vrcp.pop %v3539
    %v3541 = vmul.f32 1.0, %v3540
    %v3542 = vtanh.pop %v3533
    %v3543 = vmul.f32 %v3541, %v3251
    %3545 = vrot.lane.b32.xlu0 %v3542, 64
    %v3546 = vpop.permute.xlu0 %3545
    %v3548 = vmul.f32 %v3541, %v3546
    %3550 = vrot.lane.b32.xlu0 %v3548, 32
    %v3551 = vpop.permute.xlu0 %3550
    %v3553 = vadd.f32 %v3543, %v3551
    %v3554 = vtanh.pop %v3553
    %3556 = vrot.lane.b32.xlu0 %v3554, 64
    %v3557 = vpop.permute.xlu0 %3556
    %v3559 = vmul.f32 %v3541, %v3557
    %3561 = vrot.lane.b32.xlu0 %v3559, 32
    %v3562 = vpop.permute.xlu0 %3561
    %v3563 = vsel %vm46, %v3562, 0
    %3565 = vmatprep.subr.mxu0 0.0
    %3566 = vmatpush1.msra.mxu0 %v31
    %3567 = vmatprep.subr.mxu0 0.0
    %3568 = vmatpush1.msra.mxu0 %v32
    %3569 = vmatprep.subr.mxu0 0.0
    %3570 = vmatpush1.msra.mxu0 %v33
    %3571 = vmatprep.subr.mxu0 0.0
    %3572 = vmatpush1.msra.mxu0 %v34
    %3573 = vmatprep.subr.mxu0 0.0
    %3574 = vmatpush1.msra.mxu0 0.0
    %3575 = vmatprep.subr.mxu0 0.0
    %3576 = vmatpush1.msra.mxu0 0.0
    %3577 = vmatprep.subr.mxu0 0.0
    %3578 = vmatpush1.msra.mxu0 0.0
    %3579 = vmatprep.subr.mxu0 0.0
    %3580 = vmatpush1.msra.mxu0 0.0
    %3581 = vmatprep.subr.mxu0 0.0
    %3582 = vmatpush1.msra.mxu0 0.0
    %3583 = vmatprep.subr.mxu0 0.0
    %3584 = vmatpush1.msra.mxu0 0.0
    %3585 = vmatprep.subr.mxu0 0.0
    %3586 = vmatpush1.msra.mxu0 0.0
    %3587 = vmatprep.subr.mxu0 0.0
    %3588 = vmatpush1.msra.mxu0 0.0
    %3589 = vmatprep.subr.mxu0 0.0
    %3590 = vmatpush1.msra.mxu0 0.0
    %3591 = vmatprep.subr.mxu0 0.0
    %3592 = vmatpush1.msra.mxu0 0.0
    %3593 = vmatprep.subr.mxu0 0.0
    %3594 = vmatpush1.msra.mxu0 0.0
    %3595 = vmatprep.subr.mxu0 0.0
    %3596 = vmatpush1.msra.mxu0 0.0
    %3597 = vmatprep.subr.mxu0 0.0
    %3598 = vmatpush1.msra.mxu0 0.0
    %3599 = vmatprep.subr.mxu0 0.0
    %3600 = vmatpush1.msra.mxu0 0.0
    %3601 = vmatprep.subr.mxu0 0.0
    %3602 = vmatpush1.msra.mxu0 0.0
    %3603 = vmatprep.subr.mxu0 0.0
    %3604 = vmatpush1.msra.mxu0 0.0
    %3605 = vmatprep.subr.mxu0 0.0
    %3606 = vmatpush1.msra.mxu0 0.0
    %3607 = vmatprep.subr.mxu0 0.0
    %3608 = vmatpush1.msra.mxu0 0.0
    %3609 = vmatprep.subr.mxu0 0.0
    %3610 = vmatpush1.msra.mxu0 0.0
    %3611 = vmatprep.subr.mxu0 0.0
    %3612 = vmatpush1.msra.mxu0 0.0
    %3613 = vmatprep.subr.mxu0 0.0
    %3614 = vmatpush1.msra.mxu0 0.0
    %3615 = vmatprep.subr.mxu0 0.0
    %3616 = vmatpush1.msra.mxu0 0.0
    %3617 = vmatprep.subr.mxu0 0.0
    %3618 = vmatpush1.msra.mxu0 0.0
    %3619 = vmatprep.subr.mxu0 0.0
    %3620 = vmatpush1.msra.mxu0 0.0
    %3621 = vmatprep.subr.mxu0 0.0
    %3622 = vmatpush1.msra.mxu0 0.0
    %3623 = vmatprep.subr.mxu0 0.0
    %3624 = vmatpush1.msra.mxu0 0.0
    %3625 = vmatprep.subr.mxu0 0.0
    %3626 = vmatpush1.msra.mxu0 0.0
    %3627 = vmatprep.subr.mxu0 0.0
    %3628 = vmatpush1.msra.mxu0 0.0
    %3629 = vmatprep.mubr.f32.mxu0 0.0
    %3630 = vmatmul.mubr.f32.gmra.mrb[0].mxu0 %v3563
    %v3631 = vpop.f32.mrb[0].mxu0
    %v3632 = vadd.f32 0.0, %v3631
    %v3633 = vpop.f32.mrb[0].mxu0
    %3634 = vdwg.mxu0
    %v3637 = vunpack.c.l.s4 1966171168
    %v3638 = vunpack.c.0.s8 %v3637
    %v3639 = vlaneseq
    %v3640 = vshrl.u32 %v3639, 7
    %v3641 = vsub.s32 %v3638, %v3640
    %v3642 = vrot.slane %v3632, %v3641
    %v3643 = vcombine.high %v3642, %v3642
    %v3645 = vunpack.c.l.s4 1966171168
    %v3646 = vunpack.c.0.s8 %v3645
    %v3647 = vlaneseq
    %v3648 = vshrl.u32 %v3647, 7
    %v3649 = vsub.s32 %v3646, %v3648
    %v3650 = vrot.slane %v3642, %v3649
    %v3652 = vunpack.c.l.s4 1966171168
    %v3653 = vunpack.c.0.s8 %v3652
    %v3654 = vlaneseq
    %v3655 = vshrl.u32 %v3654, 7
    %v3656 = vsub.s32 %v3653, %v3655
    %v3657 = vrot.slane %v3643, %v3656
    %v3658 = vlaneseq
    %v3659 = vshrl.u32 %v3658, 7
    %v3660 = vsub.s32 0, %v3659
    %v3661 = vrot.slane %v3650, %v3660
    %v3662 = vlaneseq
    %v3663 = vshrl.u32 %v3662, 7
    %v3664 = vsub.s32 0, %v3663
    %v3665 = vrot.slane %v3657, %v3664
    %v3668 = vadd.f32 %v1324, %v3661
    %v3669 = vadd.f32 %v1329, %v3665
    %v3670 = vtanh.pop %v3668
    %v3671 = vtanh.pop %v3669
    %v3672 = vmul.f32 %v3670, %v1336
    %v3673 = vmul.f32 %v3671, %v1336
    %v3674 = vsel %vm46, %v3672, 0.0
    %3675 = vadd.xlane.f32.xlu0 %v3674
    %v3676 = vpop.xlane.xlu0 %3675
    %v3677 = vsel %vm46, %v3673, 0.0
    %3678 = vadd.xlane.f32.xlu0 %v3677
    %v3679 = vpop.xlane.xlu0 %3678
    %v3682 = vlaneseq
    %v3683 = vshrl.u32 %v3682, 7
    %v3684 = vsub.s32 %v1564, %v3683
    %v3685 = vrot.slane %v3676, %v3684
    %v3686 = vlaneseq
    %v3687 = vshrl.u32 %v3686, 7
    %v3688 = vsub.s32 %v1564, %v3687
    %v3689 = vrot.slane %v3679, %v3688
    %v3690 = vsel %vm1573, %v3689, %v3685
    %v3692 = vsel %vm1576, %v3690, -inf
    %3693 = vmax.xlane.f32.xlu0 %v3692
    %v3694 = vpop.xlane.xlu0 %3693
    %v3696 = vlaneseq
    %v3697 = vshrl.u32 %v3696, 7
    %v3698 = vsub.s32 0, %v3697
    %v3699 = vrot.slane %v3694, %v3698
    %v3700 = vlaneseq
    %v3701 = vshrl.u32 %v3700, 7
    %v3702 = vsub.s32 1, %v3701
    %v3703 = vrot.slane %v3694, %v3702
    %v3706 = vsub.f32 %v3676, %v3699
    %v3707 = vsub.f32 %v3679, %v3703
    %v3708 = vmul.f32 %v3706, 1.442695
    %v3709 = vpow.pop %v3708
    %v3710 = vmul.f32 %v3707, 1.442695
    %v3711 = vpow.pop %v3710
    %3714 = vset.pattern.permute.xlu0 0
    %3715 = vperm.xlu0 %3714, %v3709
    %v3716 = vpop.permute.xlu0 %3715
    %3717 = vset.pattern.permute.xlu0 0
    %3718 = vperm.xlu0 %3717, %v3711
    %v3719 = vpop.permute.xlu0 %3718
    %v3720 = vlaneseq
    %v3721 = vshrl.u32 %v3720, 7
    %v3722 = vsub.s32 %v1564, %v3721
    %v3723 = vrot.slane %v3716, %v3722
    %v3724 = vlaneseq
    %v3725 = vshrl.u32 %v3724, 7
    %v3726 = vsub.s32 %v1564, %v3725
    %v3727 = vrot.slane %v3719, %v3726
    %v3728 = vsel %vm1573, %v3727, %v3723
    %v3730 = vsel %vm1576, %v3728, 0.0
    %3731 = vadd.xlane.f32.xlu0 %v3730
    %v3732 = vpop.xlane.xlu0 %3731
    %v3733 = vlog2.pop %v3732
    %v3734 = vmul.f32 %v3733, 0.6931472
    %v3736 = vlaneseq
    %v3737 = vshrl.u32 %v3736, 7
    %v3738 = vsub.s32 0, %v3737
    %v3739 = vrot.slane %v3734, %v3738
    %v3740 = vlaneseq
    %v3741 = vshrl.u32 %v3740, 7
    %v3742 = vsub.s32 1, %v3741
    %v3743 = vrot.slane %v3734, %v3742
    %v3746 = vsub.f32 %v3706, %v3739
    %v3747 = vsub.f32 %v3707, %v3743
    %3750 = vset.pattern.permute.xlu0 0
    %3751 = vperm.xlu0 %3750, %v3746
    %v3752 = vpop.permute.xlu0 %3751
    %3753 = vset.pattern.permute.xlu0 0
    %3754 = vperm.xlu0 %3753, %v3747
    %v3755 = vpop.permute.xlu0 %3754
    %v3756 = vlaneseq
    %v3757 = vshrl.u32 %v3756, 7
    %v3758 = vsub.s32 %v1564, %v3757
    %v3759 = vrot.slane %v3752, %v3758
    %v3760 = vlaneseq
    %v3761 = vshrl.u32 %v3760, 7
    %v3762 = vsub.s32 %v1564, %v3761
    %v3763 = vrot.slane %v3755, %v3762
    %3766 = vst.msk [vmem:[#allocation4 + $0x7] sm:$0x1] %vm1651, %v3759
    %3767 = vst.msk [vmem:[#allocation4 + $0xf] sm:$0x1] %vm1651, %v3763
    // Predicated region
    $region14: #{pointer_network_forward.1} parent=1 // pred_check
      _
    $region15: #{pointer_network_forward.1} parent=1 // pred_check_branch
      %3769 = sbr.rel (0) target = $region17
    $region16: #{pointer_network_forward.1} parent=1 // pred_region
      %s3771 = ssub.s32 256, 256
      %3772 = vsyncadd [#allocation5], %s3771
      %s3773 = sshll.u32 [#allocation4], 4
      %s3774 = int_to_ptr.vmem [resolvable:$true] %s3773
      %3779 = dma.vmem_to_hbm [thread:$0]  %s3774, 256, %s3, [#allocation5], 128, 128, 8
    $region17: #{pointer_network_forward.1} parent=1 // pred_fallthru
      _
    // Predicated region
    $region18: #{pointer_network_forward.1} parent=1 // pred_check
      _
    $region19: #{pointer_network_forward.1} parent=1 // pred_check_branch
      %3781 = sbr.rel (0) target = $region21
    $region20: #{pointer_network_forward.1} parent=1 // pred_region
      %3782 = dma.done [#allocation5], 256
    $region21: #{pointer_network_forward.1} parent=1 // pred_fallthru
      _
    %3783 = vsyncpa [#allocation5], 1

</llo_original>
